<compile_context>
chip_gen: v7x
topology: tpu7x:2x2x1
jax: 0.10.0
libtpu: 0.0.40
codegen_flags: <defaults>
</compile_context>

<pallas_src>
import functools

import numpy as np
import jax
import jax.numpy as jnp
from jax.experimental import pallas as pl
from jax.experimental.pallas import tpu as pltpu

# ----------------------------------------------------------------------------
# Synthetic model config (consistent with the PyTorch module's __init__)
# ----------------------------------------------------------------------------
INPUT_CHANNELS = 4
LAYER_NUMS = [1, 1]
LAYER_STRIDES = [1, 2]
NUM_FILTERS = [8, 16]
UPSAMPLE_STRIDES = [1, 2]
NUM_UPSAMPLE_FILTERS = [16, 16]

# FPN-UP branch -> layer key "3"  (FPN_DOWN / FPN_DOWNUP empty)
NUM_BEV_FEATURES_FPN_UP = [4]
LAYER_NUMS_FPN_UP = [[1]]
LAYER_STRIDES_FPN_UP = [[2]]
NUM_FILTERS_FPN_UP = [[8]]
UPSAMPLE_STRIDES_FPN_UP = [[2]]
NUM_UPSAMPLE_FILTERS_FPN_UP = [[8]]

BN_EPS = 1e-3
HALO = 128                       # lane-aligned halo pad around the flattened row
MATMUL_DTYPE = jnp.float32       # jnp.bfloat16 on v6e/v7x for 2x HBM/VMEM BW


def _round8(c):
    return ((c + 7) // 8) * 8


def _mm(a, b):
    return jnp.dot(a.astype(MATMUL_DTYPE), b.astype(MATMUL_DTYPE),
                   preferred_element_type=jnp.float32)


# ----------------------------------------------------------------------------
# Fused whole-branch kernel
# ----------------------------------------------------------------------------
def _branch_kernel(plan, *refs):
    """Runs one full BEV backbone branch for one batch element.

    refs = (x_ref, *param_refs, out_ref, taps_scratch, halo_scratch)
    Activations are (C, P) values (P in lanes); all intermediates stay in
    VMEM / vregs.  `plan` is a static python description of the architecture.
    """
    n_params = plan["n_params"]
    x_ref = refs[0]
    param_refs = refs[1:1 + n_params]
    out_ref = refs[1 + n_params]
    taps_ref = refs[2 + n_params]
    halo_ref = refs[3 + n_params]
    halo_w = halo_ref.shape[1]

    params = iter(param_refs)
    x = x_ref[0]                                           # (Cin_pad, P0)

    c_off = 0
    for blk in plan["blocks"]:
        # ---------------- conv stack: ZeroPad2d(1)+Conv3x3+BN+ReLU ----------
        for cv in blk["convs"]:
            w_ref = next(params)                           # (Cout, 9*Cin)
            s_ref = next(params)                           # (Cout, 1) folded BN
            b_ref = next(params)                           # (Cout, 1)
            m_ref = next(params)                           # (9, P) border mask
            sel_ref = next(params) if cv["stride"] > 1 else None
            cin, cout = cv["cin"], cv["cout"]
            W, P = cv["w"], cv["h"] * cv["w"]

            # zero-halo copy of the activation (in-VMEM ZeroPad2d)
            halo_ref[0:cin, :] = jnp.zeros((cin, halo_w), jnp.float32)
            halo_ref[0:cin, HALO:HALO + P] = x

            # im2col in VMEM: 9 shifted views, masked at the image border
            for t in range(9):
                dy, dx = t // 3 - 1, t % 3 - 1
                off = HALO + dy * W + dx
                slab = halo_ref[0:cin, off:off + P] * m_ref[t:t + 1, :]
                taps_ref[t * cin:(t + 1) * cin, 0:P] = slab

            # single folded matmul: (Cout, 9*Cin) x (9*Cin, P)
            y = _mm(w_ref[...], taps_ref[0:9 * cin, 0:P])
            if sel_ref is not None:                        # stride-2 subsample
                y = _mm(y, sel_ref[...])
            y = jnp.maximum(y * s_ref[...] + b_ref[...], 0.0)
            x = y

        # ---------------- deblock: ConvTranspose(k==stride)+BN+ReLU ---------
        de = blk["deconv"]
        if de is None:
            # TODO(synk): no-deblock configs (ups are raw block outputs) are
            # supported here but not exercised by this config.
            out_ref[0, c_off:c_off + x.shape[0], :] = x
            c_off += x.shape[0]
            continue

        w_ref = next(params)                               # (k*k*Cout, Cin)
        s_ref = next(params)
        b_ref = next(params)
        cout, k = de["cout"], de["k"]
        if k == 1:
            up = _mm(w_ref[...], x)                        # plain 1x1
        else:
            sc_ref = next(params)                          # (k*k, P, P_up)
            z = _mm(w_ref[...], x)                         # (k*k*Cout, P)
            up = None
            for t in range(k * k):                         # sub-pixel scatter
                part = _mm(z[t * cout:(t + 1) * cout, :], sc_ref[t])
                up = part if up is None else up + part
        up = jnp.maximum(up * s_ref[...] + b_ref[...], 0.0)
        out_ref[0, c_off:c_off + cout, :] = up
        c_off += cout


# ----------------------------------------------------------------------------
# Constant helper matrices (built once, numpy)
# ----------------------------------------------------------------------------
def _conv_mask(h, w):
    """(9, h*w) float mask: tap (dy,dx) valid inside the image."""
    p = np.arange(h * w)
    hh, ww = p // w, p % w
    m = np.zeros((9, h * w), np.float32)
    for t in range(9):
        dy, dx = t // 3 - 1, t % 3 - 1
        m[t] = ((hh + dy >= 0) & (hh + dy < h) &
                (ww + dx >= 0) & (ww + dx < w)).astype(np.float32)
    return m


def _stride_select(h, w, s):
    """0/1 matrix picking the stride-s output positions from the full grid."""
    ho, wo = (h - 1) // s + 1, (w - 1) // s + 1
    sel = np.zeros((h * w, ho * wo), np.float32)
    for q in range(ho * wo):
        r, c = q // wo, q % wo
        sel[(r * s) * w + (c * s), q] = 1.0
    return sel, ho, wo


def _deconv_scatter(h, w, k):
    """(k*k, h*w, h*k*w*k) 0/1 scatter matrices for ConvTranspose(k, stride=k)."""
    hu, wu = h * k, w * k
    scat = np.zeros((k * k, h * w, hu * wu), np.float32)
    for t in range(k * k):
        ty, tx = t // k, t % k
        for p in range(h * w):
            hh, ww = p // w, p % w
            scat[t, p, (hh * k + ty) * wu + (ww * k + tx)] = 1.0
    return scat


# ----------------------------------------------------------------------------
# Wrapper: builds the plan / flat param list and invokes the fused kernel
# ----------------------------------------------------------------------------
def branch_forward(x_nchw, blocks, deblocks):
    """blocks[b] = list of (w_hwio(3,3,ci,co), scale(co,), bias(co,), stride)
    deblocks[b] = (w_ct(ci,co,k,k), scale(co,), bias(co,), k).  NCHW in/out."""
    N, Cin, H, W = x_nchw.shape
    cin_pad = _round8(Cin)
    x = x_nchw.reshape(N, Cin, H * W).astype(jnp.float32)
    if cin_pad != Cin:
        x = jnp.concatenate(
            [x, jnp.zeros((N, cin_pad - Cin, H * W), jnp.float32)], axis=1)

    arrays, specs, plan_blocks = [], [], []

    def add(arr):
        arrays.append(arr)
        r = arr.ndim
        specs.append(pl.BlockSpec(arr.shape, lambda n, _r=r: (0,) * _r))

    h, w = H, W
    c_prev = cin_pad
    c_cat = 0
    max_taps_rows, max_taps_p, max_halo_c = 8, 128, 8
    out_hw = (h, w)

    for bi, blk in enumerate(blocks):
        convs_meta = []
        for (wt, sc, bs, st) in blk:
            kh, kw, wcin, cout = wt.shape
            cin = c_prev
            if wcin != cin:                       # pad input channels to 8-mult
                wt = jnp.concatenate(
                    [wt, jnp.zeros((kh, kw, cin - wcin, cout), wt.dtype)], axis=2)
            w_fold = jnp.transpose(wt, (3, 0, 1, 2)).reshape(cout, 9 * cin)
            add(w_fold.astype(jnp.float32))
            add(sc.reshape(cout, 1).astype(jnp.float32))
            add(bs.reshape(cout, 1).astype(jnp.float32))
            add(jnp.asarray(_conv_mask(h, w)))
            convs_meta.append({"cin": cin, "cout": cout, "stride": st,
                               "h": h, "w": w})
            max_taps_rows = max(max_taps_rows, 9 * cin)
            max_taps_p = max(max_taps_p, h * w)
            max_halo_c = max(max_halo_c, cin)
            if st > 1:
                sel, h, w = _stride_select(h, w, st)
                add(jnp.asarray(sel))
            c_prev = cout

        if deblocks:
            wd, sc, bs, k = deblocks[bi]
            cin_d, cout_d = wd.shape[0], wd.shape[1]
            w_stack = jnp.transpose(wd, (2, 3, 1, 0)).reshape(k * k * cout_d, cin_d)
            add(w_stack.astype(jnp.float32))
            add(sc.reshape(cout_d, 1).astype(jnp.float32))
            add(bs.reshape(cout_d, 1).astype(jnp.float32))
            if k > 1:
                add(jnp.asarray(_deconv_scatter(h, w, k)))
            plan_blocks.append({"convs": convs_meta,
                                "deconv": {"cout": cout_d, "k": k}})
            out_hw = (h * k, w * k)
            c_cat += cout_d
        else:
            plan_blocks.append({"convs": convs_meta, "deconv": None})
            out_hw = (h, w)
            c_cat += c_prev
    # TODO(synk): trailing extra deblock (len(deblocks) > len(blocks)) and the
    # stride<1 downsample-deblock variant are not exercised by this config.

    Ho, Wo = out_hw
    P_out = Ho * Wo
    plan = {"blocks": plan_blocks, "n_params": len(arrays)}
    halo_w = max_taps_p + 2 * HALO

    grid_spec = pltpu.PrefetchScalarGridSpec(
        num_scalar_prefetch=0,
        grid=(N,),
        in_specs=[pl.BlockSpec((1, cin_pad, H * W), lambda n: (n, 0, 0))] + specs,
        out_specs=pl.BlockSpec((1, c_cat, P_out), lambda n: (n, 0, 0)),
        scratch_shapes=[
            pltpu.VMEM((max_taps_rows, max_taps_p), jnp.float32),   # im2col taps
            pltpu.VMEM((max_halo_c, halo_w), jnp.float32),          # zero halo
        ],
    )
    out = pl.pallas_call(
        functools.partial(_branch_kernel, plan),
        out_shape=jax.ShapeDtypeStruct((N, c_cat, P_out), jnp.float32),
        grid_spec=grid_spec,
        compiler_params=pltpu.CompilerParams(
            dimension_semantics=("parallel",)),
    )(x, *arrays)
    return out.reshape(N, c_cat, Ho, Wo)                   # already NCHW


def forward(data_dict, params):
    out = dict(data_dict)
    out['spatial_features_2d'] = branch_forward(
        data_dict['spatial_features'], params['blocks'], params['deblocks'])
    for layer, (blocks, deblocks) in params['fpn'].items():
        out[f'spatial_features_2d_fpn{layer}'] = branch_forward(
            data_dict[f'spatial_features_fpn{layer}'], blocks, deblocks)
    return out


# ----------------------------------------------------------------------------
# Parameter construction (deterministic, synthetic; eval-mode folded BN)
# ----------------------------------------------------------------------------
def _bn_fold(c):
    scale = jnp.full((c,), (1.0 + BN_EPS) ** -0.5, jnp.float32)
    bias = jnp.zeros((c,), jnp.float32)
    return scale, bias


def _build_branch(key, input_channels, layer_nums, layer_strides, num_filters,
                  upsample_strides, num_upsample_filters):
    blocks, deblocks = [], []
    c_in_list = [input_channels, *num_filters[:-1]]
    n_keys = sum(layer_nums) + 2 * len(layer_nums)
    keys = iter(jax.random.split(key, n_keys))
    for idx in range(len(layer_nums)):
        blk = []
        s, b = _bn_fold(num_filters[idx])
        blk.append((jax.random.normal(next(keys),
                                      (3, 3, c_in_list[idx], num_filters[idx]),
                                      jnp.float32) * 0.05,
                    s, b, layer_strides[idx]))
        for _ in range(layer_nums[idx]):
            s, b = _bn_fold(num_filters[idx])
            blk.append((jax.random.normal(next(keys),
                                          (3, 3, num_filters[idx], num_filters[idx]),
                                          jnp.float32) * 0.05,
                        s, b, 1))
        blocks.append(blk)
        k = upsample_strides[idx]
        s, b = _bn_fold(num_upsample_filters[idx])
        deblocks.append((jax.random.normal(next(keys),
                                           (num_filters[idx], num_upsample_filters[idx], k, k),
                                           jnp.float32) * 0.05,
                         s, b, k))
    return blocks, deblocks


# ----------------------------------------------------------------------------
# Pure-JAX reference (lax conv / einsum deconv) for correctness checking
# ----------------------------------------------------------------------------
def _ref_conv(x, w, scale, bias, stride):
    y = jax.lax.conv_general_dilated(x, w, (stride, stride), ((1, 1), (1, 1)),
                                     dimension_numbers=('NHWC', 'HWIO', 'NHWC'))
    return jnp.maximum(y * scale + bias, 0.0)


def _ref_deconv(x, w, scale, bias, k):
    N, H, W, Cin = x.shape
    Cout = w.shape[1]
    y = jnp.einsum('nhwi,iopq->nhpwqo', x, w).reshape(N, H * k, W * k, Cout)
    return jnp.maximum(y * scale + bias, 0.0)


def _ref_branch(x_nchw, blocks, deblocks):
    x = jnp.transpose(x_nchw, (0, 2, 3, 1))
    ups = []
    for i, blk in enumerate(blocks):
        for (w, sc, b, st) in blk:
            x = _ref_conv(x, w, sc, b, st)
        w, sc, b, k = deblocks[i]
        ups.append(_ref_deconv(x, w, sc, b, k))
    x = jnp.concatenate(ups, axis=-1) if len(ups) > 1 else ups[0]
    return jnp.transpose(x, (0, 3, 1, 2))


# ----------------------------------------------------------------------------
if __name__ == "__main__":
    key = jax.random.PRNGKey(0)
    k_sf, k_fpn, k_p1, k_p2 = jax.random.split(key, 4)

    sf = jax.random.normal(k_sf, (2, INPUT_CHANNELS, 16, 16), jnp.float32)
    sf_fpn3 = jax.random.normal(k_fpn, (2, NUM_BEV_FEATURES_FPN_UP[0], 16, 16),
                                jnp.float32)

    blocks, deblocks = _build_branch(
        k_p1, INPUT_CHANNELS, LAYER_NUMS, LAYER_STRIDES, NUM_FILTERS,
        UPSAMPLE_STRIDES, NUM_UPSAMPLE_FILTERS)
    fpn3_blocks, fpn3_deblocks = _build_branch(
        k_p2, NUM_BEV_FEATURES_FPN_UP[0], LAYER_NUMS_FPN_UP[0],
        LAYER_STRIDES_FPN_UP[0], NUM_FILTERS_FPN_UP[0],
        UPSAMPLE_STRIDES_FPN_UP[0], NUM_UPSAMPLE_FILTERS_FPN_UP[0])
    params = {'blocks': blocks, 'deblocks': deblocks,
              'fpn': {'3': (fpn3_blocks, fpn3_deblocks)}}

    data_dict = {'spatial_features': sf, 'spatial_features_fpn3': sf_fpn3}
    out = forward(data_dict, params)

    y = jax.block_until_ready(out['spatial_features_2d'])
    y_fpn = jax.block_until_ready(out['spatial_features_2d_fpn3'])

    assert y.shape == (2, sum(NUM_UPSAMPLE_FILTERS), 16, 16), y.shape
    assert y_fpn.shape == (2, sum(NUM_UPSAMPLE_FILTERS_FPN_UP[0]), 16, 16), y_fpn.shape

    y_ref = _ref_branch(sf, blocks, deblocks)
    y_fpn_ref = _ref_branch(sf_fpn3, fpn3_blocks, fpn3_deblocks)
    assert jnp.allclose(y, y_ref, atol=1e-4, rtol=1e-4)
    assert jnp.allclose(y_fpn, y_fpn_ref, atol=1e-4, rtol=1e-4)

    print("KERNEL_OK")
</pallas_src>

<mosaic_0001>
module attributes {stable_mosaic.version = 11 : i64} {
  func.func @_branch_kernel(%arg0: i32, %arg1: memref<1x8x256xf32, #tpu.memory_space<vmem>>, %arg2: memref<8x72xf32, #tpu.memory_space<vmem>>, %arg3: memref<8x1xf32, #tpu.memory_space<vmem>>, %arg4: memref<8x1xf32, #tpu.memory_space<vmem>>, %arg5: memref<9x256xf32, #tpu.memory_space<vmem>>, %arg6: memref<8x72xf32, #tpu.memory_space<vmem>>, %arg7: memref<8x1xf32, #tpu.memory_space<vmem>>, %arg8: memref<8x1xf32, #tpu.memory_space<vmem>>, %arg9: memref<9x256xf32, #tpu.memory_space<vmem>>, %arg10: memref<16x8xf32, #tpu.memory_space<vmem>>, %arg11: memref<16x1xf32, #tpu.memory_space<vmem>>, %arg12: memref<16x1xf32, #tpu.memory_space<vmem>>, %arg13: memref<16x72xf32, #tpu.memory_space<vmem>>, %arg14: memref<16x1xf32, #tpu.memory_space<vmem>>, %arg15: memref<16x1xf32, #tpu.memory_space<vmem>>, %arg16: memref<9x256xf32, #tpu.memory_space<vmem>>, %arg17: memref<256x64xf32, #tpu.memory_space<vmem>>, %arg18: memref<16x144xf32, #tpu.memory_space<vmem>>, %arg19: memref<16x1xf32, #tpu.memory_space<vmem>>, %arg20: memref<16x1xf32, #tpu.memory_space<vmem>>, %arg21: memref<9x64xf32, #tpu.memory_space<vmem>>, %arg22: memref<64x16xf32, #tpu.memory_space<vmem>>, %arg23: memref<16x1xf32, #tpu.memory_space<vmem>>, %arg24: memref<16x1xf32, #tpu.memory_space<vmem>>, %arg25: memref<4x64x256xf32, #tpu.memory_space<vmem>>, %arg26: memref<1x32x256xf32, #tpu.memory_space<vmem>>, %arg27: memref<144x256xf32, #tpu.memory_space<vmem>>, %arg28: memref<16x512xf32, #tpu.memory_space<vmem>>) attributes {dimension_semantics = [#tpu.dimension_semantics<parallel>], iteration_bounds = array<i64: 2>, scalar_prefetch = 0 : i64, scratch_operands = 2 : i64, tpu.core_type = #tpu.core_type<tc>, window_params = [{transform_indices = @transform_0, window_bounds = array<i64: 1, 8, 256>}, {pipeline_mode = #tpu.pipeline_mode<synchronous>, transform_indices = @transform_1, window_bounds = array<i64: 8, 72>}, {pipeline_mode = #tpu.pipeline_mode<synchronous>, transform_indices = @transform_2, window_bounds = array<i64: 8, 1>}, {pipeline_mode = #tpu.pipeline_mode<synchronous>, transform_indices = @transform_3, window_bounds = array<i64: 8, 1>}, {pipeline_mode = #tpu.pipeline_mode<synchronous>, transform_indices = @transform_4, window_bounds = array<i64: 9, 256>}, {pipeline_mode = #tpu.pipeline_mode<synchronous>, transform_indices = @transform_5, window_bounds = array<i64: 8, 72>}, {pipeline_mode = #tpu.pipeline_mode<synchronous>, transform_indices = @transform_6, window_bounds = array<i64: 8, 1>}, {pipeline_mode = #tpu.pipeline_mode<synchronous>, transform_indices = @transform_7, window_bounds = array<i64: 8, 1>}, {pipeline_mode = #tpu.pipeline_mode<synchronous>, transform_indices = @transform_8, window_bounds = array<i64: 9, 256>}, {pipeline_mode = #tpu.pipeline_mode<synchronous>, transform_indices = @transform_9, window_bounds = array<i64: 16, 8>}, {pipeline_mode = #tpu.pipeline_mode<synchronous>, transform_indices = @transform_10, window_bounds = array<i64: 16, 1>}, {pipeline_mode = #tpu.pipeline_mode<synchronous>, transform_indices = @transform_11, window_bounds = array<i64: 16, 1>}, {pipeline_mode = #tpu.pipeline_mode<synchronous>, transform_indices = @transform_12, window_bounds = array<i64: 16, 72>}, {pipeline_mode = #tpu.pipeline_mode<synchronous>, transform_indices = @transform_13, window_bounds = array<i64: 16, 1>}, {pipeline_mode = #tpu.pipeline_mode<synchronous>, transform_indices = @transform_14, window_bounds = array<i64: 16, 1>}, {pipeline_mode = #tpu.pipeline_mode<synchronous>, transform_indices = @transform_15, window_bounds = array<i64: 9, 256>}, {pipeline_mode = #tpu.pipeline_mode<synchronous>, transform_indices = @transform_16, window_bounds = array<i64: 256, 64>}, {pipeline_mode = #tpu.pipeline_mode<synchronous>, transform_indices = @transform_17, window_bounds = array<i64: 16, 144>}, {pipeline_mode = #tpu.pipeline_mode<synchronous>, transform_indices = @transform_18, window_bounds = array<i64: 16, 1>}, {pipeline_mode = #tpu.pipeline_mode<synchronous>, transform_indices = @transform_19, window_bounds = array<i64: 16, 1>}, {pipeline_mode = #tpu.pipeline_mode<synchronous>, transform_indices = @transform_20, window_bounds = array<i64: 9, 64>}, {pipeline_mode = #tpu.pipeline_mode<synchronous>, transform_indices = @transform_21, window_bounds = array<i64: 64, 16>}, {pipeline_mode = #tpu.pipeline_mode<synchronous>, transform_indices = @transform_22, window_bounds = array<i64: 16, 1>}, {pipeline_mode = #tpu.pipeline_mode<synchronous>, transform_indices = @transform_23, window_bounds = array<i64: 16, 1>}, {pipeline_mode = #tpu.pipeline_mode<synchronous>, transform_indices = @transform_24, window_bounds = array<i64: 4, 64, 256>}, {transform_indices = @transform_25, window_bounds = array<i64: 1, 32, 256>}]} {
    %c0 = arith.constant 0 : index
    %c0_0 = arith.constant 0 : index
    %c0_1 = arith.constant 0 : index
    %0 = vector.load %arg1[%c0, %c0_0, %c0_1] : memref<1x8x256xf32, #tpu.memory_space<vmem>>, vector<1x8x256xf32>
    %1 = vector.shape_cast %0 : vector<1x8x256xf32> to vector<8x256xf32>
    %cst = arith.constant 0.000000e+00 : f32
    %2 = vector.broadcast %cst : f32 to vector<8x512xf32>
    %c0_2 = arith.constant 0 : index
    %c0_3 = arith.constant 0 : index
    %3 = vector.load %arg28[%c0_2, %c0_3] : memref<16x512xf32, #tpu.memory_space<vmem>>, vector<8x512xf32>
    tpu.vector_store %arg28[%c0_2, %c0_3], %2 {strides = array<i32>} : memref<16x512xf32, #tpu.memory_space<vmem>>, vector<8x512xf32>,
    %c0_4 = arith.constant 0 : index
    %c128 = arith.constant 128 : index
    %4 = vector.load %arg28[%c0_4, %c128] : memref<16x512xf32, #tpu.memory_space<vmem>>, vector<8x256xf32>
    tpu.vector_store %arg28[%c0_4, %c128], %1 {strides = array<i32>} : memref<16x512xf32, #tpu.memory_space<vmem>>, vector<8x256xf32>,
    %c0_5 = arith.constant 0 : index
    %c111 = arith.constant 111 : index
    %5 = vector.load %arg28[%c0_5, %c111] : memref<16x512xf32, #tpu.memory_space<vmem>>, vector<8x256xf32>
    %c0_6 = arith.constant 0 : index
    %c0_7 = arith.constant 0 : index
    %6 = vector.load %arg5[%c0_6, %c0_7] : memref<9x256xf32, #tpu.memory_space<vmem>>, vector<1x256xf32>
    %7 = vector.broadcast %6 : vector<1x256xf32> to vector<8x256xf32>
    %8 = arith.mulf %5, %7 : vector<8x256xf32>
    %c0_8 = arith.constant 0 : index
    %c0_9 = arith.constant 0 : index
    %9 = vector.load %arg27[%c0_8, %c0_9] : memref<144x256xf32, #tpu.memory_space<vmem>>, vector<8x256xf32>
    tpu.vector_store %arg27[%c0_8, %c0_9], %8 {strides = array<i32>} : memref<144x256xf32, #tpu.memory_space<vmem>>, vector<8x256xf32>,
    %c0_10 = arith.constant 0 : index
    %c112 = arith.constant 112 : index
    %10 = vector.load %arg28[%c0_10, %c112] : memref<16x512xf32, #tpu.memory_space<vmem>>, vector<8x256xf32>
    %c1 = arith.constant 1 : index
    %c0_11 = arith.constant 0 : index
    %11 = vector.load %arg5[%c1, %c0_11] : memref<9x256xf32, #tpu.memory_space<vmem>>, vector<1x256xf32>
    %12 = vector.broadcast %11 : vector<1x256xf32> to vector<8x256xf32>
    %13 = arith.mulf %10, %12 : vector<8x256xf32>
    %c8 = arith.constant 8 : index
    %c0_12 = arith.constant 0 : index
    %14 = vector.load %arg27[%c8, %c0_12] : memref<144x256xf32, #tpu.memory_space<vmem>>, vector<8x256xf32>
    tpu.vector_store %arg27[%c8, %c0_12], %13 {strides = array<i32>} : memref<144x256xf32, #tpu.memory_space<vmem>>, vector<8x256xf32>,
    %c0_13 = arith.constant 0 : index
    %c113 = arith.constant 113 : index
    %15 = vector.load %arg28[%c0_13, %c113] : memref<16x512xf32, #tpu.memory_space<vmem>>, vector<8x256xf32>
    %c2 = arith.constant 2 : index
    %c0_14 = arith.constant 0 : index
    %16 = vector.load %arg5[%c2, %c0_14] : memref<9x256xf32, #tpu.memory_space<vmem>>, vector<1x256xf32>
    %17 = vector.broadcast %16 : vector<1x256xf32> to vector<8x256xf32>
    %18 = arith.mulf %15, %17 : vector<8x256xf32>
    %c16 = arith.constant 16 : index
    %c0_15 = arith.constant 0 : index
    %19 = vector.load %arg27[%c16, %c0_15] : memref<144x256xf32, #tpu.memory_space<vmem>>, vector<8x256xf32>
    tpu.vector_store %arg27[%c16, %c0_15], %18 {strides = array<i32>} : memref<144x256xf32, #tpu.memory_space<vmem>>, vector<8x256xf32>,
    %c0_16 = arith.constant 0 : index
    %c127 = arith.constant 127 : index
    %20 = vector.load %arg28[%c0_16, %c127] : memref<16x512xf32, #tpu.memory_space<vmem>>, vector<8x256xf32>
    %c3 = arith.constant 3 : index
    %c0_17 = arith.constant 0 : index
    %21 = vector.load %arg5[%c3, %c0_17] : memref<9x256xf32, #tpu.memory_space<vmem>>, vector<1x256xf32>
    %22 = vector.broadcast %21 : vector<1x256xf32> to vector<8x256xf32>
    %23 = arith.mulf %20, %22 : vector<8x256xf32>
    %c24 = arith.constant 24 : index
    %c0_18 = arith.constant 0 : index
    %24 = vector.load %arg27[%c24, %c0_18] : memref<144x256xf32, #tpu.memory_space<vmem>>, vector<8x256xf32>
    tpu.vector_store %arg27[%c24, %c0_18], %23 {strides = array<i32>} : memref<144x256xf32, #tpu.memory_space<vmem>>, vector<8x256xf32>,
    %c0_19 = arith.constant 0 : index
    %c128_20 = arith.constant 128 : index
    %25 = vector.load %arg28[%c0_19, %c128_20] : memref<16x512xf32, #tpu.memory_space<vmem>>, vector<8x256xf32>
    %c4 = arith.constant 4 : index
    %c0_21 = arith.constant 0 : index
    %26 = vector.load %arg5[%c4, %c0_21] : memref<9x256xf32, #tpu.memory_space<vmem>>, vector<1x256xf32>
    %27 = vector.broadcast %26 : vector<1x256xf32> to vector<8x256xf32>
    %28 = arith.mulf %25, %27 : vector<8x256xf32>
    %c32 = arith.constant 32 : index
    %c0_22 = arith.constant 0 : index
    %29 = vector.load %arg27[%c32, %c0_22] : memref<144x256xf32, #tpu.memory_space<vmem>>, vector<8x256xf32>
    tpu.vector_store %arg27[%c32, %c0_22], %28 {strides = array<i32>} : memref<144x256xf32, #tpu.memory_space<vmem>>, vector<8x256xf32>,
    %c0_23 = arith.constant 0 : index
    %c129 = arith.constant 129 : index
    %30 = vector.load %arg28[%c0_23, %c129] : memref<16x512xf32, #tpu.memory_space<vmem>>, vector<8x256xf32>
    %c5 = arith.constant 5 : index
    %c0_24 = arith.constant 0 : index
    %31 = vector.load %arg5[%c5, %c0_24] : memref<9x256xf32, #tpu.memory_space<vmem>>, vector<1x256xf32>
    %32 = vector.broadcast %31 : vector<1x256xf32> to vector<8x256xf32>
    %33 = arith.mulf %30, %32 : vector<8x256xf32>
    %c40 = arith.constant 40 : index
    %c0_25 = arith.constant 0 : index
    %34 = vector.load %arg27[%c40, %c0_25] : memref<144x256xf32, #tpu.memory_space<vmem>>, vector<8x256xf32>
    tpu.vector_store %arg27[%c40, %c0_25], %33 {strides = array<i32>} : memref<144x256xf32, #tpu.memory_space<vmem>>, vector<8x256xf32>,
    %c0_26 = arith.constant 0 : index
    %c143 = arith.constant 143 : index
    %35 = vector.load %arg28[%c0_26, %c143] : memref<16x512xf32, #tpu.memory_space<vmem>>, vector<8x256xf32>
    %c6 = arith.constant 6 : index
    %c0_27 = arith.constant 0 : index
    %36 = vector.load %arg5[%c6, %c0_27] : memref<9x256xf32, #tpu.memory_space<vmem>>, vector<1x256xf32>
    %37 = vector.broadcast %36 : vector<1x256xf32> to vector<8x256xf32>
    %38 = arith.mulf %35, %37 : vector<8x256xf32>
    %c48 = arith.constant 48 : index
    %c0_28 = arith.constant 0 : index
    %39 = vector.load %arg27[%c48, %c0_28] : memref<144x256xf32, #tpu.memory_space<vmem>>, vector<8x256xf32>
    tpu.vector_store %arg27[%c48, %c0_28], %38 {strides = array<i32>} : memref<144x256xf32, #tpu.memory_space<vmem>>, vector<8x256xf32>,
    %c0_29 = arith.constant 0 : index
    %c144 = arith.constant 144 : index
    %40 = vector.load %arg28[%c0_29, %c144] : memref<16x512xf32, #tpu.memory_space<vmem>>, vector<8x256xf32>
    %c7 = arith.constant 7 : index
    %c0_30 = arith.constant 0 : index
    %41 = vector.load %arg5[%c7, %c0_30] : memref<9x256xf32, #tpu.memory_space<vmem>>, vector<1x256xf32>
    %42 = vector.broadcast %41 : vector<1x256xf32> to vector<8x256xf32>
    %43 = arith.mulf %40, %42 : vector<8x256xf32>
    %c56 = arith.constant 56 : index
    %c0_31 = arith.constant 0 : index
    %44 = vector.load %arg27[%c56, %c0_31] : memref<144x256xf32, #tpu.memory_space<vmem>>, vector<8x256xf32>
    tpu.vector_store %arg27[%c56, %c0_31], %43 {strides = array<i32>} : memref<144x256xf32, #tpu.memory_space<vmem>>, vector<8x256xf32>,
    %c0_32 = arith.constant 0 : index
    %c145 = arith.constant 145 : index
    %45 = vector.load %arg28[%c0_32, %c145] : memref<16x512xf32, #tpu.memory_space<vmem>>, vector<8x256xf32>
    %c8_33 = arith.constant 8 : index
    %c0_34 = arith.constant 0 : index
    %46 = vector.load %arg5[%c8_33, %c0_34] : memref<9x256xf32, #tpu.memory_space<vmem>>, vector<1x256xf32>
    %47 = vector.broadcast %46 : vector<1x256xf32> to vector<8x256xf32>
    %48 = arith.mulf %45, %47 : vector<8x256xf32>
    %c64 = arith.constant 64 : index
    %c0_35 = arith.constant 0 : index
    %49 = vector.load %arg27[%c64, %c0_35] : memref<144x256xf32, #tpu.memory_space<vmem>>, vector<8x256xf32>
    tpu.vector_store %arg27[%c64, %c0_35], %48 {strides = array<i32>} : memref<144x256xf32, #tpu.memory_space<vmem>>, vector<8x256xf32>,
    %c0_36 = arith.constant 0 : index
    %c0_37 = arith.constant 0 : index
    %50 = vector.load %arg2[%c0_36, %c0_37] : memref<8x72xf32, #tpu.memory_space<vmem>>, vector<8x72xf32>
    %c0_38 = arith.constant 0 : index
    %c0_39 = arith.constant 0 : index
    %51 = vector.load %arg27[%c0_38, %c0_39] : memref<144x256xf32, #tpu.memory_space<vmem>>, vector<72x256xf32>
    %cst_40 = arith.constant dense<0.000000e+00> : vector<8x256xf32>
    %52 = tpu.matmul %50, %51, %cst_40 {dimension_numbers = #tpu.dot_dimension_numbers<[1], [0], [0], [1], [0, 0, 1, 1], [], []>} : vector<8x72xf32>, vector<72x256xf32>, vector<8x256xf32> -> vector<8x256xf32>
    %c0_41 = arith.constant 0 : index
    %c0_42 = arith.constant 0 : index
    %53 = vector.load %arg3[%c0_41, %c0_42] : memref<8x1xf32, #tpu.memory_space<vmem>>, vector<8x1xf32>
    %54 = vector.broadcast %53 : vector<8x1xf32> to vector<8x256xf32>
    %55 = arith.mulf %52, %54 : vector<8x256xf32>
    %c0_43 = arith.constant 0 : index
    %c0_44 = arith.constant 0 : index
    %56 = vector.load %arg4[%c0_43, %c0_44] : memref<8x1xf32, #tpu.memory_space<vmem>>, vector<8x1xf32>
    %57 = vector.broadcast %56 : vector<8x1xf32> to vector<8x256xf32>
    %58 = arith.addf %55, %57 : vector<8x256xf32>
    %cst_45 = arith.constant 0.000000e+00 : f32
    %59 = vector.broadcast %cst_45 : f32 to vector<8x256xf32>
    %60 = arith.maximumf %58, %59 : vector<8x256xf32>
    %cst_46 = arith.constant 0.000000e+00 : f32
    %61 = vector.broadcast %cst_46 : f32 to vector<8x512xf32>
    %c0_47 = arith.constant 0 : index
    %c0_48 = arith.constant 0 : index
    %62 = vector.load %arg28[%c0_47, %c0_48] : memref<16x512xf32, #tpu.memory_space<vmem>>, vector<8x512xf32>
    tpu.vector_store %arg28[%c0_47, %c0_48], %61 {strides = array<i32>} : memref<16x512xf32, #tpu.memory_space<vmem>>, vector<8x512xf32>,
    %c0_49 = arith.constant 0 : index
    %c128_50 = arith.constant 128 : index
    %63 = vector.load %arg28[%c0_49, %c128_50] : memref<16x512xf32, #tpu.memory_space<vmem>>, vector<8x256xf32>
    tpu.vector_store %arg28[%c0_49, %c128_50], %60 {strides = array<i32>} : memref<16x512xf32, #tpu.memory_space<vmem>>, vector<8x256xf32>,
    %c0_51 = arith.constant 0 : index
    %c111_52 = arith.constant 111 : index
    %64 = vector.load %arg28[%c0_51, %c111_52] : memref<16x512xf32, #tpu.memory_space<vmem>>, vector<8x256xf32>
    %c0_53 = arith.constant 0 : index
    %c0_54 = arith.constant 0 : index
    %65 = vector.load %arg9[%c0_53, %c0_54] : memref<9x256xf32, #tpu.memory_space<vmem>>, vector<1x256xf32>
    %66 = vector.broadcast %65 : vector<1x256xf32> to vector<8x256xf32>
    %67 = arith.mulf %64, %66 : vector<8x256xf32>
    %c0_55 = arith.constant 0 : index
    %c0_56 = arith.constant 0 : index
    %68 = vector.load %arg27[%c0_55, %c0_56] : memref<144x256xf32, #tpu.memory_space<vmem>>, vector<8x256xf32>
    tpu.vector_store %arg27[%c0_55, %c0_56], %67 {strides = array<i32>} : memref<144x256xf32, #tpu.memory_space<vmem>>, vector<8x256xf32>,
    %c0_57 = arith.constant 0 : index
    %c112_58 = arith.constant 112 : index
    %69 = vector.load %arg28[%c0_57, %c112_58] : memref<16x512xf32, #tpu.memory_space<vmem>>, vector<8x256xf32>
    %c1_59 = arith.constant 1 : index
    %c0_60 = arith.constant 0 : index
    %70 = vector.load %arg9[%c1_59, %c0_60] : memref<9x256xf32, #tpu.memory_space<vmem>>, vector<1x256xf32>
    %71 = vector.broadcast %70 : vector<1x256xf32> to vector<8x256xf32>
    %72 = arith.mulf %69, %71 : vector<8x256xf32>
    %c8_61 = arith.constant 8 : index
    %c0_62 = arith.constant 0 : index
    %73 = vector.load %arg27[%c8_61, %c0_62] : memref<144x256xf32, #tpu.memory_space<vmem>>, vector<8x256xf32>
    tpu.vector_store %arg27[%c8_61, %c0_62], %72 {strides = array<i32>} : memref<144x256xf32, #tpu.memory_space<vmem>>, vector<8x256xf32>,
    %c0_63 = arith.constant 0 : index
    %c113_64 = arith.constant 113 : index
    %74 = vector.load %arg28[%c0_63, %c113_64] : memref<16x512xf32, #tpu.memory_space<vmem>>, vector<8x256xf32>
    %c2_65 = arith.constant 2 : index
    %c0_66 = arith.constant 0 : index
    %75 = vector.load %arg9[%c2_65, %c0_66] : memref<9x256xf32, #tpu.memory_space<vmem>>, vector<1x256xf32>
    %76 = vector.broadcast %75 : vector<1x256xf32> to vector<8x256xf32>
    %77 = arith.mulf %74, %76 : vector<8x256xf32>
    %c16_67 = arith.constant 16 : index
    %c0_68 = arith.constant 0 : index
    %78 = vector.load %arg27[%c16_67, %c0_68] : memref<144x256xf32, #tpu.memory_space<vmem>>, vector<8x256xf32>
    tpu.vector_store %arg27[%c16_67, %c0_68], %77 {strides = array<i32>} : memref<144x256xf32, #tpu.memory_space<vmem>>, vector<8x256xf32>,
    %c0_69 = arith.constant 0 : index
    %c127_70 = arith.constant 127 : index
    %79 = vector.load %arg28[%c0_69, %c127_70] : memref<16x512xf32, #tpu.memory_space<vmem>>, vector<8x256xf32>
    %c3_71 = arith.constant 3 : index
    %c0_72 = arith.constant 0 : index
    %80 = vector.load %arg9[%c3_71, %c0_72] : memref<9x256xf32, #tpu.memory_space<vmem>>, vector<1x256xf32>
    %81 = vector.broadcast %80 : vector<1x256xf32> to vector<8x256xf32>
    %82 = arith.mulf %79, %81 : vector<8x256xf32>
    %c24_73 = arith.constant 24 : index
    %c0_74 = arith.constant 0 : index
    %83 = vector.load %arg27[%c24_73, %c0_74] : memref<144x256xf32, #tpu.memory_space<vmem>>, vector<8x256xf32>
    tpu.vector_store %arg27[%c24_73, %c0_74], %82 {strides = array<i32>} : memref<144x256xf32, #tpu.memory_space<vmem>>, vector<8x256xf32>,
    %c0_75 = arith.constant 0 : index
    %c128_76 = arith.constant 128 : index
    %84 = vector.load %arg28[%c0_75, %c128_76] : memref<16x512xf32, #tpu.memory_space<vmem>>, vector<8x256xf32>
    %c4_77 = arith.constant 4 : index
    %c0_78 = arith.constant 0 : index
    %85 = vector.load %arg9[%c4_77, %c0_78] : memref<9x256xf32, #tpu.memory_space<vmem>>, vector<1x256xf32>
    %86 = vector.broadcast %85 : vector<1x256xf32> to vector<8x256xf32>
    %87 = arith.mulf %84, %86 : vector<8x256xf32>
    %c32_79 = arith.constant 32 : index
    %c0_80 = arith.constant 0 : index
    %88 = vector.load %arg27[%c32_79, %c0_80] : memref<144x256xf32, #tpu.memory_space<vmem>>, vector<8x256xf32>
    tpu.vector_store %arg27[%c32_79, %c0_80], %87 {strides = array<i32>} : memref<144x256xf32, #tpu.memory_space<vmem>>, vector<8x256xf32>,
    %c0_81 = arith.constant 0 : index
    %c129_82 = arith.constant 129 : index
    %89 = vector.load %arg28[%c0_81, %c129_82] : memref<16x512xf32, #tpu.memory_space<vmem>>, vector<8x256xf32>
    %c5_83 = arith.constant 5 : index
    %c0_84 = arith.constant 0 : index
    %90 = vector.load %arg9[%c5_83, %c0_84] : memref<9x256xf32, #tpu.memory_space<vmem>>, vector<1x256xf32>
    %91 = vector.broadcast %90 : vector<1x256xf32> to vector<8x256xf32>
    %92 = arith.mulf %89, %91 : vector<8x256xf32>
    %c40_85 = arith.constant 40 : index
    %c0_86 = arith.constant 0 : index
    %93 = vector.load %arg27[%c40_85, %c0_86] : memref<144x256xf32, #tpu.memory_space<vmem>>, vector<8x256xf32>
    tpu.vector_store %arg27[%c40_85, %c0_86], %92 {strides = array<i32>} : memref<144x256xf32, #tpu.memory_space<vmem>>, vector<8x256xf32>,
    %c0_87 = arith.constant 0 : index
    %c143_88 = arith.constant 143 : index
    %94 = vector.load %arg28[%c0_87, %c143_88] : memref<16x512xf32, #tpu.memory_space<vmem>>, vector<8x256xf32>
    %c6_89 = arith.constant 6 : index
    %c0_90 = arith.constant 0 : index
    %95 = vector.load %arg9[%c6_89, %c0_90] : memref<9x256xf32, #tpu.memory_space<vmem>>, vector<1x256xf32>
    %96 = vector.broadcast %95 : vector<1x256xf32> to vector<8x256xf32>
    %97 = arith.mulf %94, %96 : vector<8x256xf32>
    %c48_91 = arith.constant 48 : index
    %c0_92 = arith.constant 0 : index
    %98 = vector.load %arg27[%c48_91, %c0_92] : memref<144x256xf32, #tpu.memory_space<vmem>>, vector<8x256xf32>
    tpu.vector_store %arg27[%c48_91, %c0_92], %97 {strides = array<i32>} : memref<144x256xf32, #tpu.memory_space<vmem>>, vector<8x256xf32>,
    %c0_93 = arith.constant 0 : index
    %c144_94 = arith.constant 144 : index
    %99 = vector.load %arg28[%c0_93, %c144_94] : memref<16x512xf32, #tpu.memory_space<vmem>>, vector<8x256xf32>
    %c7_95 = arith.constant 7 : index
    %c0_96 = arith.constant 0 : index
    %100 = vector.load %arg9[%c7_95, %c0_96] : memref<9x256xf32, #tpu.memory_space<vmem>>, vector<1x256xf32>
    %101 = vector.broadcast %100 : vector<1x256xf32> to vector<8x256xf32>
    %102 = arith.mulf %99, %101 : vector<8x256xf32>
    %c56_97 = arith.constant 56 : index
    %c0_98 = arith.constant 0 : index
    %103 = vector.load %arg27[%c56_97, %c0_98] : memref<144x256xf32, #tpu.memory_space<vmem>>, vector<8x256xf32>
    tpu.vector_store %arg27[%c56_97, %c0_98], %102 {strides = array<i32>} : memref<144x256xf32, #tpu.memory_space<vmem>>, vector<8x256xf32>,
    %c0_99 = arith.constant 0 : index
    %c145_100 = arith.constant 145 : index
    %104 = vector.load %arg28[%c0_99, %c145_100] : memref<16x512xf32, #tpu.memory_space<vmem>>, vector<8x256xf32>
    %c8_101 = arith.constant 8 : index
    %c0_102 = arith.constant 0 : index
    %105 = vector.load %arg9[%c8_101, %c0_102] : memref<9x256xf32, #tpu.memory_space<vmem>>, vector<1x256xf32>
    %106 = vector.broadcast %105 : vector<1x256xf32> to vector<8x256xf32>
    %107 = arith.mulf %104, %106 : vector<8x256xf32>
    %c64_103 = arith.constant 64 : index
    %c0_104 = arith.constant 0 : index
    %108 = vector.load %arg27[%c64_103, %c0_104] : memref<144x256xf32, #tpu.memory_space<vmem>>, vector<8x256xf32>
    tpu.vector_store %arg27[%c64_103, %c0_104], %107 {strides = array<i32>} : memref<144x256xf32, #tpu.memory_space<vmem>>, vector<8x256xf32>,
    %c0_105 = arith.constant 0 : index
    %c0_106 = arith.constant 0 : index
    %109 = vector.load %arg6[%c0_105, %c0_106] : memref<8x72xf32, #tpu.memory_space<vmem>>, vector<8x72xf32>
    %c0_107 = arith.constant 0 : index
    %c0_108 = arith.constant 0 : index
    %110 = vector.load %arg27[%c0_107, %c0_108] : memref<144x256xf32, #tpu.memory_space<vmem>>, vector<72x256xf32>
    %cst_109 = arith.constant dense<0.000000e+00> : vector<8x256xf32>
    %111 = tpu.matmul %109, %110, %cst_109 {dimension_numbers = #tpu.dot_dimension_numbers<[1], [0], [0], [1], [0, 0, 1, 1], [], []>} : vector<8x72xf32>, vector<72x256xf32>, vector<8x256xf32> -> vector<8x256xf32>
    %c0_110 = arith.constant 0 : index
    %c0_111 = arith.constant 0 : index
    %112 = vector.load %arg7[%c0_110, %c0_111] : memref<8x1xf32, #tpu.memory_space<vmem>>, vector<8x1xf32>
    %113 = vector.broadcast %112 : vector<8x1xf32> to vector<8x256xf32>
    %114 = arith.mulf %111, %113 : vector<8x256xf32>
    %c0_112 = arith.constant 0 : index
    %c0_113 = arith.constant 0 : index
    %115 = vector.load %arg8[%c0_112, %c0_113] : memref<8x1xf32, #tpu.memory_space<vmem>>, vector<8x1xf32>
    %116 = vector.broadcast %115 : vector<8x1xf32> to vector<8x256xf32>
    %117 = arith.addf %114, %116 : vector<8x256xf32>
    %cst_114 = arith.constant 0.000000e+00 : f32
    %118 = vector.broadcast %cst_114 : f32 to vector<8x256xf32>
    %119 = arith.maximumf %117, %118 : vector<8x256xf32>
    %c0_115 = arith.constant 0 : index
    %c0_116 = arith.constant 0 : index
    %120 = vector.load %arg10[%c0_115, %c0_116] : memref<16x8xf32, #tpu.memory_space<vmem>>, vector<16x8xf32>
    %cst_117 = arith.constant dense<0.000000e+00> : vector<16x256xf32>
    %121 = tpu.matmul %120, %119, %cst_117 {dimension_numbers = #tpu.dot_dimension_numbers<[1], [0], [0], [1], [0, 0, 1, 1], [], []>} : vector<16x8xf32>, vector<8x256xf32>, vector<16x256xf32> -> vector<16x256xf32>
    %c0_118 = arith.constant 0 : index
    %c0_119 = arith.constant 0 : index
    %122 = vector.load %arg11[%c0_118, %c0_119] : memref<16x1xf32, #tpu.memory_space<vmem>>, vector<16x1xf32>
    %123 = vector.broadcast %122 : vector<16x1xf32> to vector<16x256xf32>
    %124 = arith.mulf %121, %123 : vector<16x256xf32>
    %c0_120 = arith.constant 0 : index
    %c0_121 = arith.constant 0 : index
    %125 = vector.load %arg12[%c0_120, %c0_121] : memref<16x1xf32, #tpu.memory_space<vmem>>, vector<16x1xf32>
    %126 = vector.broadcast %125 : vector<16x1xf32> to vector<16x256xf32>
    %127 = arith.addf %124, %126 : vector<16x256xf32>
    %cst_122 = arith.constant 0.000000e+00 : f32
    %128 = vector.broadcast %cst_122 : f32 to vector<16x256xf32>
    %129 = arith.maximumf %127, %128 : vector<16x256xf32>
    %c0_123 = arith.constant 0 : index
    %c0_124 = arith.constant 0 : index
    %c0_125 = arith.constant 0 : index
    %130 = vector.load %arg26[%c0_123, %c0_124, %c0_125] : memref<1x32x256xf32, #tpu.memory_space<vmem>>, vector<1x16x256xf32>
    %131 = vector.shape_cast %130 : vector<1x16x256xf32> to vector<16x256xf32>
    %132 = vector.shape_cast %129 : vector<16x256xf32> to vector<1x16x256xf32>
    tpu.vector_store %arg26[%c0_123, %c0_124, %c0_125], %132 {strides = array<i32>} : memref<1x32x256xf32, #tpu.memory_space<vmem>>, vector<1x16x256xf32>,
    %cst_126 = arith.constant 0.000000e+00 : f32
    %133 = vector.broadcast %cst_126 : f32 to vector<8x512xf32>
    %c0_127 = arith.constant 0 : index
    %c0_128 = arith.constant 0 : index
    %134 = vector.load %arg28[%c0_127, %c0_128] : memref<16x512xf32, #tpu.memory_space<vmem>>, vector<8x512xf32>
    tpu.vector_store %arg28[%c0_127, %c0_128], %133 {strides = array<i32>} : memref<16x512xf32, #tpu.memory_space<vmem>>, vector<8x512xf32>,
    %c0_129 = arith.constant 0 : index
    %c128_130 = arith.constant 128 : index
    %135 = vector.load %arg28[%c0_129, %c128_130] : memref<16x512xf32, #tpu.memory_space<vmem>>, vector<8x256xf32>
    tpu.vector_store %arg28[%c0_129, %c128_130], %119 {strides = array<i32>} : memref<16x512xf32, #tpu.memory_space<vmem>>, vector<8x256xf32>,
    %c0_131 = arith.constant 0 : index
    %c111_132 = arith.constant 111 : index
    %136 = vector.load %arg28[%c0_131, %c111_132] : memref<16x512xf32, #tpu.memory_space<vmem>>, vector<8x256xf32>
    %c0_133 = arith.constant 0 : index
    %c0_134 = arith.constant 0 : index
    %137 = vector.load %arg16[%c0_133, %c0_134] : memref<9x256xf32, #tpu.memory_space<vmem>>, vector<1x256xf32>
    %138 = vector.broadcast %137 : vector<1x256xf32> to vector<8x256xf32>
    %139 = arith.mulf %136, %138 : vector<8x256xf32>
    %c0_135 = arith.constant 0 : index
    %c0_136 = arith.constant 0 : index
    %140 = vector.load %arg27[%c0_135, %c0_136] : memref<144x256xf32, #tpu.memory_space<vmem>>, vector<8x256xf32>
    tpu.vector_store %arg27[%c0_135, %c0_136], %139 {strides = array<i32>} : memref<144x256xf32, #tpu.memory_space<vmem>>, vector<8x256xf32>,
    %c0_137 = arith.constant 0 : index
    %c112_138 = arith.constant 112 : index
    %141 = vector.load %arg28[%c0_137, %c112_138] : memref<16x512xf32, #tpu.memory_space<vmem>>, vector<8x256xf32>
    %c1_139 = arith.constant 1 : index
    %c0_140 = arith.constant 0 : index
    %142 = vector.load %arg16[%c1_139, %c0_140] : memref<9x256xf32, #tpu.memory_space<vmem>>, vector<1x256xf32>
    %143 = vector.broadcast %142 : vector<1x256xf32> to vector<8x256xf32>
    %144 = arith.mulf %141, %143 : vector<8x256xf32>
    %c8_141 = arith.constant 8 : index
    %c0_142 = arith.constant 0 : index
    %145 = vector.load %arg27[%c8_141, %c0_142] : memref<144x256xf32, #tpu.memory_space<vmem>>, vector<8x256xf32>
    tpu.vector_store %arg27[%c8_141, %c0_142], %144 {strides = array<i32>} : memref<144x256xf32, #tpu.memory_space<vmem>>, vector<8x256xf32>,
    %c0_143 = arith.constant 0 : index
    %c113_144 = arith.constant 113 : index
    %146 = vector.load %arg28[%c0_143, %c113_144] : memref<16x512xf32, #tpu.memory_space<vmem>>, vector<8x256xf32>
    %c2_145 = arith.constant 2 : index
    %c0_146 = arith.constant 0 : index
    %147 = vector.load %arg16[%c2_145, %c0_146] : memref<9x256xf32, #tpu.memory_space<vmem>>, vector<1x256xf32>
    %148 = vector.broadcast %147 : vector<1x256xf32> to vector<8x256xf32>
    %149 = arith.mulf %146, %148 : vector<8x256xf32>
    %c16_147 = arith.constant 16 : index
    %c0_148 = arith.constant 0 : index
    %150 = vector.load %arg27[%c16_147, %c0_148] : memref<144x256xf32, #tpu.memory_space<vmem>>, vector<8x256xf32>
    tpu.vector_store %arg27[%c16_147, %c0_148], %149 {strides = array<i32>} : memref<144x256xf32, #tpu.memory_space<vmem>>, vector<8x256xf32>,
    %c0_149 = arith.constant 0 : index
    %c127_150 = arith.constant 127 : index
    %151 = vector.load %arg28[%c0_149, %c127_150] : memref<16x512xf32, #tpu.memory_space<vmem>>, vector<8x256xf32>
    %c3_151 = arith.constant 3 : index
    %c0_152 = arith.constant 0 : index
    %152 = vector.load %arg16[%c3_151, %c0_152] : memref<9x256xf32, #tpu.memory_space<vmem>>, vector<1x256xf32>
    %153 = vector.broadcast %152 : vector<1x256xf32> to vector<8x256xf32>
    %154 = arith.mulf %151, %153 : vector<8x256xf32>
    %c24_153 = arith.constant 24 : index
    %c0_154 = arith.constant 0 : index
    %155 = vector.load %arg27[%c24_153, %c0_154] : memref<144x256xf32, #tpu.memory_space<vmem>>, vector<8x256xf32>
    tpu.vector_store %arg27[%c24_153, %c0_154], %154 {strides = array<i32>} : memref<144x256xf32, #tpu.memory_space<vmem>>, vector<8x256xf32>,
    %c0_155 = arith.constant 0 : index
    %c128_156 = arith.constant 128 : index
    %156 = vector.load %arg28[%c0_155, %c128_156] : memref<16x512xf32, #tpu.memory_space<vmem>>, vector<8x256xf32>
    %c4_157 = arith.constant 4 : index
    %c0_158 = arith.constant 0 : index
    %157 = vector.load %arg16[%c4_157, %c0_158] : memref<9x256xf32, #tpu.memory_space<vmem>>, vector<1x256xf32>
    %158 = vector.broadcast %157 : vector<1x256xf32> to vector<8x256xf32>
    %159 = arith.mulf %156, %158 : vector<8x256xf32>
    %c32_159 = arith.constant 32 : index
    %c0_160 = arith.constant 0 : index
    %160 = vector.load %arg27[%c32_159, %c0_160] : memref<144x256xf32, #tpu.memory_space<vmem>>, vector<8x256xf32>
    tpu.vector_store %arg27[%c32_159, %c0_160], %159 {strides = array<i32>} : memref<144x256xf32, #tpu.memory_space<vmem>>, vector<8x256xf32>,
    %c0_161 = arith.constant 0 : index
    %c129_162 = arith.constant 129 : index
    %161 = vector.load %arg28[%c0_161, %c129_162] : memref<16x512xf32, #tpu.memory_space<vmem>>, vector<8x256xf32>
    %c5_163 = arith.constant 5 : index
    %c0_164 = arith.constant 0 : index
    %162 = vector.load %arg16[%c5_163, %c0_164] : memref<9x256xf32, #tpu.memory_space<vmem>>, vector<1x256xf32>
    %163 = vector.broadcast %162 : vector<1x256xf32> to vector<8x256xf32>
    %164 = arith.mulf %161, %163 : vector<8x256xf32>
    %c40_165 = arith.constant 40 : index
    %c0_166 = arith.constant 0 : index
    %165 = vector.load %arg27[%c40_165, %c0_166] : memref<144x256xf32, #tpu.memory_space<vmem>>, vector<8x256xf32>
    tpu.vector_store %arg27[%c40_165, %c0_166], %164 {strides = array<i32>} : memref<144x256xf32, #tpu.memory_space<vmem>>, vector<8x256xf32>,
    %c0_167 = arith.constant 0 : index
    %c143_168 = arith.constant 143 : index
    %166 = vector.load %arg28[%c0_167, %c143_168] : memref<16x512xf32, #tpu.memory_space<vmem>>, vector<8x256xf32>
    %c6_169 = arith.constant 6 : index
    %c0_170 = arith.constant 0 : index
    %167 = vector.load %arg16[%c6_169, %c0_170] : memref<9x256xf32, #tpu.memory_space<vmem>>, vector<1x256xf32>
    %168 = vector.broadcast %167 : vector<1x256xf32> to vector<8x256xf32>
    %169 = arith.mulf %166, %168 : vector<8x256xf32>
    %c48_171 = arith.constant 48 : index
    %c0_172 = arith.constant 0 : index
    %170 = vector.load %arg27[%c48_171, %c0_172] : memref<144x256xf32, #tpu.memory_space<vmem>>, vector<8x256xf32>
    tpu.vector_store %arg27[%c48_171, %c0_172], %169 {strides = array<i32>} : memref<144x256xf32, #tpu.memory_space<vmem>>, vector<8x256xf32>,
    %c0_173 = arith.constant 0 : index
    %c144_174 = arith.constant 144 : index
    %171 = vector.load %arg28[%c0_173, %c144_174] : memref<16x512xf32, #tpu.memory_space<vmem>>, vector<8x256xf32>
    %c7_175 = arith.constant 7 : index
    %c0_176 = arith.constant 0 : index
    %172 = vector.load %arg16[%c7_175, %c0_176] : memref<9x256xf32, #tpu.memory_space<vmem>>, vector<1x256xf32>
    %173 = vector.broadcast %172 : vector<1x256xf32> to vector<8x256xf32>
    %174 = arith.mulf %171, %173 : vector<8x256xf32>
    %c56_177 = arith.constant 56 : index
    %c0_178 = arith.constant 0 : index
    %175 = vector.load %arg27[%c56_177, %c0_178] : memref<144x256xf32, #tpu.memory_space<vmem>>, vector<8x256xf32>
    tpu.vector_store %arg27[%c56_177, %c0_178], %174 {strides = array<i32>} : memref<144x256xf32, #tpu.memory_space<vmem>>, vector<8x256xf32>,
    %c0_179 = arith.constant 0 : index
    %c145_180 = arith.constant 145 : index
    %176 = vector.load %arg28[%c0_179, %c145_180] : memref<16x512xf32, #tpu.memory_space<vmem>>, vector<8x256xf32>
    %c8_181 = arith.constant 8 : index
    %c0_182 = arith.constant 0 : index
    %177 = vector.load %arg16[%c8_181, %c0_182] : memref<9x256xf32, #tpu.memory_space<vmem>>, vector<1x256xf32>
    %178 = vector.broadcast %177 : vector<1x256xf32> to vector<8x256xf32>
    %179 = arith.mulf %176, %178 : vector<8x256xf32>
    %c64_183 = arith.constant 64 : index
    %c0_184 = arith.constant 0 : index
    %180 = vector.load %arg27[%c64_183, %c0_184] : memref<144x256xf32, #tpu.memory_space<vmem>>, vector<8x256xf32>
    tpu.vector_store %arg27[%c64_183, %c0_184], %179 {strides = array<i32>} : memref<144x256xf32, #tpu.memory_space<vmem>>, vector<8x256xf32>,
    %c0_185 = arith.constant 0 : index
    %c0_186 = arith.constant 0 : index
    %181 = vector.load %arg13[%c0_185, %c0_186] : memref<16x72xf32, #tpu.memory_space<vmem>>, vector<16x72xf32>
    %c0_187 = arith.constant 0 : index
    %c0_188 = arith.constant 0 : index
    %182 = vector.load %arg27[%c0_187, %c0_188] : memref<144x256xf32, #tpu.memory_space<vmem>>, vector<72x256xf32>
    %cst_189 = arith.constant dense<0.000000e+00> : vector<16x256xf32>
    %183 = tpu.matmul %181, %182, %cst_189 {dimension_numbers = #tpu.dot_dimension_numbers<[1], [0], [0], [1], [0, 0, 1, 1], [], []>} : vector<16x72xf32>, vector<72x256xf32>, vector<16x256xf32> -> vector<16x256xf32>
    %c0_190 = arith.constant 0 : index
    %c0_191 = arith.constant 0 : index
    %184 = vector.load %arg17[%c0_190, %c0_191] : memref<256x64xf32, #tpu.memory_space<vmem>>, vector<256x64xf32>
    %cst_192 = arith.constant dense<0.000000e+00> : vector<16x64xf32>
    %185 = tpu.matmul %183, %184, %cst_192 {dimension_numbers = #tpu.dot_dimension_numbers<[1], [0], [0], [1], [0, 0, 1, 1], [], []>} : vector<16x256xf32>, vector<256x64xf32>, vector<16x64xf32> -> vector<16x64xf32>
    %c0_193 = arith.constant 0 : index
    %c0_194 = arith.constant 0 : index
    %186 = vector.load %arg14[%c0_193, %c0_194] : memref<16x1xf32, #tpu.memory_space<vmem>>, vector<16x1xf32>
    %187 = vector.broadcast %186 : vector<16x1xf32> to vector<16x64xf32>
    %188 = arith.mulf %185, %187 : vector<16x64xf32>
    %c0_195 = arith.constant 0 : index
    %c0_196 = arith.constant 0 : index
    %189 = vector.load %arg15[%c0_195, %c0_196] : memref<16x1xf32, #tpu.memory_space<vmem>>, vector<16x1xf32>
    %190 = vector.broadcast %189 : vector<16x1xf32> to vector<16x64xf32>
    %191 = arith.addf %188, %190 : vector<16x64xf32>
    %cst_197 = arith.constant 0.000000e+00 : f32
    %192 = vector.broadcast %cst_197 : f32 to vector<16x64xf32>
    %193 = arith.maximumf %191, %192 : vector<16x64xf32>
    %cst_198 = arith.constant 0.000000e+00 : f32
    %194 = vector.broadcast %cst_198 : f32 to vector<16x512xf32>
    %c0_199 = arith.constant 0 : index
    %c0_200 = arith.constant 0 : index
    %195 = vector.load %arg28[%c0_199, %c0_200] : memref<16x512xf32, #tpu.memory_space<vmem>>, vector<16x512xf32>
    tpu.vector_store %arg28[%c0_199, %c0_200], %194 {strides = array<i32>} : memref<16x512xf32, #tpu.memory_space<vmem>>, vector<16x512xf32>,
    %c0_201 = arith.constant 0 : index
    %c128_202 = arith.constant 128 : index
    %196 = vector.load %arg28[%c0_201, %c128_202] : memref<16x512xf32, #tpu.memory_space<vmem>>, vector<16x64xf32>
    tpu.vector_store %arg28[%c0_201, %c128_202], %193 {strides = array<i32>} : memref<16x512xf32, #tpu.memory_space<vmem>>, vector<16x64xf32>,
    %c0_203 = arith.constant 0 : index
    %c119 = arith.constant 119 : index
    %197 = vector.load %arg28[%c0_203, %c119] : memref<16x512xf32, #tpu.memory_space<vmem>>, vector<16x64xf32>
    %c0_204 = arith.constant 0 : index
    %c0_205 = arith.constant 0 : index
    %198 = vector.load %arg21[%c0_204, %c0_205] : memref<9x64xf32, #tpu.memory_space<vmem>>, vector<1x64xf32>
    %199 = vector.broadcast %198 : vector<1x64xf32> to vector<16x64xf32>
    %200 = arith.mulf %197, %199 : vector<16x64xf32>
    %c0_206 = arith.constant 0 : index
    %c0_207 = arith.constant 0 : index
    %201 = vector.load %arg27[%c0_206, %c0_207] : memref<144x256xf32, #tpu.memory_space<vmem>>, vector<16x64xf32>
    tpu.vector_store %arg27[%c0_206, %c0_207], %200 {strides = array<i32>} : memref<144x256xf32, #tpu.memory_space<vmem>>, vector<16x64xf32>,
    %c0_208 = arith.constant 0 : index
    %c120 = arith.constant 120 : index
    %202 = vector.load %arg28[%c0_208, %c120] : memref<16x512xf32, #tpu.memory_space<vmem>>, vector<16x64xf32>
    %c1_209 = arith.constant 1 : index
    %c0_210 = arith.constant 0 : index
    %203 = vector.load %arg21[%c1_209, %c0_210] : memref<9x64xf32, #tpu.memory_space<vmem>>, vector<1x64xf32>
    %204 = vector.broadcast %203 : vector<1x64xf32> to vector<16x64xf32>
    %205 = arith.mulf %202, %204 : vector<16x64xf32>
    %c16_211 = arith.constant 16 : index
    %c0_212 = arith.constant 0 : index
    %206 = vector.load %arg27[%c16_211, %c0_212] : memref<144x256xf32, #tpu.memory_space<vmem>>, vector<16x64xf32>
    tpu.vector_store %arg27[%c16_211, %c0_212], %205 {strides = array<i32>} : memref<144x256xf32, #tpu.memory_space<vmem>>, vector<16x64xf32>,
    %c0_213 = arith.constant 0 : index
    %c121 = arith.constant 121 : index
    %207 = vector.load %arg28[%c0_213, %c121] : memref<16x512xf32, #tpu.memory_space<vmem>>, vector<16x64xf32>
    %c2_214 = arith.constant 2 : index
    %c0_215 = arith.constant 0 : index
    %208 = vector.load %arg21[%c2_214, %c0_215] : memref<9x64xf32, #tpu.memory_space<vmem>>, vector<1x64xf32>
    %209 = vector.broadcast %208 : vector<1x64xf32> to vector<16x64xf32>
    %210 = arith.mulf %207, %209 : vector<16x64xf32>
    %c32_216 = arith.constant 32 : index
    %c0_217 = arith.constant 0 : index
    %211 = vector.load %arg27[%c32_216, %c0_217] : memref<144x256xf32, #tpu.memory_space<vmem>>, vector<16x64xf32>
    tpu.vector_store %arg27[%c32_216, %c0_217], %210 {strides = array<i32>} : memref<144x256xf32, #tpu.memory_space<vmem>>, vector<16x64xf32>,
    %c0_218 = arith.constant 0 : index
    %c127_219 = arith.constant 127 : index
    %212 = vector.load %arg28[%c0_218, %c127_219] : memref<16x512xf32, #tpu.memory_space<vmem>>, vector<16x64xf32>
    %c3_220 = arith.constant 3 : index
    %c0_221 = arith.constant 0 : index
    %213 = vector.load %arg21[%c3_220, %c0_221] : memref<9x64xf32, #tpu.memory_space<vmem>>, vector<1x64xf32>
    %214 = vector.broadcast %213 : vector<1x64xf32> to vector<16x64xf32>
    %215 = arith.mulf %212, %214 : vector<16x64xf32>
    %c48_222 = arith.constant 48 : index
    %c0_223 = arith.constant 0 : index
    %216 = vector.load %arg27[%c48_222, %c0_223] : memref<144x256xf32, #tpu.memory_space<vmem>>, vector<16x64xf32>
    tpu.vector_store %arg27[%c48_222, %c0_223], %215 {strides = array<i32>} : memref<144x256xf32, #tpu.memory_space<vmem>>, vector<16x64xf32>,
    %c0_224 = arith.constant 0 : index
    %c128_225 = arith.constant 128 : index
    %217 = vector.load %arg28[%c0_224, %c128_225] : memref<16x512xf32, #tpu.memory_space<vmem>>, vector<16x64xf32>
    %c4_226 = arith.constant 4 : index
    %c0_227 = arith.constant 0 : index
    %218 = vector.load %arg21[%c4_226, %c0_227] : memref<9x64xf32, #tpu.memory_space<vmem>>, vector<1x64xf32>
    %219 = vector.broadcast %218 : vector<1x64xf32> to vector<16x64xf32>
    %220 = arith.mulf %217, %219 : vector<16x64xf32>
    %c64_228 = arith.constant 64 : index
    %c0_229 = arith.constant 0 : index
    %221 = vector.load %arg27[%c64_228, %c0_229] : memref<144x256xf32, #tpu.memory_space<vmem>>, vector<16x64xf32>
    tpu.vector_store %arg27[%c64_228, %c0_229], %220 {strides = array<i32>} : memref<144x256xf32, #tpu.memory_space<vmem>>, vector<16x64xf32>,
    %c0_230 = arith.constant 0 : index
    %c129_231 = arith.constant 129 : index
    %222 = vector.load %arg28[%c0_230, %c129_231] : memref<16x512xf32, #tpu.memory_space<vmem>>, vector<16x64xf32>
    %c5_232 = arith.constant 5 : index
    %c0_233 = arith.constant 0 : index
    %223 = vector.load %arg21[%c5_232, %c0_233] : memref<9x64xf32, #tpu.memory_space<vmem>>, vector<1x64xf32>
    %224 = vector.broadcast %223 : vector<1x64xf32> to vector<16x64xf32>
    %225 = arith.mulf %222, %224 : vector<16x64xf32>
    %c80 = arith.constant 80 : index
    %c0_234 = arith.constant 0 : index
    %226 = vector.load %arg27[%c80, %c0_234] : memref<144x256xf32, #tpu.memory_space<vmem>>, vector<16x64xf32>
    tpu.vector_store %arg27[%c80, %c0_234], %225 {strides = array<i32>} : memref<144x256xf32, #tpu.memory_space<vmem>>, vector<16x64xf32>,
    %c0_235 = arith.constant 0 : index
    %c135 = arith.constant 135 : index
    %227 = vector.load %arg28[%c0_235, %c135] : memref<16x512xf32, #tpu.memory_space<vmem>>, vector<16x64xf32>
    %c6_236 = arith.constant 6 : index
    %c0_237 = arith.constant 0 : index
    %228 = vector.load %arg21[%c6_236, %c0_237] : memref<9x64xf32, #tpu.memory_space<vmem>>, vector<1x64xf32>
    %229 = vector.broadcast %228 : vector<1x64xf32> to vector<16x64xf32>
    %230 = arith.mulf %227, %229 : vector<16x64xf32>
    %c96 = arith.constant 96 : index
    %c0_238 = arith.constant 0 : index
    %231 = vector.load %arg27[%c96, %c0_238] : memref<144x256xf32, #tpu.memory_space<vmem>>, vector<16x64xf32>
    tpu.vector_store %arg27[%c96, %c0_238], %230 {strides = array<i32>} : memref<144x256xf32, #tpu.memory_space<vmem>>, vector<16x64xf32>,
    %c0_239 = arith.constant 0 : index
    %c136 = arith.constant 136 : index
    %232 = vector.load %arg28[%c0_239, %c136] : memref<16x512xf32, #tpu.memory_space<vmem>>, vector<16x64xf32>
    %c7_240 = arith.constant 7 : index
    %c0_241 = arith.constant 0 : index
    %233 = vector.load %arg21[%c7_240, %c0_241] : memref<9x64xf32, #tpu.memory_space<vmem>>, vector<1x64xf32>
    %234 = vector.broadcast %233 : vector<1x64xf32> to vector<16x64xf32>
    %235 = arith.mulf %232, %234 : vector<16x64xf32>
    %c112_242 = arith.constant 112 : index
    %c0_243 = arith.constant 0 : index
    %236 = vector.load %arg27[%c112_242, %c0_243] : memref<144x256xf32, #tpu.memory_space<vmem>>, vector<16x64xf32>
    tpu.vector_store %arg27[%c112_242, %c0_243], %235 {strides = array<i32>} : memref<144x256xf32, #tpu.memory_space<vmem>>, vector<16x64xf32>,
    %c0_244 = arith.constant 0 : index
    %c137 = arith.constant 137 : index
    %237 = vector.load %arg28[%c0_244, %c137] : memref<16x512xf32, #tpu.memory_space<vmem>>, vector<16x64xf32>
    %c8_245 = arith.constant 8 : index
    %c0_246 = arith.constant 0 : index
    %238 = vector.load %arg21[%c8_245, %c0_246] : memref<9x64xf32, #tpu.memory_space<vmem>>, vector<1x64xf32>
    %239 = vector.broadcast %238 : vector<1x64xf32> to vector<16x64xf32>
    %240 = arith.mulf %237, %239 : vector<16x64xf32>
    %c128_247 = arith.constant 128 : index
    %c0_248 = arith.constant 0 : index
    %241 = vector.load %arg27[%c128_247, %c0_248] : memref<144x256xf32, #tpu.memory_space<vmem>>, vector<16x64xf32>
    tpu.vector_store %arg27[%c128_247, %c0_248], %240 {strides = array<i32>} : memref<144x256xf32, #tpu.memory_space<vmem>>, vector<16x64xf32>,
    %c0_249 = arith.constant 0 : index
    %c0_250 = arith.constant 0 : index
    %242 = vector.load %arg18[%c0_249, %c0_250] : memref<16x144xf32, #tpu.memory_space<vmem>>, vector<16x144xf32>
    %c0_251 = arith.constant 0 : index
    %c0_252 = arith.constant 0 : index
    %243 = vector.load %arg27[%c0_251, %c0_252] : memref<144x256xf32, #tpu.memory_space<vmem>>, vector<144x64xf32>
    %cst_253 = arith.constant dense<0.000000e+00> : vector<16x64xf32>
    %244 = tpu.matmul %242, %243, %cst_253 {dimension_numbers = #tpu.dot_dimension_numbers<[1], [0], [0], [1], [0, 0, 1, 1], [], []>} : vector<16x144xf32>, vector<144x64xf32>, vector<16x64xf32> -> vector<16x64xf32>
    %c0_254 = arith.constant 0 : index
    %c0_255 = arith.constant 0 : index
    %245 = vector.load %arg19[%c0_254, %c0_255] : memref<16x1xf32, #tpu.memory_space<vmem>>, vector<16x1xf32>
    %246 = vector.broadcast %245 : vector<16x1xf32> to vector<16x64xf32>
    %247 = arith.mulf %244, %246 : vector<16x64xf32>
    %c0_256 = arith.constant 0 : index
    %c0_257 = arith.constant 0 : index
    %248 = vector.load %arg20[%c0_256, %c0_257] : memref<16x1xf32, #tpu.memory_space<vmem>>, vector<16x1xf32>
    %249 = vector.broadcast %248 : vector<16x1xf32> to vector<16x64xf32>
    %250 = arith.addf %247, %249 : vector<16x64xf32>
    %cst_258 = arith.constant 0.000000e+00 : f32
    %251 = vector.broadcast %cst_258 : f32 to vector<16x64xf32>
    %252 = arith.maximumf %250, %251 : vector<16x64xf32>
    %c0_259 = arith.constant 0 : index
    %c0_260 = arith.constant 0 : index
    %253 = vector.load %arg22[%c0_259, %c0_260] : memref<64x16xf32, #tpu.memory_space<vmem>>, vector<64x16xf32>
    %cst_261 = arith.constant dense<0.000000e+00> : vector<64x64xf32>
    %254 = tpu.matmul %253, %252, %cst_261 {dimension_numbers = #tpu.dot_dimension_numbers<[1], [0], [0], [1], [0, 0, 1, 1], [], []>} : vector<64x16xf32>, vector<16x64xf32>, vector<64x64xf32> -> vector<64x64xf32>
    %255 = vector.extract_strided_slice %254 {offsets = [0, 0], sizes = [16, 64], strides = [1, 1]} : vector<64x64xf32> to vector<16x64xf32>
    %c0_262 = arith.constant 0 : index
    %c0_263 = arith.constant 0 : index
    %c0_264 = arith.constant 0 : index
    %256 = vector.load %arg25[%c0_262, %c0_263, %c0_264] : memref<4x64x256xf32, #tpu.memory_space<vmem>>, vector<1x64x256xf32>
    %257 = vector.shape_cast %256 : vector<1x64x256xf32> to vector<64x256xf32>
    %cst_265 = arith.constant dense<0.000000e+00> : vector<16x256xf32>
    %258 = tpu.matmul %255, %257, %cst_265 {dimension_numbers = #tpu.dot_dimension_numbers<[1], [0], [0], [1], [0, 0, 1, 1], [], []>} : vector<16x64xf32>, vector<64x256xf32>, vector<16x256xf32> -> vector<16x256xf32>
    %259 = vector.extract_strided_slice %254 {offsets = [16, 0], sizes = [16, 64], strides = [1, 1]} : vector<64x64xf32> to vector<16x64xf32>
    %c1_266 = arith.constant 1 : index
    %c0_267 = arith.constant 0 : index
    %c0_268 = arith.constant 0 : index
    %260 = vector.load %arg25[%c1_266, %c0_267, %c0_268] : memref<4x64x256xf32, #tpu.memory_space<vmem>>, vector<1x64x256xf32>
    %261 = vector.shape_cast %260 : vector<1x64x256xf32> to vector<64x256xf32>
    %cst_269 = arith.constant dense<0.000000e+00> : vector<16x256xf32>
    %262 = tpu.matmul %259, %261, %cst_269 {dimension_numbers = #tpu.dot_dimension_numbers<[1], [0], [0], [1], [0, 0, 1, 1], [], []>} : vector<16x64xf32>, vector<64x256xf32>, vector<16x256xf32> -> vector<16x256xf32>
    %263 = arith.addf %258, %262 : vector<16x256xf32>
    %264 = vector.extract_strided_slice %254 {offsets = [32, 0], sizes = [16, 64], strides = [1, 1]} : vector<64x64xf32> to vector<16x64xf32>
    %c2_270 = arith.constant 2 : index
    %c0_271 = arith.constant 0 : index
    %c0_272 = arith.constant 0 : index
    %265 = vector.load %arg25[%c2_270, %c0_271, %c0_272] : memref<4x64x256xf32, #tpu.memory_space<vmem>>, vector<1x64x256xf32>
    %266 = vector.shape_cast %265 : vector<1x64x256xf32> to vector<64x256xf32>
    %cst_273 = arith.constant dense<0.000000e+00> : vector<16x256xf32>
    %267 = tpu.matmul %264, %266, %cst_273 {dimension_numbers = #tpu.dot_dimension_numbers<[1], [0], [0], [1], [0, 0, 1, 1], [], []>} : vector<16x64xf32>, vector<64x256xf32>, vector<16x256xf32> -> vector<16x256xf32>
    %268 = arith.addf %263, %267 : vector<16x256xf32>
    %269 = vector.extract_strided_slice %254 {offsets = [48, 0], sizes = [16, 64], strides = [1, 1]} : vector<64x64xf32> to vector<16x64xf32>
    %c3_274 = arith.constant 3 : index
    %c0_275 = arith.constant 0 : index
    %c0_276 = arith.constant 0 : index
    %270 = vector.load %arg25[%c3_274, %c0_275, %c0_276] : memref<4x64x256xf32, #tpu.memory_space<vmem>>, vector<1x64x256xf32>
    %271 = vector.shape_cast %270 : vector<1x64x256xf32> to vector<64x256xf32>
    %cst_277 = arith.constant dense<0.000000e+00> : vector<16x256xf32>
    %272 = tpu.matmul %269, %271, %cst_277 {dimension_numbers = #tpu.dot_dimension_numbers<[1], [0], [0], [1], [0, 0, 1, 1], [], []>} : vector<16x64xf32>, vector<64x256xf32>, vector<16x256xf32> -> vector<16x256xf32>
    %273 = arith.addf %268, %272 : vector<16x256xf32>
    %c0_278 = arith.constant 0 : index
    %c0_279 = arith.constant 0 : index
    %274 = vector.load %arg23[%c0_278, %c0_279] : memref<16x1xf32, #tpu.memory_space<vmem>>, vector<16x1xf32>
    %275 = vector.broadcast %274 : vector<16x1xf32> to vector<16x256xf32>
    %276 = arith.mulf %273, %275 : vector<16x256xf32>
    %c0_280 = arith.constant 0 : index
    %c0_281 = arith.constant 0 : index
    %277 = vector.load %arg24[%c0_280, %c0_281] : memref<16x1xf32, #tpu.memory_space<vmem>>, vector<16x1xf32>
    %278 = vector.broadcast %277 : vector<16x1xf32> to vector<16x256xf32>
    %279 = arith.addf %276, %278 : vector<16x256xf32>
    %cst_282 = arith.constant 0.000000e+00 : f32
    %280 = vector.broadcast %cst_282 : f32 to vector<16x256xf32>
    %281 = arith.maximumf %279, %280 : vector<16x256xf32>
    %c0_283 = arith.constant 0 : index
    %c16_284 = arith.constant 16 : index
    %c0_285 = arith.constant 0 : index
    %282 = vector.load %arg26[%c0_283, %c16_284, %c0_285] : memref<1x32x256xf32, #tpu.memory_space<vmem>>, vector<1x16x256xf32>
    %283 = vector.shape_cast %282 : vector<1x16x256xf32> to vector<16x256xf32>
    %284 = vector.shape_cast %281 : vector<16x256xf32> to vector<1x16x256xf32>
    tpu.vector_store %arg26[%c0_283, %c16_284, %c0_285], %284 {strides = array<i32>} : memref<1x32x256xf32, #tpu.memory_space<vmem>>, vector<1x16x256xf32>,
    return
  }
  func.func @transform_0(%arg0: i32) -> (i32, i32, i32) {
    %c0_i32 = arith.constant 0 : i32
    %c0_i32_0 = arith.constant 0 : i32
    %c0_i32_1 = arith.constant 0 : i32
    return %arg0, %c0_i32, %c0_i32_0 : i32, i32, i32
  }
  func.func @transform_1(%arg0: i32) -> (i32, i32) {
    %c0_i32 = arith.constant 0 : i32
    %c0_i32_0 = arith.constant 0 : i32
    %c0_i32_1 = arith.constant 0 : i32
    return %c0_i32, %c0_i32_0 : i32, i32
  }
  func.func @transform_2(%arg0: i32) -> (i32, i32) {
    %c0_i32 = arith.constant 0 : i32
    %c0_i32_0 = arith.constant 0 : i32
    %c0_i32_1 = arith.constant 0 : i32
    return %c0_i32, %c0_i32_0 : i32, i32
  }
  func.func @transform_3(%arg0: i32) -> (i32, i32) {
    %c0_i32 = arith.constant 0 : i32
    %c0_i32_0 = arith.constant 0 : i32
    %c0_i32_1 = arith.constant 0 : i32
    return %c0_i32, %c0_i32_0 : i32, i32
  }
  func.func @transform_4(%arg0: i32) -> (i32, i32) {
    %c0_i32 = arith.constant 0 : i32
    %c0_i32_0 = arith.constant 0 : i32
    %c0_i32_1 = arith.constant 0 : i32
    return %c0_i32, %c0_i32_0 : i32, i32
  }
  func.func @transform_5(%arg0: i32) -> (i32, i32) {
    %c0_i32 = arith.constant 0 : i32
    %c0_i32_0 = arith.constant 0 : i32
    %c0_i32_1 = arith.constant 0 : i32
    return %c0_i32, %c0_i32_0 : i32, i32
  }
  func.func @transform_6(%arg0: i32) -> (i32, i32) {
    %c0_i32 = arith.constant 0 : i32
    %c0_i32_0 = arith.constant 0 : i32
    %c0_i32_1 = arith.constant 0 : i32
    return %c0_i32, %c0_i32_0 : i32, i32
  }
  func.func @transform_7(%arg0: i32) -> (i32, i32) {
    %c0_i32 = arith.constant 0 : i32
    %c0_i32_0 = arith.constant 0 : i32
    %c0_i32_1 = arith.constant 0 : i32
    return %c0_i32, %c0_i32_0 : i32, i32
  }
  func.func @transform_8(%arg0: i32) -> (i32, i32) {
    %c0_i32 = arith.constant 0 : i32
    %c0_i32_0 = arith.constant 0 : i32
    %c0_i32_1 = arith.constant 0 : i32
    return %c0_i32, %c0_i32_0 : i32, i32
  }
  func.func @transform_9(%arg0: i32) -> (i32, i32) {
    %c0_i32 = arith.constant 0 : i32
    %c0_i32_0 = arith.constant 0 : i32
    %c0_i32_1 = arith.constant 0 : i32
    return %c0_i32, %c0_i32_0 : i32, i32
  }
  func.func @transform_10(%arg0: i32) -> (i32, i32) {
    %c0_i32 = arith.constant 0 : i32
    %c0_i32_0 = arith.constant 0 : i32
    %c0_i32_1 = arith.constant 0 : i32
    return %c0_i32, %c0_i32_0 : i32, i32
  }
  func.func @transform_11(%arg0: i32) -> (i32, i32) {
    %c0_i32 = arith.constant 0 : i32
    %c0_i32_0 = arith.constant 0 : i32
    %c0_i32_1 = arith.constant 0 : i32
    return %c0_i32, %c0_i32_0 : i32, i32
  }
  func.func @transform_12(%arg0: i32) -> (i32, i32) {
    %c0_i32 = arith.constant 0 : i32
    %c0_i32_0 = arith.constant 0 : i32
    %c0_i32_1 = arith.constant 0 : i32
    return %c0_i32, %c0_i32_0 : i32, i32
  }
  func.func @transform_13(%arg0: i32) -> (i32, i32) {
    %c0_i32 = arith.constant 0 : i32
    %c0_i32_0 = arith.constant 0 : i32
    %c0_i32_1 = arith.constant 0 : i32
    return %c0_i32, %c0_i32_0 : i32, i32
  }
  func.func @transform_14(%arg0: i32) -> (i32, i32) {
    %c0_i32 = arith.constant 0 : i32
    %c0_i32_0 = arith.constant 0 : i32
    %c0_i32_1 = arith.constant 0 : i32
    return %c0_i32, %c0_i32_0 : i32, i32
  }
  func.func @transform_15(%arg0: i32) -> (i32, i32) {
    %c0_i32 = arith.constant 0 : i32
    %c0_i32_0 = arith.constant 0 : i32
    %c0_i32_1 = arith.constant 0 : i32
    return %c0_i32, %c0_i32_0 : i32, i32
  }
  func.func @transform_16(%arg0: i32) -> (i32, i32) {
    %c0_i32 = arith.constant 0 : i32
    %c0_i32_0 = arith.constant 0 : i32
    %c0_i32_1 = arith.constant 0 : i32
    return %c0_i32, %c0_i32_0 : i32, i32
  }
  func.func @transform_17(%arg0: i32) -> (i32, i32) {
    %c0_i32 = arith.constant 0 : i32
    %c0_i32_0 = arith.constant 0 : i32
    %c0_i32_1 = arith.constant 0 : i32
    return %c0_i32, %c0_i32_0 : i32, i32
  }
  func.func @transform_18(%arg0: i32) -> (i32, i32) {
    %c0_i32 = arith.constant 0 : i32
    %c0_i32_0 = arith.constant 0 : i32
    %c0_i32_1 = arith.constant 0 : i32
    return %c0_i32, %c0_i32_0 : i32, i32
  }
  func.func @transform_19(%arg0: i32) -> (i32, i32) {
    %c0_i32 = arith.constant 0 : i32
    %c0_i32_0 = arith.constant 0 : i32
    %c0_i32_1 = arith.constant 0 : i32
    return %c0_i32, %c0_i32_0 : i32, i32
  }
  func.func @transform_20(%arg0: i32) -> (i32, i32) {
    %c0_i32 = arith.constant 0 : i32
    %c0_i32_0 = arith.constant 0 : i32
    %c0_i32_1 = arith.constant 0 : i32
    return %c0_i32, %c0_i32_0 : i32, i32
  }
  func.func @transform_21(%arg0: i32) -> (i32, i32) {
    %c0_i32 = arith.constant 0 : i32
    %c0_i32_0 = arith.constant 0 : i32
    %c0_i32_1 = arith.constant 0 : i32
    return %c0_i32, %c0_i32_0 : i32, i32
  }
  func.func @transform_22(%arg0: i32) -> (i32, i32) {
    %c0_i32 = arith.constant 0 : i32
    %c0_i32_0 = arith.constant 0 : i32
    %c0_i32_1 = arith.constant 0 : i32
    return %c0_i32, %c0_i32_0 : i32, i32
  }
  func.func @transform_23(%arg0: i32) -> (i32, i32) {
    %c0_i32 = arith.constant 0 : i32
    %c0_i32_0 = arith.constant 0 : i32
    %c0_i32_1 = arith.constant 0 : i32
    return %c0_i32, %c0_i32_0 : i32, i32
  }
  func.func @transform_24(%arg0: i32) -> (i32, i32, i32) {
    %c0_i32 = arith.constant 0 : i32
    %c0_i32_0 = arith.constant 0 : i32
    %c0_i32_1 = arith.constant 0 : i32
    %c0_i32_2 = arith.constant 0 : i32
    return %c0_i32, %c0_i32_0, %c0_i32_1 : i32, i32, i32
  }
  func.func @transform_25(%arg0: i32) -> (i32, i32, i32) {
    %c0_i32 = arith.constant 0 : i32
    %c0_i32_0 = arith.constant 0 : i32
    %c0_i32_1 = arith.constant 0 : i32
    return %arg0, %c0_i32, %c0_i32_0 : i32, i32, i32
  }
}

</mosaic_0001>

<llo_original>
// kernel: tpu_custom_call.1
$region0: #{tpu_custom_call.1}
  #allocation0 [shape = 'u32[]', space=smem, size = 0x4, offset = 0x4, fixed_abs, tag = 'smem constant byte address 0x4 - core index']
  #allocation1 [shape = 'u32[144,128]{1,0:T(1,128)}', space=vmem, size = 0x12000, scoped, tag = 'internal scratch']
  #allocation2 [shape = 'f32[144,256]{1,0:T(8,128)}', space=vmem, size = 0x24000, scoped, tag = 'scratch operand']
  #allocation3 [shape = 'f32[16,512]{1,0:T(8,128)}', space=vmem, size = 0x8000, scoped, tag = 'scratch operand']
  %s0 = inlined_call_operand.vmem [shape: f32[2,8,256], index: 0, kind: input, shape index: {}]
  %s1 = inlined_call_operand.vmem [shape: f32[8,72], index: 1, kind: input, shape index: {}]
  %s2 = inlined_call_operand.vmem [shape: f32[8,1], index: 2, kind: input, shape index: {}]
  %s3 = inlined_call_operand.vmem [shape: f32[8,1], index: 3, kind: input, shape index: {}]
  %s4 = inlined_call_operand.vmem [shape: f32[9,256], index: 4, kind: input, shape index: {}]
  %s5 = inlined_call_operand.vmem [shape: f32[8,72], index: 5, kind: input, shape index: {}]
  %s6 = inlined_call_operand.vmem [shape: f32[8,1], index: 6, kind: input, shape index: {}]
  %s7 = inlined_call_operand.vmem [shape: f32[8,1], index: 7, kind: input, shape index: {}]
  %s8 = inlined_call_operand.vmem [shape: f32[9,256], index: 8, kind: input, shape index: {}]
  %s9 = inlined_call_operand.vmem [shape: f32[16,8], index: 9, kind: input, shape index: {}]
  %s10 = inlined_call_operand.vmem [shape: f32[16,1], index: 10, kind: input, shape index: {}]
  %s11 = inlined_call_operand.vmem [shape: f32[16,1], index: 11, kind: input, shape index: {}]
  %s12 = inlined_call_operand.vmem [shape: f32[16,72], index: 12, kind: input, shape index: {}]
  %s13 = inlined_call_operand.vmem [shape: f32[16,1], index: 13, kind: input, shape index: {}]
  %s14 = inlined_call_operand.vmem [shape: f32[16,1], index: 14, kind: input, shape index: {}]
  %s15 = inlined_call_operand.vmem [shape: f32[9,256], index: 15, kind: input, shape index: {}]
  %s16 = inlined_call_operand.vmem [shape: f32[256,64], index: 16, kind: input, shape index: {}]
  %s17 = inlined_call_operand.vmem [shape: f32[16,144], index: 17, kind: input, shape index: {}]
  %s18 = inlined_call_operand.vmem [shape: f32[16,1], index: 18, kind: input, shape index: {}]
  %s19 = inlined_call_operand.vmem [shape: f32[16,1], index: 19, kind: input, shape index: {}]
  %s20 = inlined_call_operand.vmem [shape: f32[9,64], index: 20, kind: input, shape index: {}]
  %s21 = inlined_call_operand.vmem [shape: f32[64,16], index: 21, kind: input, shape index: {}]
  %s22 = inlined_call_operand.vmem [shape: f32[16,1], index: 22, kind: input, shape index: {}]
  %s23 = inlined_call_operand.vmem [shape: f32[16,1], index: 23, kind: input, shape index: {}]
  %s24 = inlined_call_operand.vmem [shape: f32[4,64,256], index: 24, kind: input, shape index: {}]
  %s25 = inlined_call_operand.hbm [shape: f32[2,32,256], index: 25, kind: output, shape index: {}]
  %s26 = sld [smem:[#allocation0]]
  $region133: #{tpu_custom_call.1} parent=0
    _
  %s28 = ssub.s32 1, %s26
  %s29 = scalar_select 0, %s28, %s26
  $region1: #{tpu_custom_call.1} parent=0
    #allocation4 [shape = 'u8[65536]{0}', space=vmem, size = 0x10000, scoped, tag = 'output window, operand 0']
    #allocation5 [shape = 's32[2]{0}', space=sflag, size = 0x8, scoped, tag = 'scoped memory for tpu_custom_call.1']
    %30 = vsyncpa [#allocation5], 0
    %s31 = scalar_lea.sflag [#allocation5], 1
    %32 = vsyncpa %s31, 0
    loop: start=0, step=1, limit=4
    $region2: #{tpu_custom_call.1} parent=1 // loop_pre_header
      _
    $region3: #{tpu_custom_call.1} parent=1 // loop_header
      %s34 = sphi 0, %s38
      %p35 = scmp.ge.s32.totalorder %s34, 4
      %s44 = sphi 0, %s46
      %s47 = sphi 0, %s44
      %s48 = sphi 0, %s47
      %s64 = sphi 0, %s48
      %s68 = sphi 0, %s68
      %s70 = sphi 0, %s68
      %s71 = sphi 0, %s70
      %s85 = sphi 0, %s71
      %s89 = sphi 0, %s89
      %s91 = sphi 0, %s89
      %s92 = sphi 0, %s91
      %s106 = sphi 0, %s92
      %s110 = sphi 0, %s110
      %s112 = sphi 0, %s110
      %s113 = sphi 0, %s112
      %s127 = sphi 0, %s113
      %s131 = sphi 0, %s131
      %s133 = sphi 0, %s131
      %s134 = sphi 0, %s133
      %s148 = sphi 0, %s134
      %s152 = sphi 0, %s152
      %s154 = sphi 0, %s152
      %s155 = sphi 0, %s154
      %s169 = sphi 0, %s155
      %s173 = sphi 0, %s173
      %s175 = sphi 0, %s173
      %s176 = sphi 0, %s175
      %s190 = sphi 0, %s176
      %s194 = sphi 0, %s194
      %s196 = sphi 0, %s194
      %s197 = sphi 0, %s196
      %s211 = sphi 0, %s197
      %s215 = sphi 0, %s215
      %s217 = sphi 0, %s215
      %s218 = sphi 0, %s217
      %s232 = sphi 0, %s218
      %s236 = sphi 0, %s236
      %s238 = sphi 0, %s236
      %s239 = sphi 0, %s238
      %s253 = sphi 0, %s239
      %s257 = sphi 0, %s257
      %s259 = sphi 0, %s257
      %s260 = sphi 0, %s259
      %s274 = sphi 0, %s260
      %s278 = sphi 0, %s278
      %s280 = sphi 0, %s278
      %s281 = sphi 0, %s280
      %s295 = sphi 0, %s281
      %s299 = sphi 0, %s299
      %s301 = sphi 0, %s299
      %s302 = sphi 0, %s301
      %s316 = sphi 0, %s302
      %s320 = sphi 0, %s320
      %s322 = sphi 0, %s320
      %s323 = sphi 0, %s322
      %s337 = sphi 0, %s323
      %s341 = sphi 0, %s341
      %s343 = sphi 0, %s341
      %s344 = sphi 0, %s343
      %s358 = sphi 0, %s344
      %s362 = sphi 0, %s362
      %s364 = sphi 0, %s362
      %s365 = sphi 0, %s364
      %s379 = sphi 0, %s365
      %s383 = sphi 0, %s383
      %s385 = sphi 0, %s383
      %s386 = sphi 0, %s385
      %s400 = sphi 0, %s386
      %s404 = sphi 0, %s404
      %s406 = sphi 0, %s404
      %s407 = sphi 0, %s406
      %s421 = sphi 0, %s407
      %s425 = sphi 0, %s425
      %s427 = sphi 0, %s425
      %s428 = sphi 0, %s427
      %s442 = sphi 0, %s428
      %s446 = sphi 0, %s446
      %s448 = sphi 0, %s446
      %s449 = sphi 0, %s448
      %s463 = sphi 0, %s449
      %s467 = sphi 0, %s467
      %s469 = sphi 0, %s467
      %s470 = sphi 0, %s469
      %s484 = sphi 0, %s470
      %s488 = sphi 0, %s488
      %s490 = sphi 0, %s488
      %s491 = sphi 0, %s490
      %s505 = sphi 0, %s491
      %s509 = sphi 0, %s509
      %s511 = sphi 0, %s509
      %s512 = sphi 0, %s511
      %s526 = sphi 0, %s512
      %s530 = sphi 0, %s530
      %s532 = sphi 0, %s530
      %s533 = sphi 0, %s532
      %s547 = sphi 0, %s533
      %s551 = sphi 0, %s551
      %s553 = sphi 0, %s551
      %s554 = sphi 0, %s553
      %s568 = sphi 0, %s554
      %s574 = sphi 0, %s576
      %s577 = sphi 0, %s574
      %s578 = sphi 0, %s577
      %s594 = sphi 0, %s578
    $region4: #{tpu_custom_call.1} parent=1 // loop_header_branch
      %37 = sbr.rel (%p35) target = $region8
    $region5: #{tpu_custom_call.1} parent=1 // loop_body
      %s39 = ssub.s32 %s34, 1
      %s40 = ssub.s32 %s34, 2
      %s41 = sadd.s32 %s34, 1
      %s42 = ssub.s32 %s34, %s41
      %p43 = scmp.eq.s32.totalorder %s42, 0
      %s45 = sadd.s32 %s44, 1
      %s46 = scalar_select %p43, %s44, %s45
      %p49 = pneg %p43
      %p50 = scmp.eq.s32.totalorder %s34, 1
      %p51 = por %p49, %p50
      %p52 = scmp.ne.s32.totalorder %s44, %s47
      %p53 = scmp.eq.s32.totalorder %s34, 0
      %p54 = por %p52, %p53
      %p55 = scmp.ne.s32.totalorder %s44, %s47
      %p56 = scmp.eq.s32.totalorder %s39, 1
      %p57 = por %p55, %p56
      %p58 = scmp.ne.s32.totalorder %s47, %s48
      %p59 = scmp.eq.s32.totalorder %s39, 0
      %p60 = por %p58, %p59
      %p61 = scmp.ne.s32.totalorder %s47, %s48
      %p62 = scmp.eq.s32.totalorder %s40, 1
      %p63 = por %p61, %p62
      %p65 = scmp.ne.s32.totalorder %s48, %s64
      %p66 = scmp.eq.s32.totalorder %s40, 0
      %p67 = por %p65, %p66
      %s69 = sadd.s32 %s68, 1
      %p72 = scmp.eq.s32.totalorder %s34, 1
      %p73 = scmp.ne.s32.totalorder %s68, %s70
      %p74 = scmp.eq.s32.totalorder %s34, 0
      %p75 = por %p73, %p74
      %p76 = scmp.ne.s32.totalorder %s68, %s70
      %p77 = scmp.eq.s32.totalorder %s39, 1
      %p78 = por %p76, %p77
      %p79 = scmp.ne.s32.totalorder %s70, %s71
      %p80 = scmp.eq.s32.totalorder %s39, 0
      %p81 = por %p79, %p80
      %p82 = scmp.ne.s32.totalorder %s70, %s71
      %p83 = scmp.eq.s32.totalorder %s40, 1
      %p84 = por %p82, %p83
      %p86 = scmp.ne.s32.totalorder %s71, %s85
      %p87 = scmp.eq.s32.totalorder %s40, 0
      %p88 = por %p86, %p87
      %s90 = sadd.s32 %s89, 1
      %p93 = scmp.eq.s32.totalorder %s34, 1
      %p94 = scmp.ne.s32.totalorder %s89, %s91
      %p95 = scmp.eq.s32.totalorder %s34, 0
      %p96 = por %p94, %p95
      %p97 = scmp.ne.s32.totalorder %s89, %s91
      %p98 = scmp.eq.s32.totalorder %s39, 1
      %p99 = por %p97, %p98
      %p100 = scmp.ne.s32.totalorder %s91, %s92
      %p101 = scmp.eq.s32.totalorder %s39, 0
      %p102 = por %p100, %p101
      %p103 = scmp.ne.s32.totalorder %s91, %s92
      %p104 = scmp.eq.s32.totalorder %s40, 1
      %p105 = por %p103, %p104
      %p107 = scmp.ne.s32.totalorder %s92, %s106
      %p108 = scmp.eq.s32.totalorder %s40, 0
      %p109 = por %p107, %p108
      %s111 = sadd.s32 %s110, 1
      %p114 = scmp.eq.s32.totalorder %s34, 1
      %p115 = scmp.ne.s32.totalorder %s110, %s112
      %p116 = scmp.eq.s32.totalorder %s34, 0
      %p117 = por %p115, %p116
      %p118 = scmp.ne.s32.totalorder %s110, %s112
      %p119 = scmp.eq.s32.totalorder %s39, 1
      %p120 = por %p118, %p119
      %p121 = scmp.ne.s32.totalorder %s112, %s113
      %p122 = scmp.eq.s32.totalorder %s39, 0
      %p123 = por %p121, %p122
      %p124 = scmp.ne.s32.totalorder %s112, %s113
      %p125 = scmp.eq.s32.totalorder %s40, 1
      %p126 = por %p124, %p125
      %p128 = scmp.ne.s32.totalorder %s113, %s127
      %p129 = scmp.eq.s32.totalorder %s40, 0
      %p130 = por %p128, %p129
      %s132 = sadd.s32 %s131, 1
      %p135 = scmp.eq.s32.totalorder %s34, 1
      %p136 = scmp.ne.s32.totalorder %s131, %s133
      %p137 = scmp.eq.s32.totalorder %s34, 0
      %p138 = por %p136, %p137
      %p139 = scmp.ne.s32.totalorder %s131, %s133
      %p140 = scmp.eq.s32.totalorder %s39, 1
      %p141 = por %p139, %p140
      %p142 = scmp.ne.s32.totalorder %s133, %s134
      %p143 = scmp.eq.s32.totalorder %s39, 0
      %p144 = por %p142, %p143
      %p145 = scmp.ne.s32.totalorder %s133, %s134
      %p146 = scmp.eq.s32.totalorder %s40, 1
      %p147 = por %p145, %p146
      %p149 = scmp.ne.s32.totalorder %s134, %s148
      %p150 = scmp.eq.s32.totalorder %s40, 0
      %p151 = por %p149, %p150
      %s153 = sadd.s32 %s152, 1
      %p156 = scmp.eq.s32.totalorder %s34, 1
      %p157 = scmp.ne.s32.totalorder %s152, %s154
      %p158 = scmp.eq.s32.totalorder %s34, 0
      %p159 = por %p157, %p158
      %p160 = scmp.ne.s32.totalorder %s152, %s154
      %p161 = scmp.eq.s32.totalorder %s39, 1
      %p162 = por %p160, %p161
      %p163 = scmp.ne.s32.totalorder %s154, %s155
      %p164 = scmp.eq.s32.totalorder %s39, 0
      %p165 = por %p163, %p164
      %p166 = scmp.ne.s32.totalorder %s154, %s155
      %p167 = scmp.eq.s32.totalorder %s40, 1
      %p168 = por %p166, %p167
      %p170 = scmp.ne.s32.totalorder %s155, %s169
      %p171 = scmp.eq.s32.totalorder %s40, 0
      %p172 = por %p170, %p171
      %s174 = sadd.s32 %s173, 1
      %p177 = scmp.eq.s32.totalorder %s34, 1
      %p178 = scmp.ne.s32.totalorder %s173, %s175
      %p179 = scmp.eq.s32.totalorder %s34, 0
      %p180 = por %p178, %p179
      %p181 = scmp.ne.s32.totalorder %s173, %s175
      %p182 = scmp.eq.s32.totalorder %s39, 1
      %p183 = por %p181, %p182
      %p184 = scmp.ne.s32.totalorder %s175, %s176
      %p185 = scmp.eq.s32.totalorder %s39, 0
      %p186 = por %p184, %p185
      %p187 = scmp.ne.s32.totalorder %s175, %s176
      %p188 = scmp.eq.s32.totalorder %s40, 1
      %p189 = por %p187, %p188
      %p191 = scmp.ne.s32.totalorder %s176, %s190
      %p192 = scmp.eq.s32.totalorder %s40, 0
      %p193 = por %p191, %p192
      %s195 = sadd.s32 %s194, 1
      %p198 = scmp.eq.s32.totalorder %s34, 1
      %p199 = scmp.ne.s32.totalorder %s194, %s196
      %p200 = scmp.eq.s32.totalorder %s34, 0
      %p201 = por %p199, %p200
      %p202 = scmp.ne.s32.totalorder %s194, %s196
      %p203 = scmp.eq.s32.totalorder %s39, 1
      %p204 = por %p202, %p203
      %p205 = scmp.ne.s32.totalorder %s196, %s197
      %p206 = scmp.eq.s32.totalorder %s39, 0
      %p207 = por %p205, %p206
      %p208 = scmp.ne.s32.totalorder %s196, %s197
      %p209 = scmp.eq.s32.totalorder %s40, 1
      %p210 = por %p208, %p209
      %p212 = scmp.ne.s32.totalorder %s197, %s211
      %p213 = scmp.eq.s32.totalorder %s40, 0
      %p214 = por %p212, %p213
      %s216 = sadd.s32 %s215, 1
      %p219 = scmp.eq.s32.totalorder %s34, 1
      %p220 = scmp.ne.s32.totalorder %s215, %s217
      %p221 = scmp.eq.s32.totalorder %s34, 0
      %p222 = por %p220, %p221
      %p223 = scmp.ne.s32.totalorder %s215, %s217
      %p224 = scmp.eq.s32.totalorder %s39, 1
      %p225 = por %p223, %p224
      %p226 = scmp.ne.s32.totalorder %s217, %s218
      %p227 = scmp.eq.s32.totalorder %s39, 0
      %p228 = por %p226, %p227
      %p229 = scmp.ne.s32.totalorder %s217, %s218
      %p230 = scmp.eq.s32.totalorder %s40, 1
      %p231 = por %p229, %p230
      %p233 = scmp.ne.s32.totalorder %s218, %s232
      %p234 = scmp.eq.s32.totalorder %s40, 0
      %p235 = por %p233, %p234
      %s237 = sadd.s32 %s236, 1
      %p240 = scmp.eq.s32.totalorder %s34, 1
      %p241 = scmp.ne.s32.totalorder %s236, %s238
      %p242 = scmp.eq.s32.totalorder %s34, 0
      %p243 = por %p241, %p242
      %p244 = scmp.ne.s32.totalorder %s236, %s238
      %p245 = scmp.eq.s32.totalorder %s39, 1
      %p246 = por %p244, %p245
      %p247 = scmp.ne.s32.totalorder %s238, %s239
      %p248 = scmp.eq.s32.totalorder %s39, 0
      %p249 = por %p247, %p248
      %p250 = scmp.ne.s32.totalorder %s238, %s239
      %p251 = scmp.eq.s32.totalorder %s40, 1
      %p252 = por %p250, %p251
      %p254 = scmp.ne.s32.totalorder %s239, %s253
      %p255 = scmp.eq.s32.totalorder %s40, 0
      %p256 = por %p254, %p255
      %s258 = sadd.s32 %s257, 1
      %p261 = scmp.eq.s32.totalorder %s34, 1
      %p262 = scmp.ne.s32.totalorder %s257, %s259
      %p263 = scmp.eq.s32.totalorder %s34, 0
      %p264 = por %p262, %p263
      %p265 = scmp.ne.s32.totalorder %s257, %s259
      %p266 = scmp.eq.s32.totalorder %s39, 1
      %p267 = por %p265, %p266
      %p268 = scmp.ne.s32.totalorder %s259, %s260
      %p269 = scmp.eq.s32.totalorder %s39, 0
      %p270 = por %p268, %p269
      %p271 = scmp.ne.s32.totalorder %s259, %s260
      %p272 = scmp.eq.s32.totalorder %s40, 1
      %p273 = por %p271, %p272
      %p275 = scmp.ne.s32.totalorder %s260, %s274
      %p276 = scmp.eq.s32.totalorder %s40, 0
      %p277 = por %p275, %p276
      %s279 = sadd.s32 %s278, 1
      %p282 = scmp.eq.s32.totalorder %s34, 1
      %p283 = scmp.ne.s32.totalorder %s278, %s280
      %p284 = scmp.eq.s32.totalorder %s34, 0
      %p285 = por %p283, %p284
      %p286 = scmp.ne.s32.totalorder %s278, %s280
      %p287 = scmp.eq.s32.totalorder %s39, 1
      %p288 = por %p286, %p287
      %p289 = scmp.ne.s32.totalorder %s280, %s281
      %p290 = scmp.eq.s32.totalorder %s39, 0
      %p291 = por %p289, %p290
      %p292 = scmp.ne.s32.totalorder %s280, %s281
      %p293 = scmp.eq.s32.totalorder %s40, 1
      %p294 = por %p292, %p293
      %p296 = scmp.ne.s32.totalorder %s281, %s295
      %p297 = scmp.eq.s32.totalorder %s40, 0
      %p298 = por %p296, %p297
      %s300 = sadd.s32 %s299, 1
      %p303 = scmp.eq.s32.totalorder %s34, 1
      %p304 = scmp.ne.s32.totalorder %s299, %s301
      %p305 = scmp.eq.s32.totalorder %s34, 0
      %p306 = por %p304, %p305
      %p307 = scmp.ne.s32.totalorder %s299, %s301
      %p308 = scmp.eq.s32.totalorder %s39, 1
      %p309 = por %p307, %p308
      %p310 = scmp.ne.s32.totalorder %s301, %s302
      %p311 = scmp.eq.s32.totalorder %s39, 0
      %p312 = por %p310, %p311
      %p313 = scmp.ne.s32.totalorder %s301, %s302
      %p314 = scmp.eq.s32.totalorder %s40, 1
      %p315 = por %p313, %p314
      %p317 = scmp.ne.s32.totalorder %s302, %s316
      %p318 = scmp.eq.s32.totalorder %s40, 0
      %p319 = por %p317, %p318
      %s321 = sadd.s32 %s320, 1
      %p324 = scmp.eq.s32.totalorder %s34, 1
      %p325 = scmp.ne.s32.totalorder %s320, %s322
      %p326 = scmp.eq.s32.totalorder %s34, 0
      %p327 = por %p325, %p326
      %p328 = scmp.ne.s32.totalorder %s320, %s322
      %p329 = scmp.eq.s32.totalorder %s39, 1
      %p330 = por %p328, %p329
      %p331 = scmp.ne.s32.totalorder %s322, %s323
      %p332 = scmp.eq.s32.totalorder %s39, 0
      %p333 = por %p331, %p332
      %p334 = scmp.ne.s32.totalorder %s322, %s323
      %p335 = scmp.eq.s32.totalorder %s40, 1
      %p336 = por %p334, %p335
      %p338 = scmp.ne.s32.totalorder %s323, %s337
      %p339 = scmp.eq.s32.totalorder %s40, 0
      %p340 = por %p338, %p339
      %s342 = sadd.s32 %s341, 1
      %p345 = scmp.eq.s32.totalorder %s34, 1
      %p346 = scmp.ne.s32.totalorder %s341, %s343
      %p347 = scmp.eq.s32.totalorder %s34, 0
      %p348 = por %p346, %p347
      %p349 = scmp.ne.s32.totalorder %s341, %s343
      %p350 = scmp.eq.s32.totalorder %s39, 1
      %p351 = por %p349, %p350
      %p352 = scmp.ne.s32.totalorder %s343, %s344
      %p353 = scmp.eq.s32.totalorder %s39, 0
      %p354 = por %p352, %p353
      %p355 = scmp.ne.s32.totalorder %s343, %s344
      %p356 = scmp.eq.s32.totalorder %s40, 1
      %p357 = por %p355, %p356
      %p359 = scmp.ne.s32.totalorder %s344, %s358
      %p360 = scmp.eq.s32.totalorder %s40, 0
      %p361 = por %p359, %p360
      %s363 = sadd.s32 %s362, 1
      %p366 = scmp.eq.s32.totalorder %s34, 1
      %p367 = scmp.ne.s32.totalorder %s362, %s364
      %p368 = scmp.eq.s32.totalorder %s34, 0
      %p369 = por %p367, %p368
      %p370 = scmp.ne.s32.totalorder %s362, %s364
      %p371 = scmp.eq.s32.totalorder %s39, 1
      %p372 = por %p370, %p371
      %p373 = scmp.ne.s32.totalorder %s364, %s365
      %p374 = scmp.eq.s32.totalorder %s39, 0
      %p375 = por %p373, %p374
      %p376 = scmp.ne.s32.totalorder %s364, %s365
      %p377 = scmp.eq.s32.totalorder %s40, 1
      %p378 = por %p376, %p377
      %p380 = scmp.ne.s32.totalorder %s365, %s379
      %p381 = scmp.eq.s32.totalorder %s40, 0
      %p382 = por %p380, %p381
      %s384 = sadd.s32 %s383, 1
      %p387 = scmp.eq.s32.totalorder %s34, 1
      %p388 = scmp.ne.s32.totalorder %s383, %s385
      %p389 = scmp.eq.s32.totalorder %s34, 0
      %p390 = por %p388, %p389
      %p391 = scmp.ne.s32.totalorder %s383, %s385
      %p392 = scmp.eq.s32.totalorder %s39, 1
      %p393 = por %p391, %p392
      %p394 = scmp.ne.s32.totalorder %s385, %s386
      %p395 = scmp.eq.s32.totalorder %s39, 0
      %p396 = por %p394, %p395
      %p397 = scmp.ne.s32.totalorder %s385, %s386
      %p398 = scmp.eq.s32.totalorder %s40, 1
      %p399 = por %p397, %p398
      %p401 = scmp.ne.s32.totalorder %s386, %s400
      %p402 = scmp.eq.s32.totalorder %s40, 0
      %p403 = por %p401, %p402
      %s405 = sadd.s32 %s404, 1
      %p408 = scmp.eq.s32.totalorder %s34, 1
      %p409 = scmp.ne.s32.totalorder %s404, %s406
      %p410 = scmp.eq.s32.totalorder %s34, 0
      %p411 = por %p409, %p410
      %p412 = scmp.ne.s32.totalorder %s404, %s406
      %p413 = scmp.eq.s32.totalorder %s39, 1
      %p414 = por %p412, %p413
      %p415 = scmp.ne.s32.totalorder %s406, %s407
      %p416 = scmp.eq.s32.totalorder %s39, 0
      %p417 = por %p415, %p416
      %p418 = scmp.ne.s32.totalorder %s406, %s407
      %p419 = scmp.eq.s32.totalorder %s40, 1
      %p420 = por %p418, %p419
      %p422 = scmp.ne.s32.totalorder %s407, %s421
      %p423 = scmp.eq.s32.totalorder %s40, 0
      %p424 = por %p422, %p423
      %s426 = sadd.s32 %s425, 1
      %p429 = scmp.eq.s32.totalorder %s34, 1
      %p430 = scmp.ne.s32.totalorder %s425, %s427
      %p431 = scmp.eq.s32.totalorder %s34, 0
      %p432 = por %p430, %p431
      %p433 = scmp.ne.s32.totalorder %s425, %s427
      %p434 = scmp.eq.s32.totalorder %s39, 1
      %p435 = por %p433, %p434
      %p436 = scmp.ne.s32.totalorder %s427, %s428
      %p437 = scmp.eq.s32.totalorder %s39, 0
      %p438 = por %p436, %p437
      %p439 = scmp.ne.s32.totalorder %s427, %s428
      %p440 = scmp.eq.s32.totalorder %s40, 1
      %p441 = por %p439, %p440
      %p443 = scmp.ne.s32.totalorder %s428, %s442
      %p444 = scmp.eq.s32.totalorder %s40, 0
      %p445 = por %p443, %p444
      %s447 = sadd.s32 %s446, 1
      %p450 = scmp.eq.s32.totalorder %s34, 1
      %p451 = scmp.ne.s32.totalorder %s446, %s448
      %p452 = scmp.eq.s32.totalorder %s34, 0
      %p453 = por %p451, %p452
      %p454 = scmp.ne.s32.totalorder %s446, %s448
      %p455 = scmp.eq.s32.totalorder %s39, 1
      %p456 = por %p454, %p455
      %p457 = scmp.ne.s32.totalorder %s448, %s449
      %p458 = scmp.eq.s32.totalorder %s39, 0
      %p459 = por %p457, %p458
      %p460 = scmp.ne.s32.totalorder %s448, %s449
      %p461 = scmp.eq.s32.totalorder %s40, 1
      %p462 = por %p460, %p461
      %p464 = scmp.ne.s32.totalorder %s449, %s463
      %p465 = scmp.eq.s32.totalorder %s40, 0
      %p466 = por %p464, %p465
      %s468 = sadd.s32 %s467, 1
      %p471 = scmp.eq.s32.totalorder %s34, 1
      %p472 = scmp.ne.s32.totalorder %s467, %s469
      %p473 = scmp.eq.s32.totalorder %s34, 0
      %p474 = por %p472, %p473
      %p475 = scmp.ne.s32.totalorder %s467, %s469
      %p476 = scmp.eq.s32.totalorder %s39, 1
      %p477 = por %p475, %p476
      %p478 = scmp.ne.s32.totalorder %s469, %s470
      %p479 = scmp.eq.s32.totalorder %s39, 0
      %p480 = por %p478, %p479
      %p481 = scmp.ne.s32.totalorder %s469, %s470
      %p482 = scmp.eq.s32.totalorder %s40, 1
      %p483 = por %p481, %p482
      %p485 = scmp.ne.s32.totalorder %s470, %s484
      %p486 = scmp.eq.s32.totalorder %s40, 0
      %p487 = por %p485, %p486
      %s489 = sadd.s32 %s488, 1
      %p492 = scmp.eq.s32.totalorder %s34, 1
      %p493 = scmp.ne.s32.totalorder %s488, %s490
      %p494 = scmp.eq.s32.totalorder %s34, 0
      %p495 = por %p493, %p494
      %p496 = scmp.ne.s32.totalorder %s488, %s490
      %p497 = scmp.eq.s32.totalorder %s39, 1
      %p498 = por %p496, %p497
      %p499 = scmp.ne.s32.totalorder %s490, %s491
      %p500 = scmp.eq.s32.totalorder %s39, 0
      %p501 = por %p499, %p500
      %p502 = scmp.ne.s32.totalorder %s490, %s491
      %p503 = scmp.eq.s32.totalorder %s40, 1
      %p504 = por %p502, %p503
      %p506 = scmp.ne.s32.totalorder %s491, %s505
      %p507 = scmp.eq.s32.totalorder %s40, 0
      %p508 = por %p506, %p507
      %s510 = sadd.s32 %s509, 1
      %p513 = scmp.eq.s32.totalorder %s34, 1
      %p514 = scmp.ne.s32.totalorder %s509, %s511
      %p515 = scmp.eq.s32.totalorder %s34, 0
      %p516 = por %p514, %p515
      %p517 = scmp.ne.s32.totalorder %s509, %s511
      %p518 = scmp.eq.s32.totalorder %s39, 1
      %p519 = por %p517, %p518
      %p520 = scmp.ne.s32.totalorder %s511, %s512
      %p521 = scmp.eq.s32.totalorder %s39, 0
      %p522 = por %p520, %p521
      %p523 = scmp.ne.s32.totalorder %s511, %s512
      %p524 = scmp.eq.s32.totalorder %s40, 1
      %p525 = por %p523, %p524
      %p527 = scmp.ne.s32.totalorder %s512, %s526
      %p528 = scmp.eq.s32.totalorder %s40, 0
      %p529 = por %p527, %p528
      %s531 = sadd.s32 %s530, 1
      %p534 = scmp.eq.s32.totalorder %s34, 1
      %p535 = scmp.ne.s32.totalorder %s530, %s532
      %p536 = scmp.eq.s32.totalorder %s34, 0
      %p537 = por %p535, %p536
      %p538 = scmp.ne.s32.totalorder %s530, %s532
      %p539 = scmp.eq.s32.totalorder %s39, 1
      %p540 = por %p538, %p539
      %p541 = scmp.ne.s32.totalorder %s532, %s533
      %p542 = scmp.eq.s32.totalorder %s39, 0
      %p543 = por %p541, %p542
      %p544 = scmp.ne.s32.totalorder %s532, %s533
      %p545 = scmp.eq.s32.totalorder %s40, 1
      %p546 = por %p544, %p545
      %p548 = scmp.ne.s32.totalorder %s533, %s547
      %p549 = scmp.eq.s32.totalorder %s40, 0
      %p550 = por %p548, %p549
      %s552 = sadd.s32 %s551, 1
      %p555 = scmp.eq.s32.totalorder %s34, 1
      %p556 = scmp.ne.s32.totalorder %s551, %s553
      %p557 = scmp.eq.s32.totalorder %s34, 0
      %p558 = por %p556, %p557
      %p559 = scmp.ne.s32.totalorder %s551, %s553
      %p560 = scmp.eq.s32.totalorder %s39, 1
      %p561 = por %p559, %p560
      %p562 = scmp.ne.s32.totalorder %s553, %s554
      %p563 = scmp.eq.s32.totalorder %s39, 0
      %p564 = por %p562, %p563
      %p565 = scmp.ne.s32.totalorder %s553, %s554
      %p566 = scmp.eq.s32.totalorder %s40, 1
      %p567 = por %p565, %p566
      %p569 = scmp.ne.s32.totalorder %s554, %s568
      %p570 = scmp.eq.s32.totalorder %s40, 0
      %p571 = por %p569, %p570
      %s572 = ssub.s32 %s34, %s41
      %p573 = scmp.eq.s32.totalorder %s572, 0
      %s575 = sadd.s32 %s574, 1
      %s576 = scalar_select %p573, %s574, %s575
      %p579 = pneg %p573
      %p580 = scmp.eq.s32.totalorder %s34, 1
      %p581 = por %p579, %p580
      %p582 = scmp.ne.s32.totalorder %s574, %s577
      %p583 = scmp.eq.s32.totalorder %s34, 0
      %p584 = por %p582, %p583
      %p585 = scmp.ne.s32.totalorder %s574, %s577
      %p586 = scmp.eq.s32.totalorder %s39, 1
      %p587 = por %p585, %p586
      %p588 = scmp.ne.s32.totalorder %s577, %s578
      %p589 = scmp.eq.s32.totalorder %s39, 0
      %p590 = por %p588, %p589
      %p591 = scmp.ne.s32.totalorder %s577, %s578
      %p592 = scmp.eq.s32.totalorder %s40, 1
      %p593 = por %p591, %p592
      %p595 = scmp.ne.s32.totalorder %s578, %s594
      %p596 = scmp.eq.s32.totalorder %s40, 0
      %p597 = por %p595, %p596
      %p598 = scmp.le.s32.totalorder 1, %s34
      %p599 = scmp.lt.s32.totalorder %s34, 3
      %p600 = pnand %p598, %p599
      %p601 = pneg %p600
      // Predicated region
      $region9: #{tpu_custom_call.1} parent=5 // pred_check
        _
      $region10: #{tpu_custom_call.1} parent=5 // pred_check_branch
        %603 = sbr.rel (%p600) target = $region12
      $region11: #{tpu_custom_call.1} parent=5 // pred_region
        %s604 = ssub.s32 %s34, 1
        // Predicated region
        $region13: #{tpu_custom_call.1} parent=11 // pred_check
          %p605 = pneg %p81
        $region14: #{tpu_custom_call.1} parent=11 // pred_check_branch
          %607 = sbr.rel (%p605) target = $region16
        $region15: #{tpu_custom_call.1} parent=11 // pred_region
          _
        $region16: #{tpu_custom_call.1} parent=11 // pred_fallthru
          _
        // Predicated region
        $region17: #{tpu_custom_call.1} parent=11 // pred_check
          %p608 = pneg %p102
        $region18: #{tpu_custom_call.1} parent=11 // pred_check_branch
          %610 = sbr.rel (%p608) target = $region20
        $region19: #{tpu_custom_call.1} parent=11 // pred_region
          _
        $region20: #{tpu_custom_call.1} parent=11 // pred_fallthru
          _
        // Predicated region
        $region21: #{tpu_custom_call.1} parent=11 // pred_check
          %p611 = pneg %p123
        $region22: #{tpu_custom_call.1} parent=11 // pred_check_branch
          %613 = sbr.rel (%p611) target = $region24
        $region23: #{tpu_custom_call.1} parent=11 // pred_region
          _
        $region24: #{tpu_custom_call.1} parent=11 // pred_fallthru
          _
        // Predicated region
        $region25: #{tpu_custom_call.1} parent=11 // pred_check
          %p614 = pneg %p144
        $region26: #{tpu_custom_call.1} parent=11 // pred_check_branch
          %616 = sbr.rel (%p614) target = $region28
        $region27: #{tpu_custom_call.1} parent=11 // pred_region
          _
        $region28: #{tpu_custom_call.1} parent=11 // pred_fallthru
          _
        // Predicated region
        $region29: #{tpu_custom_call.1} parent=11 // pred_check
          %p617 = pneg %p165
        $region30: #{tpu_custom_call.1} parent=11 // pred_check_branch
          %619 = sbr.rel (%p617) target = $region32
        $region31: #{tpu_custom_call.1} parent=11 // pred_region
          _
        $region32: #{tpu_custom_call.1} parent=11 // pred_fallthru
          _
        // Predicated region
        $region33: #{tpu_custom_call.1} parent=11 // pred_check
          %p620 = pneg %p186
        $region34: #{tpu_custom_call.1} parent=11 // pred_check_branch
          %622 = sbr.rel (%p620) target = $region36
        $region35: #{tpu_custom_call.1} parent=11 // pred_region
          _
        $region36: #{tpu_custom_call.1} parent=11 // pred_fallthru
          _
        // Predicated region
        $region37: #{tpu_custom_call.1} parent=11 // pred_check
          %p623 = pneg %p207
        $region38: #{tpu_custom_call.1} parent=11 // pred_check_branch
          %625 = sbr.rel (%p623) target = $region40
        $region39: #{tpu_custom_call.1} parent=11 // pred_region
          _
        $region40: #{tpu_custom_call.1} parent=11 // pred_fallthru
          _
        // Predicated region
        $region41: #{tpu_custom_call.1} parent=11 // pred_check
          %p626 = pneg %p228
        $region42: #{tpu_custom_call.1} parent=11 // pred_check_branch
          %628 = sbr.rel (%p626) target = $region44
        $region43: #{tpu_custom_call.1} parent=11 // pred_region
          _
        $region44: #{tpu_custom_call.1} parent=11 // pred_fallthru
          _
        // Predicated region
        $region45: #{tpu_custom_call.1} parent=11 // pred_check
          %p629 = pneg %p249
        $region46: #{tpu_custom_call.1} parent=11 // pred_check_branch
          %631 = sbr.rel (%p629) target = $region48
        $region47: #{tpu_custom_call.1} parent=11 // pred_region
          _
        $region48: #{tpu_custom_call.1} parent=11 // pred_fallthru
          _
        // Predicated region
        $region49: #{tpu_custom_call.1} parent=11 // pred_check
          %p632 = pneg %p270
        $region50: #{tpu_custom_call.1} parent=11 // pred_check_branch
          %634 = sbr.rel (%p632) target = $region52
        $region51: #{tpu_custom_call.1} parent=11 // pred_region
          _
        $region52: #{tpu_custom_call.1} parent=11 // pred_fallthru
          _
        // Predicated region
        $region53: #{tpu_custom_call.1} parent=11 // pred_check
          %p635 = pneg %p291
        $region54: #{tpu_custom_call.1} parent=11 // pred_check_branch
          %637 = sbr.rel (%p635) target = $region56
        $region55: #{tpu_custom_call.1} parent=11 // pred_region
          _
        $region56: #{tpu_custom_call.1} parent=11 // pred_fallthru
          _
        // Predicated region
        $region57: #{tpu_custom_call.1} parent=11 // pred_check
          %p638 = pneg %p312
        $region58: #{tpu_custom_call.1} parent=11 // pred_check_branch
          %640 = sbr.rel (%p638) target = $region60
        $region59: #{tpu_custom_call.1} parent=11 // pred_region
          _
        $region60: #{tpu_custom_call.1} parent=11 // pred_fallthru
          _
        // Predicated region
        $region61: #{tpu_custom_call.1} parent=11 // pred_check
          %p641 = pneg %p333
        $region62: #{tpu_custom_call.1} parent=11 // pred_check_branch
          %643 = sbr.rel (%p641) target = $region64
        $region63: #{tpu_custom_call.1} parent=11 // pred_region
          _
        $region64: #{tpu_custom_call.1} parent=11 // pred_fallthru
          _
        // Predicated region
        $region65: #{tpu_custom_call.1} parent=11 // pred_check
          %p644 = pneg %p354
        $region66: #{tpu_custom_call.1} parent=11 // pred_check_branch
          %646 = sbr.rel (%p644) target = $region68
        $region67: #{tpu_custom_call.1} parent=11 // pred_region
          _
        $region68: #{tpu_custom_call.1} parent=11 // pred_fallthru
          _
        // Predicated region
        $region69: #{tpu_custom_call.1} parent=11 // pred_check
          %p647 = pneg %p375
        $region70: #{tpu_custom_call.1} parent=11 // pred_check_branch
          %649 = sbr.rel (%p647) target = $region72
        $region71: #{tpu_custom_call.1} parent=11 // pred_region
          _
        $region72: #{tpu_custom_call.1} parent=11 // pred_fallthru
          _
        // Predicated region
        $region73: #{tpu_custom_call.1} parent=11 // pred_check
          %p650 = pneg %p396
        $region74: #{tpu_custom_call.1} parent=11 // pred_check_branch
          %652 = sbr.rel (%p650) target = $region76
        $region75: #{tpu_custom_call.1} parent=11 // pred_region
          _
        $region76: #{tpu_custom_call.1} parent=11 // pred_fallthru
          _
        // Predicated region
        $region77: #{tpu_custom_call.1} parent=11 // pred_check
          %p653 = pneg %p417
        $region78: #{tpu_custom_call.1} parent=11 // pred_check_branch
          %655 = sbr.rel (%p653) target = $region80
        $region79: #{tpu_custom_call.1} parent=11 // pred_region
          _
        $region80: #{tpu_custom_call.1} parent=11 // pred_fallthru
          _
        // Predicated region
        $region81: #{tpu_custom_call.1} parent=11 // pred_check
          %p656 = pneg %p438
        $region82: #{tpu_custom_call.1} parent=11 // pred_check_branch
          %658 = sbr.rel (%p656) target = $region84
        $region83: #{tpu_custom_call.1} parent=11 // pred_region
          _
        $region84: #{tpu_custom_call.1} parent=11 // pred_fallthru
          _
        // Predicated region
        $region85: #{tpu_custom_call.1} parent=11 // pred_check
          %p659 = pneg %p459
        $region86: #{tpu_custom_call.1} parent=11 // pred_check_branch
          %661 = sbr.rel (%p659) target = $region88
        $region87: #{tpu_custom_call.1} parent=11 // pred_region
          _
        $region88: #{tpu_custom_call.1} parent=11 // pred_fallthru
          _
        // Predicated region
        $region89: #{tpu_custom_call.1} parent=11 // pred_check
          %p662 = pneg %p480
        $region90: #{tpu_custom_call.1} parent=11 // pred_check_branch
          %664 = sbr.rel (%p662) target = $region92
        $region91: #{tpu_custom_call.1} parent=11 // pred_region
          _
        $region92: #{tpu_custom_call.1} parent=11 // pred_fallthru
          _
        // Predicated region
        $region93: #{tpu_custom_call.1} parent=11 // pred_check
          %p665 = pneg %p501
        $region94: #{tpu_custom_call.1} parent=11 // pred_check_branch
          %667 = sbr.rel (%p665) target = $region96
        $region95: #{tpu_custom_call.1} parent=11 // pred_region
          _
        $region96: #{tpu_custom_call.1} parent=11 // pred_fallthru
          _
        // Predicated region
        $region97: #{tpu_custom_call.1} parent=11 // pred_check
          %p668 = pneg %p522
        $region98: #{tpu_custom_call.1} parent=11 // pred_check_branch
          %670 = sbr.rel (%p668) target = $region100
        $region99: #{tpu_custom_call.1} parent=11 // pred_region
          _
        $region100: #{tpu_custom_call.1} parent=11 // pred_fallthru
          _
        // Predicated region
        $region101: #{tpu_custom_call.1} parent=11 // pred_check
          %p671 = pneg %p543
        $region102: #{tpu_custom_call.1} parent=11 // pred_check_branch
          %673 = sbr.rel (%p671) target = $region104
        $region103: #{tpu_custom_call.1} parent=11 // pred_region
          _
        $region104: #{tpu_custom_call.1} parent=11 // pred_fallthru
          _
        // Predicated region
        $region105: #{tpu_custom_call.1} parent=11 // pred_check
          %p674 = pneg %p564
        $region106: #{tpu_custom_call.1} parent=11 // pred_check_branch
          %676 = sbr.rel (%p674) target = $region108
        $region107: #{tpu_custom_call.1} parent=11 // pred_region
          _
        $region108: #{tpu_custom_call.1} parent=11 // pred_fallthru
          _
      $region12: #{tpu_custom_call.1} parent=5 // pred_fallthru
        _
      %p677 = scmp.lt.s32.totalorder %s34, 2
      // Predicated region
      $region109: #{tpu_custom_call.1} parent=5 // pred_check
        %p678 = pneg %p677
      $region110: #{tpu_custom_call.1} parent=5 // pred_check_branch
        %680 = sbr.rel (%p678) target = $region112
      $region111: #{tpu_custom_call.1} parent=5 // pred_region
        // Predicated region
        $region113: #{tpu_custom_call.1} parent=111 // pred_check
          %p681 = pneg %p54
        $region114: #{tpu_custom_call.1} parent=111 // pred_check_branch
          %683 = sbr.rel (%p681) target = $region116
        $region115: #{tpu_custom_call.1} parent=111 // pred_region
          %p684 = scmp.lt.s32.totalorder %s34, 1
          %s685 = scalar_select %p684, %s34, 1
          %s686 = smul.addr %s685, 2
          %s687 = smul.addr %s686, 8
          %s688 = scalar_lea.vmem %s0, %s687
        $region116: #{tpu_custom_call.1} parent=111 // pred_fallthru
          _
      $region112: #{tpu_custom_call.1} parent=5 // pred_fallthru
        _
      %p689 = scmp.le.s32.totalorder 1, %s34
      %p690 = scmp.lt.s32.totalorder %s34, 3
      %p691 = pnand %p689, %p690
      %p692 = pneg %p691
      // Predicated region
      $region117: #{tpu_custom_call.1} parent=5 // pred_check
        _
      $region118: #{tpu_custom_call.1} parent=5 // pred_check_branch
        %694 = sbr.rel (%p691) target = $region120
      $region119: #{tpu_custom_call.1} parent=5 // pred_region
        %s695 = ssub.s32 %s34, 1
        %p696 = scmp.lt.s32.totalorder %s39, 1
        %s697 = scalar_select %p696, %s39, 1
        %s698 = smul.addr %s697, 2
        %s699 = smul.addr %s698, 8
        %s700 = scalar_lea.vmem %s0, %s699
        %p701 = pneg %p60
        %p702 = pneg %p57
        %p703 = pneg %p81
        %p704 = pneg %p78
        %p705 = pneg %p102
        %p706 = pneg %p99
        %p707 = pneg %p123
        %p708 = pneg %p120
        %p709 = pneg %p144
        %p710 = pneg %p141
        %p711 = pneg %p165
        %p712 = pneg %p162
        %p713 = pneg %p186
        %p714 = pneg %p183
        %p715 = pneg %p207
        %p716 = pneg %p204
        %p717 = pneg %p228
        %p718 = pneg %p225
        %p719 = pneg %p249
        %p720 = pneg %p246
        %p721 = pneg %p270
        %p722 = pneg %p267
        %p723 = pneg %p291
        %p724 = pneg %p288
        %p725 = pneg %p312
        %p726 = pneg %p309
        %p727 = pneg %p333
        %p728 = pneg %p330
        %p729 = pneg %p354
        %p730 = pneg %p351
        %p731 = pneg %p375
        %p732 = pneg %p372
        %p733 = pneg %p396
        %p734 = pneg %p393
        %p735 = pneg %p417
        %p736 = pneg %p414
        %p737 = pneg %p438
        %p738 = pneg %p435
        %p739 = pneg %p459
        %p740 = pneg %p456
        %p741 = pneg %p480
        %p742 = pneg %p477
        %p743 = pneg %p501
        %p744 = pneg %p498
        %p745 = pneg %p522
        %p746 = pneg %p519
        %p747 = pneg %p543
        %p748 = pneg %p540
        %p749 = pneg %p564
        %p750 = pneg %p561
        %p751 = pneg %p590
        %p752 = pneg %p587
        %s753 = sand.u32 %s577, 1
        %s754 = scalar_lea.sflag [#allocation5], %s753
        %s755 = sand.u32 %s577, 1
        %s756 = smul.addr %s755, 64
        %s757 = scalar_lea.vmem [#allocation4], %s756
        %p758 = scmp.lt.s32.totalorder %s39, 1
        %s759 = scalar_select %p758, %s39, 1
        %s760 = smul.addr %s759, 2
        %s761 = smul.addr %s760, 8
        %s762 = scalar_lea.vmem %s0, %s761
        %v763 = vld [vmem:[%s762] sm:$0xff]
        %v764 = vld [vmem:[%s762 + $0x8] sm:$0xff]
        %765 = vst [vmem:[#allocation3] sm:$0xff] 0.0
        %766 = vst [vmem:[#allocation3 + $0x8] sm:$0xff] 0.0
        %767 = vst [vmem:[#allocation3 + $0x10] sm:$0xff] 0.0
        %768 = vst [vmem:[#allocation3 + $0x18] sm:$0xff] 0.0
        %769 = vst [vmem:[#allocation3 + $0x8] sm:$0xff] %v763
        %770 = vst [vmem:[#allocation3 + $0x10] sm:$0xff] %v764
        %v771 = vld [vmem:[#allocation3] sm:$0xff]
        %v772 = vld [vmem:[#allocation3 + $0x8] sm:$0xff]
        %v773 = vld [vmem:[#allocation3 + $0x10] sm:$0xff]
        %v774 = vld [vmem:[%s4] ss:$8 sm:$0x3]
        %v776 = vlaneseq
        %v777 = vshrl.u32 %v776, 7
        %v778 = vsub.s32 0, %v777
        %v779 = vrot.slane %v774, %v778
        %v780 = vlaneseq
        %v781 = vshrl.u32 %v780, 7
        %v782 = vsub.s32 1, %v781
        %v783 = vrot.slane %v774, %v782
        %784 = vrot.lane.b32.xlu0 %v779, 111
        %v785 = vpop.permute.xlu0 %784
        %786 = vrot.lane.b32.xlu0 %v783, 111
        %v787 = vpop.permute.xlu0 %786
        %vm788 = vcmask 908288
        %v789 = vsel %vm788, %v785, %v787
        %v793 = vmul.f32 %v771, %v785
        %v794 = vmul.f32 %v772, %v789
        %v795 = vmul.f32 %v773, %v787
        %799 = vrot.lane.b32.xlu0 %v793, 17
        %v800 = vpop.permute.xlu0 %799
        %801 = vrot.lane.b32.xlu0 %v794, 17
        %v802 = vpop.permute.xlu0 %801
        %803 = vrot.lane.b32.xlu0 %v795, 17
        %v804 = vpop.permute.xlu0 %803
        %vm805 = vcmask 138240
        %v806 = vsel %vm805, %v800, %v802
        %v807 = vsel %vm805, %v802, %v804
        %810 = vst [vmem:[#allocation2] sm:$0xff] %v806
        %811 = vst [vmem:[#allocation2 + $0x8] sm:$0xff] %v807
        %v812 = vld [vmem:[#allocation3] sm:$0xff]
        %v813 = vld [vmem:[#allocation3 + $0x8] sm:$0xff]
        %v814 = vld [vmem:[#allocation3 + $0x10] sm:$0xff]
        %s815 = scalar_lea.vmem %s4, 1
        %v816 = vld [vmem:[%s815] ss:$8 sm:$0x3]
        %v818 = vlaneseq
        %v819 = vshrl.u32 %v818, 7
        %v820 = vsub.s32 0, %v819
        %v821 = vrot.slane %v816, %v820
        %v822 = vlaneseq
        %v823 = vshrl.u32 %v822, 7
        %v824 = vsub.s32 1, %v823
        %v825 = vrot.slane %v816, %v824
        %826 = vrot.lane.b32.xlu0 %v821, 112
        %v827 = vpop.permute.xlu0 %826
        %828 = vrot.lane.b32.xlu0 %v825, 112
        %v829 = vpop.permute.xlu0 %828
        %vm830 = vcmask 916480
        %v831 = vsel %vm830, %v827, %v829
        %v835 = vmul.f32 %v812, %v827
        %v836 = vmul.f32 %v813, %v831
        %v837 = vmul.f32 %v814, %v829
        %841 = vrot.lane.b32.xlu0 %v835, 16
        %v842 = vpop.permute.xlu0 %841
        %843 = vrot.lane.b32.xlu0 %v836, 16
        %v844 = vpop.permute.xlu0 %843
        %845 = vrot.lane.b32.xlu0 %v837, 16
        %v846 = vpop.permute.xlu0 %845
        %vm847 = vcmask 130048
        %v848 = vsel %vm847, %v842, %v844
        %v849 = vsel %vm847, %v844, %v846
        %852 = vst [vmem:[#allocation2 + $0x10] sm:$0xff] %v848
        %853 = vst [vmem:[#allocation2 + $0x18] sm:$0xff] %v849
        %v854 = vld [vmem:[#allocation3] sm:$0xff]
        %v855 = vld [vmem:[#allocation3 + $0x8] sm:$0xff]
        %v856 = vld [vmem:[#allocation3 + $0x10] sm:$0xff]
        %s857 = scalar_lea.vmem %s4, 2
        %v858 = vld [vmem:[%s857] ss:$8 sm:$0x3]
        %v860 = vlaneseq
        %v861 = vshrl.u32 %v860, 7
        %v862 = vsub.s32 0, %v861
        %v863 = vrot.slane %v858, %v862
        %v864 = vlaneseq
        %v865 = vshrl.u32 %v864, 7
        %v866 = vsub.s32 1, %v865
        %v867 = vrot.slane %v858, %v866
        %868 = vrot.lane.b32.xlu0 %v863, 113
        %v869 = vpop.permute.xlu0 %868
        %870 = vrot.lane.b32.xlu0 %v867, 113
        %v871 = vpop.permute.xlu0 %870
        %vm872 = vcmask 924672
        %v873 = vsel %vm872, %v869, %v871
        %v877 = vmul.f32 %v854, %v869
        %v878 = vmul.f32 %v855, %v873
        %v879 = vmul.f32 %v856, %v871
        %883 = vrot.lane.b32.xlu0 %v877, 15
        %v884 = vpop.permute.xlu0 %883
        %885 = vrot.lane.b32.xlu0 %v878, 15
        %v886 = vpop.permute.xlu0 %885
        %887 = vrot.lane.b32.xlu0 %v879, 15
        %v888 = vpop.permute.xlu0 %887
        %vm889 = vcmask 121856
        %v890 = vsel %vm889, %v884, %v886
        %v891 = vsel %vm889, %v886, %v888
        %894 = vst [vmem:[#allocation2 + $0x20] sm:$0xff] %v890
        %895 = vst [vmem:[#allocation2 + $0x28] sm:$0xff] %v891
        %v896 = vld [vmem:[#allocation3] sm:$0xff]
        %v897 = vld [vmem:[#allocation3 + $0x8] sm:$0xff]
        %v898 = vld [vmem:[#allocation3 + $0x10] sm:$0xff]
        %s899 = scalar_lea.vmem %s4, 3
        %v900 = vld [vmem:[%s899] ss:$8 sm:$0x3]
        %v902 = vlaneseq
        %v903 = vshrl.u32 %v902, 7
        %v904 = vsub.s32 0, %v903
        %v905 = vrot.slane %v900, %v904
        %v906 = vlaneseq
        %v907 = vshrl.u32 %v906, 7
        %v908 = vsub.s32 1, %v907
        %v909 = vrot.slane %v900, %v908
        %910 = vrot.lane.b32.xlu0 %v905, 127
        %v911 = vpop.permute.xlu0 %910
        %912 = vrot.lane.b32.xlu0 %v909, 127
        %v913 = vpop.permute.xlu0 %912
        %vm914 = vcmask 1039360
        %v915 = vsel %vm914, %v911, %v913
        %v919 = vmul.f32 %v896, %v911
        %v920 = vmul.f32 %v897, %v915
        %v921 = vmul.f32 %v898, %v913
        %925 = vrot.lane.b32.xlu0 %v919, 1
        %v926 = vpop.permute.xlu0 %925
        %927 = vrot.lane.b32.xlu0 %v920, 1
        %v928 = vpop.permute.xlu0 %927
        %929 = vrot.lane.b32.xlu0 %v921, 1
        %v930 = vpop.permute.xlu0 %929
        %vm931 = vcmask 7168
        %v932 = vsel %vm931, %v926, %v928
        %v933 = vsel %vm931, %v928, %v930
        %936 = vst [vmem:[#allocation2 + $0x30] sm:$0xff] %v932
        %937 = vst [vmem:[#allocation2 + $0x38] sm:$0xff] %v933
        %v938 = vld [vmem:[#allocation3 + $0x8] sm:$0xff]
        %v939 = vld [vmem:[#allocation3 + $0x10] sm:$0xff]
        %s940 = scalar_lea.vmem %s4, 4
        %v941 = vld [vmem:[%s940] ss:$8 sm:$0x3]
        %v943 = vlaneseq
        %v944 = vshrl.u32 %v943, 7
        %v945 = vsub.s32 0, %v944
        %v946 = vrot.slane %v941, %v945
        %v947 = vlaneseq
        %v948 = vshrl.u32 %v947, 7
        %v949 = vsub.s32 1, %v948
        %v950 = vrot.slane %v941, %v949
        %v953 = vmul.f32 %v938, %v946
        %v954 = vmul.f32 %v939, %v950
        %955 = vst [vmem:[#allocation2 + $0x40] sm:$0xff] %v953
        %956 = vst [vmem:[#allocation2 + $0x48] sm:$0xff] %v954
        %v957 = vld [vmem:[#allocation3 + $0x8] sm:$0xff]
        %v958 = vld [vmem:[#allocation3 + $0x10] sm:$0xff]
        %v959 = vld [vmem:[#allocation3 + $0x18] sm:$0xff]
        %s960 = scalar_lea.vmem %s4, 5
        %v961 = vld [vmem:[%s960] ss:$8 sm:$0x3]
        %v963 = vlaneseq
        %v964 = vshrl.u32 %v963, 7
        %v965 = vsub.s32 0, %v964
        %v966 = vrot.slane %v961, %v965
        %v967 = vlaneseq
        %v968 = vshrl.u32 %v967, 7
        %v969 = vsub.s32 1, %v968
        %v970 = vrot.slane %v961, %v969
        %971 = vrot.lane.b32.xlu0 %v966, 1
        %v972 = vpop.permute.xlu0 %971
        %973 = vrot.lane.b32.xlu0 %v970, 1
        %v974 = vpop.permute.xlu0 %973
        %v975 = vsel %vm931, %v972, %v974
        %v979 = vmul.f32 %v957, %v972
        %v980 = vmul.f32 %v958, %v975
        %v981 = vmul.f32 %v959, %v974
        %985 = vrot.lane.b32.xlu0 %v979, 127
        %v986 = vpop.permute.xlu0 %985
        %987 = vrot.lane.b32.xlu0 %v980, 127
        %v988 = vpop.permute.xlu0 %987
        %989 = vrot.lane.b32.xlu0 %v981, 127
        %v990 = vpop.permute.xlu0 %989
        %v991 = vsel %vm914, %v986, %v988
        %v992 = vsel %vm914, %v988, %v990
        %995 = vst [vmem:[#allocation2 + $0x50] sm:$0xff] %v991
        %996 = vst [vmem:[#allocation2 + $0x58] sm:$0xff] %v992
        %v997 = vld [vmem:[#allocation3 + $0x8] sm:$0xff]
        %v998 = vld [vmem:[#allocation3 + $0x10] sm:$0xff]
        %v999 = vld [vmem:[#allocation3 + $0x18] sm:$0xff]
        %s1000 = scalar_lea.vmem %s4, 6
        %v1001 = vld [vmem:[%s1000] ss:$8 sm:$0x3]
        %v1003 = vlaneseq
        %v1004 = vshrl.u32 %v1003, 7
        %v1005 = vsub.s32 0, %v1004
        %v1006 = vrot.slane %v1001, %v1005
        %v1007 = vlaneseq
        %v1008 = vshrl.u32 %v1007, 7
        %v1009 = vsub.s32 1, %v1008
        %v1010 = vrot.slane %v1001, %v1009
        %1011 = vrot.lane.b32.xlu0 %v1006, 15
        %v1012 = vpop.permute.xlu0 %1011
        %1013 = vrot.lane.b32.xlu0 %v1010, 15
        %v1014 = vpop.permute.xlu0 %1013
        %v1015 = vsel %vm889, %v1012, %v1014
        %v1019 = vmul.f32 %v997, %v1012
        %v1020 = vmul.f32 %v998, %v1015
        %v1021 = vmul.f32 %v999, %v1014
        %1025 = vrot.lane.b32.xlu0 %v1019, 113
        %v1026 = vpop.permute.xlu0 %1025
        %1027 = vrot.lane.b32.xlu0 %v1020, 113
        %v1028 = vpop.permute.xlu0 %1027
        %1029 = vrot.lane.b32.xlu0 %v1021, 113
        %v1030 = vpop.permute.xlu0 %1029
        %v1031 = vsel %vm872, %v1026, %v1028
        %v1032 = vsel %vm872, %v1028, %v1030
        %1035 = vst [vmem:[#allocation2 + $0x60] sm:$0xff] %v1031
        %1036 = vst [vmem:[#allocation2 + $0x68] sm:$0xff] %v1032
        %v1037 = vld [vmem:[#allocation3 + $0x8] sm:$0xff]
        %v1038 = vld [vmem:[#allocation3 + $0x10] sm:$0xff]
        %v1039 = vld [vmem:[#allocation3 + $0x18] sm:$0xff]
        %s1040 = scalar_lea.vmem %s4, 7
        %v1041 = vld [vmem:[%s1040] ss:$8 sm:$0x3]
        %v1043 = vlaneseq
        %v1044 = vshrl.u32 %v1043, 7
        %v1045 = vsub.s32 0, %v1044
        %v1046 = vrot.slane %v1041, %v1045
        %v1047 = vlaneseq
        %v1048 = vshrl.u32 %v1047, 7
        %v1049 = vsub.s32 1, %v1048
        %v1050 = vrot.slane %v1041, %v1049
        %1051 = vrot.lane.b32.xlu0 %v1046, 16
        %v1052 = vpop.permute.xlu0 %1051
        %1053 = vrot.lane.b32.xlu0 %v1050, 16
        %v1054 = vpop.permute.xlu0 %1053
        %v1055 = vsel %vm847, %v1052, %v1054
        %v1059 = vmul.f32 %v1037, %v1052
        %v1060 = vmul.f32 %v1038, %v1055
        %v1061 = vmul.f32 %v1039, %v1054
        %1065 = vrot.lane.b32.xlu0 %v1059, 112
        %v1066 = vpop.permute.xlu0 %1065
        %1067 = vrot.lane.b32.xlu0 %v1060, 112
        %v1068 = vpop.permute.xlu0 %1067
        %1069 = vrot.lane.b32.xlu0 %v1061, 112
        %v1070 = vpop.permute.xlu0 %1069
        %v1071 = vsel %vm830, %v1066, %v1068
        %v1072 = vsel %vm830, %v1068, %v1070
        %1075 = vst [vmem:[#allocation2 + $0x70] sm:$0xff] %v1071
        %1076 = vst [vmem:[#allocation2 + $0x78] sm:$0xff] %v1072
        %v1077 = vld [vmem:[#allocation3 + $0x8] sm:$0xff]
        %v1078 = vld [vmem:[#allocation3 + $0x10] sm:$0xff]
        %v1079 = vld [vmem:[#allocation3 + $0x18] sm:$0xff]
        %s1080 = scalar_lea.vmem %s4, 16
        %v1081 = vld [vmem:[%s1080] ss:$8 sm:$0x3]
        %v1083 = vlaneseq
        %v1084 = vshrl.u32 %v1083, 7
        %v1085 = vsub.s32 0, %v1084
        %v1086 = vrot.slane %v1081, %v1085
        %v1087 = vlaneseq
        %v1088 = vshrl.u32 %v1087, 7
        %v1089 = vsub.s32 1, %v1088
        %v1090 = vrot.slane %v1081, %v1089
        %1091 = vrot.lane.b32.xlu0 %v1086, 17
        %v1092 = vpop.permute.xlu0 %1091
        %1093 = vrot.lane.b32.xlu0 %v1090, 17
        %v1094 = vpop.permute.xlu0 %1093
        %v1095 = vsel %vm805, %v1092, %v1094
        %v1099 = vmul.f32 %v1077, %v1092
        %v1100 = vmul.f32 %v1078, %v1095
        %v1101 = vmul.f32 %v1079, %v1094
        %1105 = vrot.lane.b32.xlu0 %v1099, 111
        %v1106 = vpop.permute.xlu0 %1105
        %1107 = vrot.lane.b32.xlu0 %v1100, 111
        %v1108 = vpop.permute.xlu0 %1107
        %1109 = vrot.lane.b32.xlu0 %v1101, 111
        %v1110 = vpop.permute.xlu0 %1109
        %v1111 = vsel %vm788, %v1106, %v1108
        %v1112 = vsel %vm788, %v1108, %v1110
        %1115 = vst [vmem:[#allocation2 + $0x80] sm:$0xff] %v1111
        %1116 = vst [vmem:[#allocation2 + $0x88] sm:$0xff] %v1112
        %v1117 = vld [vmem:[%s1] sm:$0xff]
        %v1118 = vld [vmem:[#allocation2] sm:$0xff]
        %v1119 = vld [vmem:[#allocation2 + $0x8] sm:$0xff]
        %v1120 = vld [vmem:[#allocation2 + $0x10] sm:$0xff]
        %v1121 = vld [vmem:[#allocation2 + $0x18] sm:$0xff]
        %v1122 = vld [vmem:[#allocation2 + $0x20] sm:$0xff]
        %v1123 = vld [vmem:[#allocation2 + $0x28] sm:$0xff]
        %v1124 = vld [vmem:[#allocation2 + $0x30] sm:$0xff]
        %v1125 = vld [vmem:[#allocation2 + $0x38] sm:$0xff]
        %v1126 = vld [vmem:[#allocation2 + $0x40] sm:$0xff]
        %v1127 = vld [vmem:[#allocation2 + $0x48] sm:$0xff]
        %v1128 = vld [vmem:[#allocation2 + $0x50] sm:$0xff]
        %v1129 = vld [vmem:[#allocation2 + $0x58] sm:$0xff]
        %v1130 = vld [vmem:[#allocation2 + $0x60] sm:$0xff]
        %v1131 = vld [vmem:[#allocation2 + $0x68] sm:$0xff]
        %v1132 = vld [vmem:[#allocation2 + $0x70] sm:$0xff]
        %v1133 = vld [vmem:[#allocation2 + $0x78] sm:$0xff]
        %v1134 = vld [vmem:[#allocation2 + $0x80] sm:$0xff]
        %v1135 = vld [vmem:[#allocation2 + $0x88] sm:$0xff]
        %vm1136 = vcmask 588800
        %v1138 = vsel %vm1136, %v1117, 0
        %1140 = vmatprep.subr.mxu0 %v1119
        %1141 = vmatpush1.msra.mxu0 %v1118
        %1142 = vmatprep.subr.mxu0 %v1121
        %1143 = vmatpush1.msra.mxu0 %v1120
        %1144 = vmatprep.subr.mxu0 %v1123
        %1145 = vmatpush1.msra.mxu0 %v1122
        %1146 = vmatprep.subr.mxu0 %v1125
        %1147 = vmatpush1.msra.mxu0 %v1124
        %1148 = vmatprep.subr.mxu0 %v1127
        %1149 = vmatpush1.msra.mxu0 %v1126
        %1150 = vmatprep.subr.mxu0 %v1129
        %1151 = vmatpush1.msra.mxu0 %v1128
        %1152 = vmatprep.subr.mxu0 %v1131
        %1153 = vmatpush1.msra.mxu0 %v1130
        %1154 = vmatprep.subr.mxu0 %v1133
        %1155 = vmatpush1.msra.mxu0 %v1132
        %1156 = vmatprep.subr.mxu0 %v1135
        %1157 = vmatpush1.msra.mxu0 %v1134
        %1158 = vmatprep.subr.mxu0 0.0
        %1159 = vmatpush1.msra.mxu0 0.0
        %1160 = vmatprep.subr.mxu0 0.0
        %1161 = vmatpush1.msra.mxu0 0.0
        %1162 = vmatprep.subr.mxu0 0.0
        %1163 = vmatpush1.msra.mxu0 0.0
        %1164 = vmatprep.subr.mxu0 0.0
        %1165 = vmatpush1.msra.mxu0 0.0
        %1166 = vmatprep.subr.mxu0 0.0
        %1167 = vmatpush1.msra.mxu0 0.0
        %1168 = vmatprep.subr.mxu0 0.0
        %1169 = vmatpush1.msra.mxu0 0.0
        %1170 = vmatprep.subr.mxu0 0.0
        %1171 = vmatpush1.msra.mxu0 0.0
        %1172 = vmatprep.subr.mxu0 0.0
        %1173 = vmatpush1.msra.mxu0 0.0
        %1174 = vmatprep.subr.mxu0 0.0
        %1175 = vmatpush1.msra.mxu0 0.0
        %1176 = vmatprep.subr.mxu0 0.0
        %1177 = vmatpush1.msra.mxu0 0.0
        %1178 = vmatprep.subr.mxu0 0.0
        %1179 = vmatpush1.msra.mxu0 0.0
        %1180 = vmatprep.subr.mxu0 0.0
        %1181 = vmatpush1.msra.mxu0 0.0
        %1182 = vmatprep.subr.mxu0 0.0
        %1183 = vmatpush1.msra.mxu0 0.0
        %1184 = vmatprep.subr.mxu0 0.0
        %1185 = vmatpush1.msra.mxu0 0.0
        %1186 = vmatprep.subr.mxu0 0.0
        %1187 = vmatpush1.msra.mxu0 0.0
        %1188 = vmatprep.subr.mxu0 0.0
        %1189 = vmatpush1.msra.mxu0 0.0
        %1190 = vmatprep.subr.mxu0 0.0
        %1191 = vmatpush1.msra.mxu0 0.0
        %1192 = vmatprep.subr.mxu0 0.0
        %1193 = vmatpush1.msra.mxu0 0.0
        %1194 = vmatprep.subr.mxu0 0.0
        %1195 = vmatpush1.msra.mxu0 0.0
        %1196 = vmatprep.subr.mxu0 0.0
        %1197 = vmatpush1.msra.mxu0 0.0
        %1198 = vmatprep.subr.mxu0 0.0
        %1199 = vmatpush1.msra.mxu0 0.0
        %1200 = vmatprep.subr.mxu0 0.0
        %1201 = vmatpush1.msra.mxu0 0.0
        %1202 = vmatprep.subr.mxu0 0.0
        %1203 = vmatpush1.msra.mxu0 0.0
        %1204 = vmatprep.mubr.f32.mxu0 0.0
        %1205 = vmatmul.mubr.f32.gmra.mrb[0].mxu0 %v1138
        %v1206 = vpop.f32.mrb[0].mxu0
        %v1207 = vadd.f32 0.0, %v1206
        %v1208 = vpop.f32.mrb[0].mxu0
        %v1209 = vadd.f32 0.0, %v1208
        %1210 = vdwg.mxu0
        %v1211 = vld [vmem:[%s2] sm:$0xff]
        %1213 = vset.pattern.permute.xlu0 0
        %1214 = vperm.xlu0 %1213, %v1211
        %v1215 = vpop.permute.xlu0 %1214
        %v1217 = vmul.f32 %v1207, %v1215
        %v1218 = vmul.f32 %v1209, %v1215
        %v1219 = vld [vmem:[%s3] sm:$0xff]
        %1221 = vset.pattern.permute.xlu0 0
        %1222 = vperm.xlu0 %1221, %v1219
        %v1223 = vpop.permute.xlu0 %1222
        %v1225 = vadd.f32 %v1217, %v1223
        %v1226 = vadd.f32 %v1218, %v1223
        %v1227 = vmax.f32 %v1225, 0.0
        %v1228 = vmax.f32 %v1226, 0.0
        %1229 = vst [vmem:[#allocation3] sm:$0xff] 0.0
        %1230 = vst [vmem:[#allocation3 + $0x8] sm:$0xff] 0.0
        %1231 = vst [vmem:[#allocation3 + $0x10] sm:$0xff] 0.0
        %1232 = vst [vmem:[#allocation3 + $0x18] sm:$0xff] 0.0
        %1233 = vst [vmem:[#allocation3 + $0x8] sm:$0xff] %v1227
        %1234 = vst [vmem:[#allocation3 + $0x10] sm:$0xff] %v1228
        %v1235 = vld [vmem:[#allocation3] sm:$0xff]
        %v1236 = vld [vmem:[#allocation3 + $0x8] sm:$0xff]
        %v1237 = vld [vmem:[#allocation3 + $0x10] sm:$0xff]
        %v1238 = vld [vmem:[%s8] ss:$8 sm:$0x3]
        %v1240 = vlaneseq
        %v1241 = vshrl.u32 %v1240, 7
        %v1242 = vsub.s32 0, %v1241
        %v1243 = vrot.slane %v1238, %v1242
        %v1244 = vlaneseq
        %v1245 = vshrl.u32 %v1244, 7
        %v1246 = vsub.s32 1, %v1245
        %v1247 = vrot.slane %v1238, %v1246
        %1248 = vrot.lane.b32.xlu0 %v1243, 111
        %v1249 = vpop.permute.xlu0 %1248
        %1250 = vrot.lane.b32.xlu0 %v1247, 111
        %v1251 = vpop.permute.xlu0 %1250
        %v1252 = vsel %vm788, %v1249, %v1251
        %v1256 = vmul.f32 %v1235, %v1249
        %v1257 = vmul.f32 %v1236, %v1252
        %v1258 = vmul.f32 %v1237, %v1251
        %1262 = vrot.lane.b32.xlu0 %v1256, 17
        %v1263 = vpop.permute.xlu0 %1262
        %1264 = vrot.lane.b32.xlu0 %v1257, 17
        %v1265 = vpop.permute.xlu0 %1264
        %1266 = vrot.lane.b32.xlu0 %v1258, 17
        %v1267 = vpop.permute.xlu0 %1266
        %v1268 = vsel %vm805, %v1263, %v1265
        %v1269 = vsel %vm805, %v1265, %v1267
        %1272 = vst [vmem:[#allocation2] sm:$0xff] %v1268
        %1273 = vst [vmem:[#allocation2 + $0x8] sm:$0xff] %v1269
        %v1274 = vld [vmem:[#allocation3] sm:$0xff]
        %v1275 = vld [vmem:[#allocation3 + $0x8] sm:$0xff]
        %v1276 = vld [vmem:[#allocation3 + $0x10] sm:$0xff]
        %s1277 = scalar_lea.vmem %s8, 1
        %v1278 = vld [vmem:[%s1277] ss:$8 sm:$0x3]
        %v1280 = vlaneseq
        %v1281 = vshrl.u32 %v1280, 7
        %v1282 = vsub.s32 0, %v1281
        %v1283 = vrot.slane %v1278, %v1282
        %v1284 = vlaneseq
        %v1285 = vshrl.u32 %v1284, 7
        %v1286 = vsub.s32 1, %v1285
        %v1287 = vrot.slane %v1278, %v1286
        %1288 = vrot.lane.b32.xlu0 %v1283, 112
        %v1289 = vpop.permute.xlu0 %1288
        %1290 = vrot.lane.b32.xlu0 %v1287, 112
        %v1291 = vpop.permute.xlu0 %1290
        %v1292 = vsel %vm830, %v1289, %v1291
        %v1296 = vmul.f32 %v1274, %v1289
        %v1297 = vmul.f32 %v1275, %v1292
        %v1298 = vmul.f32 %v1276, %v1291
        %1302 = vrot.lane.b32.xlu0 %v1296, 16
        %v1303 = vpop.permute.xlu0 %1302
        %1304 = vrot.lane.b32.xlu0 %v1297, 16
        %v1305 = vpop.permute.xlu0 %1304
        %1306 = vrot.lane.b32.xlu0 %v1298, 16
        %v1307 = vpop.permute.xlu0 %1306
        %v1308 = vsel %vm847, %v1303, %v1305
        %v1309 = vsel %vm847, %v1305, %v1307
        %1312 = vst [vmem:[#allocation2 + $0x10] sm:$0xff] %v1308
        %1313 = vst [vmem:[#allocation2 + $0x18] sm:$0xff] %v1309
        %v1314 = vld [vmem:[#allocation3] sm:$0xff]
        %v1315 = vld [vmem:[#allocation3 + $0x8] sm:$0xff]
        %v1316 = vld [vmem:[#allocation3 + $0x10] sm:$0xff]
        %s1317 = scalar_lea.vmem %s8, 2
        %v1318 = vld [vmem:[%s1317] ss:$8 sm:$0x3]
        %v1320 = vlaneseq
        %v1321 = vshrl.u32 %v1320, 7
        %v1322 = vsub.s32 0, %v1321
        %v1323 = vrot.slane %v1318, %v1322
        %v1324 = vlaneseq
        %v1325 = vshrl.u32 %v1324, 7
        %v1326 = vsub.s32 1, %v1325
        %v1327 = vrot.slane %v1318, %v1326
        %1328 = vrot.lane.b32.xlu0 %v1323, 113
        %v1329 = vpop.permute.xlu0 %1328
        %1330 = vrot.lane.b32.xlu0 %v1327, 113
        %v1331 = vpop.permute.xlu0 %1330
        %v1332 = vsel %vm872, %v1329, %v1331
        %v1336 = vmul.f32 %v1314, %v1329
        %v1337 = vmul.f32 %v1315, %v1332
        %v1338 = vmul.f32 %v1316, %v1331
        %1342 = vrot.lane.b32.xlu0 %v1336, 15
        %v1343 = vpop.permute.xlu0 %1342
        %1344 = vrot.lane.b32.xlu0 %v1337, 15
        %v1345 = vpop.permute.xlu0 %1344
        %1346 = vrot.lane.b32.xlu0 %v1338, 15
        %v1347 = vpop.permute.xlu0 %1346
        %v1348 = vsel %vm889, %v1343, %v1345
        %v1349 = vsel %vm889, %v1345, %v1347
        %1352 = vst [vmem:[#allocation2 + $0x20] sm:$0xff] %v1348
        %1353 = vst [vmem:[#allocation2 + $0x28] sm:$0xff] %v1349
        %v1354 = vld [vmem:[#allocation3] sm:$0xff]
        %v1355 = vld [vmem:[#allocation3 + $0x8] sm:$0xff]
        %v1356 = vld [vmem:[#allocation3 + $0x10] sm:$0xff]
        %s1357 = scalar_lea.vmem %s8, 3
        %v1358 = vld [vmem:[%s1357] ss:$8 sm:$0x3]
        %v1360 = vlaneseq
        %v1361 = vshrl.u32 %v1360, 7
        %v1362 = vsub.s32 0, %v1361
        %v1363 = vrot.slane %v1358, %v1362
        %v1364 = vlaneseq
        %v1365 = vshrl.u32 %v1364, 7
        %v1366 = vsub.s32 1, %v1365
        %v1367 = vrot.slane %v1358, %v1366
        %1368 = vrot.lane.b32.xlu0 %v1363, 127
        %v1369 = vpop.permute.xlu0 %1368
        %1370 = vrot.lane.b32.xlu0 %v1367, 127
        %v1371 = vpop.permute.xlu0 %1370
        %v1372 = vsel %vm914, %v1369, %v1371
        %v1376 = vmul.f32 %v1354, %v1369
        %v1377 = vmul.f32 %v1355, %v1372
        %v1378 = vmul.f32 %v1356, %v1371
        %1382 = vrot.lane.b32.xlu0 %v1376, 1
        %v1383 = vpop.permute.xlu0 %1382
        %1384 = vrot.lane.b32.xlu0 %v1377, 1
        %v1385 = vpop.permute.xlu0 %1384
        %1386 = vrot.lane.b32.xlu0 %v1378, 1
        %v1387 = vpop.permute.xlu0 %1386
        %v1388 = vsel %vm931, %v1383, %v1385
        %v1389 = vsel %vm931, %v1385, %v1387
        %1392 = vst [vmem:[#allocation2 + $0x30] sm:$0xff] %v1388
        %1393 = vst [vmem:[#allocation2 + $0x38] sm:$0xff] %v1389
        %v1394 = vld [vmem:[#allocation3 + $0x8] sm:$0xff]
        %v1395 = vld [vmem:[#allocation3 + $0x10] sm:$0xff]
        %s1396 = scalar_lea.vmem %s8, 4
        %v1397 = vld [vmem:[%s1396] ss:$8 sm:$0x3]
        %v1399 = vlaneseq
        %v1400 = vshrl.u32 %v1399, 7
        %v1401 = vsub.s32 0, %v1400
        %v1402 = vrot.slane %v1397, %v1401
        %v1403 = vlaneseq
        %v1404 = vshrl.u32 %v1403, 7
        %v1405 = vsub.s32 1, %v1404
        %v1406 = vrot.slane %v1397, %v1405
        %v1409 = vmul.f32 %v1394, %v1402
        %v1410 = vmul.f32 %v1395, %v1406
        %1411 = vst [vmem:[#allocation2 + $0x40] sm:$0xff] %v1409
        %1412 = vst [vmem:[#allocation2 + $0x48] sm:$0xff] %v1410
        %v1413 = vld [vmem:[#allocation3 + $0x8] sm:$0xff]
        %v1414 = vld [vmem:[#allocation3 + $0x10] sm:$0xff]
        %v1415 = vld [vmem:[#allocation3 + $0x18] sm:$0xff]
        %s1416 = scalar_lea.vmem %s8, 5
        %v1417 = vld [vmem:[%s1416] ss:$8 sm:$0x3]
        %v1419 = vlaneseq
        %v1420 = vshrl.u32 %v1419, 7
        %v1421 = vsub.s32 0, %v1420
        %v1422 = vrot.slane %v1417, %v1421
        %v1423 = vlaneseq
        %v1424 = vshrl.u32 %v1423, 7
        %v1425 = vsub.s32 1, %v1424
        %v1426 = vrot.slane %v1417, %v1425
        %1427 = vrot.lane.b32.xlu0 %v1422, 1
        %v1428 = vpop.permute.xlu0 %1427
        %1429 = vrot.lane.b32.xlu0 %v1426, 1
        %v1430 = vpop.permute.xlu0 %1429
        %v1431 = vsel %vm931, %v1428, %v1430
        %v1435 = vmul.f32 %v1413, %v1428
        %v1436 = vmul.f32 %v1414, %v1431
        %v1437 = vmul.f32 %v1415, %v1430
        %1441 = vrot.lane.b32.xlu0 %v1435, 127
        %v1442 = vpop.permute.xlu0 %1441
        %1443 = vrot.lane.b32.xlu0 %v1436, 127
        %v1444 = vpop.permute.xlu0 %1443
        %1445 = vrot.lane.b32.xlu0 %v1437, 127
        %v1446 = vpop.permute.xlu0 %1445
        %v1447 = vsel %vm914, %v1442, %v1444
        %v1448 = vsel %vm914, %v1444, %v1446
        %1451 = vst [vmem:[#allocation2 + $0x50] sm:$0xff] %v1447
        %1452 = vst [vmem:[#allocation2 + $0x58] sm:$0xff] %v1448
        %v1453 = vld [vmem:[#allocation3 + $0x8] sm:$0xff]
        %v1454 = vld [vmem:[#allocation3 + $0x10] sm:$0xff]
        %v1455 = vld [vmem:[#allocation3 + $0x18] sm:$0xff]
        %s1456 = scalar_lea.vmem %s8, 6
        %v1457 = vld [vmem:[%s1456] ss:$8 sm:$0x3]
        %v1459 = vlaneseq
        %v1460 = vshrl.u32 %v1459, 7
        %v1461 = vsub.s32 0, %v1460
        %v1462 = vrot.slane %v1457, %v1461
        %v1463 = vlaneseq
        %v1464 = vshrl.u32 %v1463, 7
        %v1465 = vsub.s32 1, %v1464
        %v1466 = vrot.slane %v1457, %v1465
        %1467 = vrot.lane.b32.xlu0 %v1462, 15
        %v1468 = vpop.permute.xlu0 %1467
        %1469 = vrot.lane.b32.xlu0 %v1466, 15
        %v1470 = vpop.permute.xlu0 %1469
        %v1471 = vsel %vm889, %v1468, %v1470
        %v1475 = vmul.f32 %v1453, %v1468
        %v1476 = vmul.f32 %v1454, %v1471
        %v1477 = vmul.f32 %v1455, %v1470
        %1481 = vrot.lane.b32.xlu0 %v1475, 113
        %v1482 = vpop.permute.xlu0 %1481
        %1483 = vrot.lane.b32.xlu0 %v1476, 113
        %v1484 = vpop.permute.xlu0 %1483
        %1485 = vrot.lane.b32.xlu0 %v1477, 113
        %v1486 = vpop.permute.xlu0 %1485
        %v1487 = vsel %vm872, %v1482, %v1484
        %v1488 = vsel %vm872, %v1484, %v1486
        %1491 = vst [vmem:[#allocation2 + $0x60] sm:$0xff] %v1487
        %1492 = vst [vmem:[#allocation2 + $0x68] sm:$0xff] %v1488
        %v1493 = vld [vmem:[#allocation3 + $0x8] sm:$0xff]
        %v1494 = vld [vmem:[#allocation3 + $0x10] sm:$0xff]
        %v1495 = vld [vmem:[#allocation3 + $0x18] sm:$0xff]
        %s1496 = scalar_lea.vmem %s8, 7
        %v1497 = vld [vmem:[%s1496] ss:$8 sm:$0x3]
        %v1499 = vlaneseq
        %v1500 = vshrl.u32 %v1499, 7
        %v1501 = vsub.s32 0, %v1500
        %v1502 = vrot.slane %v1497, %v1501
        %v1503 = vlaneseq
        %v1504 = vshrl.u32 %v1503, 7
        %v1505 = vsub.s32 1, %v1504
        %v1506 = vrot.slane %v1497, %v1505
        %1507 = vrot.lane.b32.xlu0 %v1502, 16
        %v1508 = vpop.permute.xlu0 %1507
        %1509 = vrot.lane.b32.xlu0 %v1506, 16
        %v1510 = vpop.permute.xlu0 %1509
        %v1511 = vsel %vm847, %v1508, %v1510
        %v1515 = vmul.f32 %v1493, %v1508
        %v1516 = vmul.f32 %v1494, %v1511
        %v1517 = vmul.f32 %v1495, %v1510
        %1521 = vrot.lane.b32.xlu0 %v1515, 112
        %v1522 = vpop.permute.xlu0 %1521
        %1523 = vrot.lane.b32.xlu0 %v1516, 112
        %v1524 = vpop.permute.xlu0 %1523
        %1525 = vrot.lane.b32.xlu0 %v1517, 112
        %v1526 = vpop.permute.xlu0 %1525
        %v1527 = vsel %vm830, %v1522, %v1524
        %v1528 = vsel %vm830, %v1524, %v1526
        %1531 = vst [vmem:[#allocation2 + $0x70] sm:$0xff] %v1527
        %1532 = vst [vmem:[#allocation2 + $0x78] sm:$0xff] %v1528
        %v1533 = vld [vmem:[#allocation3 + $0x8] sm:$0xff]
        %v1534 = vld [vmem:[#allocation3 + $0x10] sm:$0xff]
        %v1535 = vld [vmem:[#allocation3 + $0x18] sm:$0xff]
        %s1536 = scalar_lea.vmem %s8, 16
        %v1537 = vld [vmem:[%s1536] ss:$8 sm:$0x3]
        %v1539 = vlaneseq
        %v1540 = vshrl.u32 %v1539, 7
        %v1541 = vsub.s32 0, %v1540
        %v1542 = vrot.slane %v1537, %v1541
        %v1543 = vlaneseq
        %v1544 = vshrl.u32 %v1543, 7
        %v1545 = vsub.s32 1, %v1544
        %v1546 = vrot.slane %v1537, %v1545
        %1547 = vrot.lane.b32.xlu0 %v1542, 17
        %v1548 = vpop.permute.xlu0 %1547
        %1549 = vrot.lane.b32.xlu0 %v1546, 17
        %v1550 = vpop.permute.xlu0 %1549
        %v1551 = vsel %vm805, %v1548, %v1550
        %v1555 = vmul.f32 %v1533, %v1548
        %v1556 = vmul.f32 %v1534, %v1551
        %v1557 = vmul.f32 %v1535, %v1550
        %1561 = vrot.lane.b32.xlu0 %v1555, 111
        %v1562 = vpop.permute.xlu0 %1561
        %1563 = vrot.lane.b32.xlu0 %v1556, 111
        %v1564 = vpop.permute.xlu0 %1563
        %1565 = vrot.lane.b32.xlu0 %v1557, 111
        %v1566 = vpop.permute.xlu0 %1565
        %v1567 = vsel %vm788, %v1562, %v1564
        %v1568 = vsel %vm788, %v1564, %v1566
        %1571 = vst [vmem:[#allocation2 + $0x80] sm:$0xff] %v1567
        %1572 = vst [vmem:[#allocation2 + $0x88] sm:$0xff] %v1568
        %v1573 = vld [vmem:[%s5] sm:$0xff]
        %v1574 = vld [vmem:[#allocation2] sm:$0xff]
        %v1575 = vld [vmem:[#allocation2 + $0x8] sm:$0xff]
        %v1576 = vld [vmem:[#allocation2 + $0x10] sm:$0xff]
        %v1577 = vld [vmem:[#allocation2 + $0x18] sm:$0xff]
        %v1578 = vld [vmem:[#allocation2 + $0x20] sm:$0xff]
        %v1579 = vld [vmem:[#allocation2 + $0x28] sm:$0xff]
        %v1580 = vld [vmem:[#allocation2 + $0x30] sm:$0xff]
        %v1581 = vld [vmem:[#allocation2 + $0x38] sm:$0xff]
        %v1582 = vld [vmem:[#allocation2 + $0x40] sm:$0xff]
        %v1583 = vld [vmem:[#allocation2 + $0x48] sm:$0xff]
        %v1584 = vld [vmem:[#allocation2 + $0x50] sm:$0xff]
        %v1585 = vld [vmem:[#allocation2 + $0x58] sm:$0xff]
        %v1586 = vld [vmem:[#allocation2 + $0x60] sm:$0xff]
        %v1587 = vld [vmem:[#allocation2 + $0x68] sm:$0xff]
        %v1588 = vld [vmem:[#allocation2 + $0x70] sm:$0xff]
        %v1589 = vld [vmem:[#allocation2 + $0x78] sm:$0xff]
        %v1590 = vld [vmem:[#allocation2 + $0x80] sm:$0xff]
        %v1591 = vld [vmem:[#allocation2 + $0x88] sm:$0xff]
        %v1593 = vsel %vm1136, %v1573, 0
        %1595 = vmatprep.subr.mxu0 %v1575
        %1596 = vmatpush1.msra.mxu0 %v1574
        %1597 = vmatprep.subr.mxu0 %v1577
        %1598 = vmatpush1.msra.mxu0 %v1576
        %1599 = vmatprep.subr.mxu0 %v1579
        %1600 = vmatpush1.msra.mxu0 %v1578
        %1601 = vmatprep.subr.mxu0 %v1581
        %1602 = vmatpush1.msra.mxu0 %v1580
        %1603 = vmatprep.subr.mxu0 %v1583
        %1604 = vmatpush1.msra.mxu0 %v1582
        %1605 = vmatprep.subr.mxu0 %v1585
        %1606 = vmatpush1.msra.mxu0 %v1584
        %1607 = vmatprep.subr.mxu0 %v1587
        %1608 = vmatpush1.msra.mxu0 %v1586
        %1609 = vmatprep.subr.mxu0 %v1589
        %1610 = vmatpush1.msra.mxu0 %v1588
        %1611 = vmatprep.subr.mxu0 %v1591
        %1612 = vmatpush1.msra.mxu0 %v1590
        %1613 = vmatprep.subr.mxu0 0.0
        %1614 = vmatpush1.msra.mxu0 0.0
        %1615 = vmatprep.subr.mxu0 0.0
        %1616 = vmatpush1.msra.mxu0 0.0
        %1617 = vmatprep.subr.mxu0 0.0
        %1618 = vmatpush1.msra.mxu0 0.0
        %1619 = vmatprep.subr.mxu0 0.0
        %1620 = vmatpush1.msra.mxu0 0.0
        %1621 = vmatprep.subr.mxu0 0.0
        %1622 = vmatpush1.msra.mxu0 0.0
        %1623 = vmatprep.subr.mxu0 0.0
        %1624 = vmatpush1.msra.mxu0 0.0
        %1625 = vmatprep.subr.mxu0 0.0
        %1626 = vmatpush1.msra.mxu0 0.0
        %1627 = vmatprep.subr.mxu0 0.0
        %1628 = vmatpush1.msra.mxu0 0.0
        %1629 = vmatprep.subr.mxu0 0.0
        %1630 = vmatpush1.msra.mxu0 0.0
        %1631 = vmatprep.subr.mxu0 0.0
        %1632 = vmatpush1.msra.mxu0 0.0
        %1633 = vmatprep.subr.mxu0 0.0
        %1634 = vmatpush1.msra.mxu0 0.0
        %1635 = vmatprep.subr.mxu0 0.0
        %1636 = vmatpush1.msra.mxu0 0.0
        %1637 = vmatprep.subr.mxu0 0.0
        %1638 = vmatpush1.msra.mxu0 0.0
        %1639 = vmatprep.subr.mxu0 0.0
        %1640 = vmatpush1.msra.mxu0 0.0
        %1641 = vmatprep.subr.mxu0 0.0
        %1642 = vmatpush1.msra.mxu0 0.0
        %1643 = vmatprep.subr.mxu0 0.0
        %1644 = vmatpush1.msra.mxu0 0.0
        %1645 = vmatprep.subr.mxu0 0.0
        %1646 = vmatpush1.msra.mxu0 0.0
        %1647 = vmatprep.subr.mxu0 0.0
        %1648 = vmatpush1.msra.mxu0 0.0
        %1649 = vmatprep.subr.mxu0 0.0
        %1650 = vmatpush1.msra.mxu0 0.0
        %1651 = vmatprep.subr.mxu0 0.0
        %1652 = vmatpush1.msra.mxu0 0.0
        %1653 = vmatprep.subr.mxu0 0.0
        %1654 = vmatpush1.msra.mxu0 0.0
        %1655 = vmatprep.subr.mxu0 0.0
        %1656 = vmatpush1.msra.mxu0 0.0
        %1657 = vmatprep.subr.mxu0 0.0
        %1658 = vmatpush1.msra.mxu0 0.0
        %1659 = vmatprep.mubr.f32.mxu0 0.0
        %1660 = vmatmul.mubr.f32.gmra.mrb[0].mxu0 %v1593
        %v1661 = vpop.f32.mrb[0].mxu0
        %v1662 = vadd.f32 0.0, %v1661
        %v1663 = vpop.f32.mrb[0].mxu0
        %v1664 = vadd.f32 0.0, %v1663
        %1665 = vdwg.mxu0
        %v1666 = vld [vmem:[%s6] sm:$0xff]
        %1668 = vset.pattern.permute.xlu0 0
        %1669 = vperm.xlu0 %1668, %v1666
        %v1670 = vpop.permute.xlu0 %1669
        %v1672 = vmul.f32 %v1662, %v1670
        %v1673 = vmul.f32 %v1664, %v1670
        %v1674 = vld [vmem:[%s7] sm:$0xff]
        %1676 = vset.pattern.permute.xlu0 0
        %1677 = vperm.xlu0 %1676, %v1674
        %v1678 = vpop.permute.xlu0 %1677
        %v1680 = vadd.f32 %v1672, %v1678
        %v1681 = vadd.f32 %v1673, %v1678
        %v1682 = vmax.f32 %v1680, 0.0
        %v1683 = vmax.f32 %v1681, 0.0
        %v1684 = vld [vmem:[%s9] sm:$0xff]
        %v1685 = vld [vmem:[%s9 + $0x8] sm:$0xff]
        %vm1686 = vcmask 64512
        %v1688 = vsel %vm1686, %v1684, 0
        %v1691 = vsel %vm1686, %v1685, 0
        %1693 = vmatprep.subr.mxu0 %v1683
        %1694 = vmatpush1.msra.mxu0 %v1682
        %1695 = vmatprep.subr.mxu0 0.0
        %1696 = vmatpush1.msra.mxu0 0.0
        %1697 = vmatprep.subr.mxu0 0.0
        %1698 = vmatpush1.msra.mxu0 0.0
        %1699 = vmatprep.subr.mxu0 0.0
        %1700 = vmatpush1.msra.mxu0 0.0
        %1701 = vmatprep.subr.mxu0 0.0
        %1702 = vmatpush1.msra.mxu0 0.0
        %1703 = vmatprep.subr.mxu0 0.0
        %1704 = vmatpush1.msra.mxu0 0.0
        %1705 = vmatprep.subr.mxu0 0.0
        %1706 = vmatpush1.msra.mxu0 0.0
        %1707 = vmatprep.subr.mxu0 0.0
        %1708 = vmatpush1.msra.mxu0 0.0
        %1709 = vmatprep.subr.mxu0 0.0
        %1710 = vmatpush1.msra.mxu0 0.0
        %1711 = vmatprep.subr.mxu0 0.0
        %1712 = vmatpush1.msra.mxu0 0.0
        %1713 = vmatprep.subr.mxu0 0.0
        %1714 = vmatpush1.msra.mxu0 0.0
        %1715 = vmatprep.subr.mxu0 0.0
        %1716 = vmatpush1.msra.mxu0 0.0
        %1717 = vmatprep.subr.mxu0 0.0
        %1718 = vmatpush1.msra.mxu0 0.0
        %1719 = vmatprep.subr.mxu0 0.0
        %1720 = vmatpush1.msra.mxu0 0.0
        %1721 = vmatprep.subr.mxu0 0.0
        %1722 = vmatpush1.msra.mxu0 0.0
        %1723 = vmatprep.subr.mxu0 0.0
        %1724 = vmatpush1.msra.mxu0 0.0
        %1725 = vmatprep.subr.mxu0 0.0
        %1726 = vmatpush1.msra.mxu0 0.0
        %1727 = vmatprep.subr.mxu0 0.0
        %1728 = vmatpush1.msra.mxu0 0.0
        %1729 = vmatprep.subr.mxu0 0.0
        %1730 = vmatpush1.msra.mxu0 0.0
        %1731 = vmatprep.subr.mxu0 0.0
        %1732 = vmatpush1.msra.mxu0 0.0
        %1733 = vmatprep.subr.mxu0 0.0
        %1734 = vmatpush1.msra.mxu0 0.0
        %1735 = vmatprep.subr.mxu0 0.0
        %1736 = vmatpush1.msra.mxu0 0.0
        %1737 = vmatprep.subr.mxu0 0.0
        %1738 = vmatpush1.msra.mxu0 0.0
        %1739 = vmatprep.subr.mxu0 0.0
        %1740 = vmatpush1.msra.mxu0 0.0
        %1741 = vmatprep.subr.mxu0 0.0
        %1742 = vmatpush1.msra.mxu0 0.0
        %1743 = vmatprep.subr.mxu0 0.0
        %1744 = vmatpush1.msra.mxu0 0.0
        %1745 = vmatprep.subr.mxu0 0.0
        %1746 = vmatpush1.msra.mxu0 0.0
        %1747 = vmatprep.subr.mxu0 0.0
        %1748 = vmatpush1.msra.mxu0 0.0
        %1749 = vmatprep.subr.mxu0 0.0
        %1750 = vmatpush1.msra.mxu0 0.0
        %1751 = vmatprep.subr.mxu0 0.0
        %1752 = vmatpush1.msra.mxu0 0.0
        %1753 = vmatprep.subr.mxu0 0.0
        %1754 = vmatpush1.msra.mxu0 0.0
        %1755 = vmatprep.subr.mxu0 0.0
        %1756 = vmatpush1.msra.mxu0 0.0
        %1757 = vmatprep.mubr.f32.mxu0 0.0
        %1758 = vmatmul.mubr.f32.gmra.mrb[0].mxu0 %v1688
        %v1759 = vpop.f32.mrb[0].mxu0
        %v1760 = vadd.f32 0.0, %v1759
        %v1761 = vpop.f32.mrb[0].mxu0
        %v1762 = vadd.f32 0.0, %v1761
        %1763 = vmatprep.mubr.f32.mxu0 0.0
        %1764 = vmatmul.mubr.f32.gmra.mrb[0].mxu0 %v1691
        %v1765 = vpop.f32.mrb[0].mxu0
        %v1766 = vadd.f32 0.0, %v1765
        %v1767 = vpop.f32.mrb[0].mxu0
        %v1768 = vadd.f32 0.0, %v1767
        %1769 = vdwg.mxu0
        %v1770 = vld [vmem:[%s10] sm:$0xff]
        %v1771 = vld [vmem:[%s10 + $0x8] sm:$0xff]
        %1773 = vset.pattern.permute.xlu0 0
        %1774 = vperm.xlu0 %1773, %v1770
        %v1775 = vpop.permute.xlu0 %1774
        %1778 = vset.pattern.permute.xlu0 0
        %1779 = vperm.xlu0 %1778, %v1771
        %v1780 = vpop.permute.xlu0 %1779
        %v1782 = vmul.f32 %v1760, %v1775
        %v1783 = vmul.f32 %v1762, %v1775
        %v1784 = vmul.f32 %v1766, %v1780
        %v1785 = vmul.f32 %v1768, %v1780
        %v1786 = vld [vmem:[%s11] sm:$0xff]
        %v1787 = vld [vmem:[%s11 + $0x8] sm:$0xff]
        %1789 = vset.pattern.permute.xlu0 0
        %1790 = vperm.xlu0 %1789, %v1786
        %v1791 = vpop.permute.xlu0 %1790
        %1794 = vset.pattern.permute.xlu0 0
        %1795 = vperm.xlu0 %1794, %v1787
        %v1796 = vpop.permute.xlu0 %1795
        %v1798 = vadd.f32 %v1782, %v1791
        %v1799 = vadd.f32 %v1783, %v1791
        %v1800 = vadd.f32 %v1784, %v1796
        %v1801 = vadd.f32 %v1785, %v1796
        %v1802 = vmax.f32 %v1798, 0.0
        %v1803 = vmax.f32 %v1799, 0.0
        %v1804 = vmax.f32 %v1800, 0.0
        %v1805 = vmax.f32 %v1801, 0.0
        %1806 = vst [vmem:[%s757] sm:$0xff] %v1802
        %1807 = vst [vmem:[%s757 + $0x8] sm:$0xff] %v1803
        %1808 = vst [vmem:[%s757 + $0x10] sm:$0xff] %v1804
        %1809 = vst [vmem:[%s757 + $0x18] sm:$0xff] %v1805
        %1810 = vst [vmem:[#allocation3] sm:$0xff] 0.0
        %1811 = vst [vmem:[#allocation3 + $0x8] sm:$0xff] 0.0
        %1812 = vst [vmem:[#allocation3 + $0x10] sm:$0xff] 0.0
        %1813 = vst [vmem:[#allocation3 + $0x18] sm:$0xff] 0.0
        %1814 = vst [vmem:[#allocation3 + $0x8] sm:$0xff] %v1682
        %1815 = vst [vmem:[#allocation3 + $0x10] sm:$0xff] %v1683
        %v1816 = vld [vmem:[#allocation3] sm:$0xff]
        %v1817 = vld [vmem:[#allocation3 + $0x8] sm:$0xff]
        %v1818 = vld [vmem:[#allocation3 + $0x10] sm:$0xff]
        %v1819 = vld [vmem:[%s15] ss:$8 sm:$0x3]
        %v1821 = vlaneseq
        %v1822 = vshrl.u32 %v1821, 7
        %v1823 = vsub.s32 0, %v1822
        %v1824 = vrot.slane %v1819, %v1823
        %v1825 = vlaneseq
        %v1826 = vshrl.u32 %v1825, 7
        %v1827 = vsub.s32 1, %v1826
        %v1828 = vrot.slane %v1819, %v1827
        %1829 = vrot.lane.b32.xlu0 %v1824, 111
        %v1830 = vpop.permute.xlu0 %1829
        %1831 = vrot.lane.b32.xlu0 %v1828, 111
        %v1832 = vpop.permute.xlu0 %1831
        %v1833 = vsel %vm788, %v1830, %v1832
        %v1837 = vmul.f32 %v1816, %v1830
        %v1838 = vmul.f32 %v1817, %v1833
        %v1839 = vmul.f32 %v1818, %v1832
        %1843 = vrot.lane.b32.xlu0 %v1837, 17
        %v1844 = vpop.permute.xlu0 %1843
        %1845 = vrot.lane.b32.xlu0 %v1838, 17
        %v1846 = vpop.permute.xlu0 %1845
        %1847 = vrot.lane.b32.xlu0 %v1839, 17
        %v1848 = vpop.permute.xlu0 %1847
        %v1849 = vsel %vm805, %v1844, %v1846
        %v1850 = vsel %vm805, %v1846, %v1848
        %1853 = vst [vmem:[#allocation2] sm:$0xff] %v1849
        %1854 = vst [vmem:[#allocation2 + $0x8] sm:$0xff] %v1850
        %v1855 = vld [vmem:[#allocation3] sm:$0xff]
        %v1856 = vld [vmem:[#allocation3 + $0x8] sm:$0xff]
        %v1857 = vld [vmem:[#allocation3 + $0x10] sm:$0xff]
        %s1858 = scalar_lea.vmem %s15, 1
        %v1859 = vld [vmem:[%s1858] ss:$8 sm:$0x3]
        %v1861 = vlaneseq
        %v1862 = vshrl.u32 %v1861, 7
        %v1863 = vsub.s32 0, %v1862
        %v1864 = vrot.slane %v1859, %v1863
        %v1865 = vlaneseq
        %v1866 = vshrl.u32 %v1865, 7
        %v1867 = vsub.s32 1, %v1866
        %v1868 = vrot.slane %v1859, %v1867
        %1869 = vrot.lane.b32.xlu0 %v1864, 112
        %v1870 = vpop.permute.xlu0 %1869
        %1871 = vrot.lane.b32.xlu0 %v1868, 112
        %v1872 = vpop.permute.xlu0 %1871
        %v1873 = vsel %vm830, %v1870, %v1872
        %v1877 = vmul.f32 %v1855, %v1870
        %v1878 = vmul.f32 %v1856, %v1873
        %v1879 = vmul.f32 %v1857, %v1872
        %1883 = vrot.lane.b32.xlu0 %v1877, 16
        %v1884 = vpop.permute.xlu0 %1883
        %1885 = vrot.lane.b32.xlu0 %v1878, 16
        %v1886 = vpop.permute.xlu0 %1885
        %1887 = vrot.lane.b32.xlu0 %v1879, 16
        %v1888 = vpop.permute.xlu0 %1887
        %v1889 = vsel %vm847, %v1884, %v1886
        %v1890 = vsel %vm847, %v1886, %v1888
        %1893 = vst [vmem:[#allocation2 + $0x10] sm:$0xff] %v1889
        %1894 = vst [vmem:[#allocation2 + $0x18] sm:$0xff] %v1890
        %v1895 = vld [vmem:[#allocation3] sm:$0xff]
        %v1896 = vld [vmem:[#allocation3 + $0x8] sm:$0xff]
        %v1897 = vld [vmem:[#allocation3 + $0x10] sm:$0xff]
        %s1898 = scalar_lea.vmem %s15, 2
        %v1899 = vld [vmem:[%s1898] ss:$8 sm:$0x3]
        %v1901 = vlaneseq
        %v1902 = vshrl.u32 %v1901, 7
        %v1903 = vsub.s32 0, %v1902
        %v1904 = vrot.slane %v1899, %v1903
        %v1905 = vlaneseq
        %v1906 = vshrl.u32 %v1905, 7
        %v1907 = vsub.s32 1, %v1906
        %v1908 = vrot.slane %v1899, %v1907
        %1909 = vrot.lane.b32.xlu0 %v1904, 113
        %v1910 = vpop.permute.xlu0 %1909
        %1911 = vrot.lane.b32.xlu0 %v1908, 113
        %v1912 = vpop.permute.xlu0 %1911
        %v1913 = vsel %vm872, %v1910, %v1912
        %v1917 = vmul.f32 %v1895, %v1910
        %v1918 = vmul.f32 %v1896, %v1913
        %v1919 = vmul.f32 %v1897, %v1912
        %1923 = vrot.lane.b32.xlu0 %v1917, 15
        %v1924 = vpop.permute.xlu0 %1923
        %1925 = vrot.lane.b32.xlu0 %v1918, 15
        %v1926 = vpop.permute.xlu0 %1925
        %1927 = vrot.lane.b32.xlu0 %v1919, 15
        %v1928 = vpop.permute.xlu0 %1927
        %v1929 = vsel %vm889, %v1924, %v1926
        %v1930 = vsel %vm889, %v1926, %v1928
        %1933 = vst [vmem:[#allocation2 + $0x20] sm:$0xff] %v1929
        %1934 = vst [vmem:[#allocation2 + $0x28] sm:$0xff] %v1930
        %v1935 = vld [vmem:[#allocation3] sm:$0xff]
        %v1936 = vld [vmem:[#allocation3 + $0x8] sm:$0xff]
        %v1937 = vld [vmem:[#allocation3 + $0x10] sm:$0xff]
        %s1938 = scalar_lea.vmem %s15, 3
        %v1939 = vld [vmem:[%s1938] ss:$8 sm:$0x3]
        %v1941 = vlaneseq
        %v1942 = vshrl.u32 %v1941, 7
        %v1943 = vsub.s32 0, %v1942
        %v1944 = vrot.slane %v1939, %v1943
        %v1945 = vlaneseq
        %v1946 = vshrl.u32 %v1945, 7
        %v1947 = vsub.s32 1, %v1946
        %v1948 = vrot.slane %v1939, %v1947
        %1949 = vrot.lane.b32.xlu0 %v1944, 127
        %v1950 = vpop.permute.xlu0 %1949
        %1951 = vrot.lane.b32.xlu0 %v1948, 127
        %v1952 = vpop.permute.xlu0 %1951
        %v1953 = vsel %vm914, %v1950, %v1952
        %v1957 = vmul.f32 %v1935, %v1950
        %v1958 = vmul.f32 %v1936, %v1953
        %v1959 = vmul.f32 %v1937, %v1952
        %1963 = vrot.lane.b32.xlu0 %v1957, 1
        %v1964 = vpop.permute.xlu0 %1963
        %1965 = vrot.lane.b32.xlu0 %v1958, 1
        %v1966 = vpop.permute.xlu0 %1965
        %1967 = vrot.lane.b32.xlu0 %v1959, 1
        %v1968 = vpop.permute.xlu0 %1967
        %v1969 = vsel %vm931, %v1964, %v1966
        %v1970 = vsel %vm931, %v1966, %v1968
        %1973 = vst [vmem:[#allocation2 + $0x30] sm:$0xff] %v1969
        %1974 = vst [vmem:[#allocation2 + $0x38] sm:$0xff] %v1970
        %v1975 = vld [vmem:[#allocation3 + $0x8] sm:$0xff]
        %v1976 = vld [vmem:[#allocation3 + $0x10] sm:$0xff]
        %s1977 = scalar_lea.vmem %s15, 4
        %v1978 = vld [vmem:[%s1977] ss:$8 sm:$0x3]
        %v1980 = vlaneseq
        %v1981 = vshrl.u32 %v1980, 7
        %v1982 = vsub.s32 0, %v1981
        %v1983 = vrot.slane %v1978, %v1982
        %v1984 = vlaneseq
        %v1985 = vshrl.u32 %v1984, 7
        %v1986 = vsub.s32 1, %v1985
        %v1987 = vrot.slane %v1978, %v1986
        %v1990 = vmul.f32 %v1975, %v1983
        %v1991 = vmul.f32 %v1976, %v1987
        %1992 = vst [vmem:[#allocation2 + $0x40] sm:$0xff] %v1990
        %1993 = vst [vmem:[#allocation2 + $0x48] sm:$0xff] %v1991
        %v1994 = vld [vmem:[#allocation3 + $0x8] sm:$0xff]
        %v1995 = vld [vmem:[#allocation3 + $0x10] sm:$0xff]
        %v1996 = vld [vmem:[#allocation3 + $0x18] sm:$0xff]
        %s1997 = scalar_lea.vmem %s15, 5
        %v1998 = vld [vmem:[%s1997] ss:$8 sm:$0x3]
        %v2000 = vlaneseq
        %v2001 = vshrl.u32 %v2000, 7
        %v2002 = vsub.s32 0, %v2001
        %v2003 = vrot.slane %v1998, %v2002
        %v2004 = vlaneseq
        %v2005 = vshrl.u32 %v2004, 7
        %v2006 = vsub.s32 1, %v2005
        %v2007 = vrot.slane %v1998, %v2006
        %2008 = vrot.lane.b32.xlu0 %v2003, 1
        %v2009 = vpop.permute.xlu0 %2008
        %2010 = vrot.lane.b32.xlu0 %v2007, 1
        %v2011 = vpop.permute.xlu0 %2010
        %v2012 = vsel %vm931, %v2009, %v2011
        %v2016 = vmul.f32 %v1994, %v2009
        %v2017 = vmul.f32 %v1995, %v2012
        %v2018 = vmul.f32 %v1996, %v2011
        %2022 = vrot.lane.b32.xlu0 %v2016, 127
        %v2023 = vpop.permute.xlu0 %2022
        %2024 = vrot.lane.b32.xlu0 %v2017, 127
        %v2025 = vpop.permute.xlu0 %2024
        %2026 = vrot.lane.b32.xlu0 %v2018, 127
        %v2027 = vpop.permute.xlu0 %2026
        %v2028 = vsel %vm914, %v2023, %v2025
        %v2029 = vsel %vm914, %v2025, %v2027
        %2032 = vst [vmem:[#allocation2 + $0x50] sm:$0xff] %v2028
        %2033 = vst [vmem:[#allocation2 + $0x58] sm:$0xff] %v2029
        %v2034 = vld [vmem:[#allocation3 + $0x8] sm:$0xff]
        %v2035 = vld [vmem:[#allocation3 + $0x10] sm:$0xff]
        %v2036 = vld [vmem:[#allocation3 + $0x18] sm:$0xff]
        %s2037 = scalar_lea.vmem %s15, 6
        %v2038 = vld [vmem:[%s2037] ss:$8 sm:$0x3]
        %v2040 = vlaneseq
        %v2041 = vshrl.u32 %v2040, 7
        %v2042 = vsub.s32 0, %v2041
        %v2043 = vrot.slane %v2038, %v2042
        %v2044 = vlaneseq
        %v2045 = vshrl.u32 %v2044, 7
        %v2046 = vsub.s32 1, %v2045
        %v2047 = vrot.slane %v2038, %v2046
        %2048 = vrot.lane.b32.xlu0 %v2043, 15
        %v2049 = vpop.permute.xlu0 %2048
        %2050 = vrot.lane.b32.xlu0 %v2047, 15
        %v2051 = vpop.permute.xlu0 %2050
        %v2052 = vsel %vm889, %v2049, %v2051
        %v2056 = vmul.f32 %v2034, %v2049
        %v2057 = vmul.f32 %v2035, %v2052
        %v2058 = vmul.f32 %v2036, %v2051
        %2062 = vrot.lane.b32.xlu0 %v2056, 113
        %v2063 = vpop.permute.xlu0 %2062
        %2064 = vrot.lane.b32.xlu0 %v2057, 113
        %v2065 = vpop.permute.xlu0 %2064
        %2066 = vrot.lane.b32.xlu0 %v2058, 113
        %v2067 = vpop.permute.xlu0 %2066
        %v2068 = vsel %vm872, %v2063, %v2065
        %v2069 = vsel %vm872, %v2065, %v2067
        %2072 = vst [vmem:[#allocation2 + $0x60] sm:$0xff] %v2068
        %2073 = vst [vmem:[#allocation2 + $0x68] sm:$0xff] %v2069
        %v2074 = vld [vmem:[#allocation3 + $0x8] sm:$0xff]
        %v2075 = vld [vmem:[#allocation3 + $0x10] sm:$0xff]
        %v2076 = vld [vmem:[#allocation3 + $0x18] sm:$0xff]
        %s2077 = scalar_lea.vmem %s15, 7
        %v2078 = vld [vmem:[%s2077] ss:$8 sm:$0x3]
        %v2080 = vlaneseq
        %v2081 = vshrl.u32 %v2080, 7
        %v2082 = vsub.s32 0, %v2081
        %v2083 = vrot.slane %v2078, %v2082
        %v2084 = vlaneseq
        %v2085 = vshrl.u32 %v2084, 7
        %v2086 = vsub.s32 1, %v2085
        %v2087 = vrot.slane %v2078, %v2086
        %2088 = vrot.lane.b32.xlu0 %v2083, 16
        %v2089 = vpop.permute.xlu0 %2088
        %2090 = vrot.lane.b32.xlu0 %v2087, 16
        %v2091 = vpop.permute.xlu0 %2090
        %v2092 = vsel %vm847, %v2089, %v2091
        %v2096 = vmul.f32 %v2074, %v2089
        %v2097 = vmul.f32 %v2075, %v2092
        %v2098 = vmul.f32 %v2076, %v2091
        %2102 = vrot.lane.b32.xlu0 %v2096, 112
        %v2103 = vpop.permute.xlu0 %2102
        %2104 = vrot.lane.b32.xlu0 %v2097, 112
        %v2105 = vpop.permute.xlu0 %2104
        %2106 = vrot.lane.b32.xlu0 %v2098, 112
        %v2107 = vpop.permute.xlu0 %2106
        %v2108 = vsel %vm830, %v2103, %v2105
        %v2109 = vsel %vm830, %v2105, %v2107
        %2112 = vst [vmem:[#allocation2 + $0x70] sm:$0xff] %v2108
        %2113 = vst [vmem:[#allocation2 + $0x78] sm:$0xff] %v2109
        %v2114 = vld [vmem:[#allocation3 + $0x8] sm:$0xff]
        %v2115 = vld [vmem:[#allocation3 + $0x10] sm:$0xff]
        %v2116 = vld [vmem:[#allocation3 + $0x18] sm:$0xff]
        %s2117 = scalar_lea.vmem %s15, 16
        %v2118 = vld [vmem:[%s2117] ss:$8 sm:$0x3]
        %v2120 = vlaneseq
        %v2121 = vshrl.u32 %v2120, 7
        %v2122 = vsub.s32 0, %v2121
        %v2123 = vrot.slane %v2118, %v2122
        %v2124 = vlaneseq
        %v2125 = vshrl.u32 %v2124, 7
        %v2126 = vsub.s32 1, %v2125
        %v2127 = vrot.slane %v2118, %v2126
        %2128 = vrot.lane.b32.xlu0 %v2123, 17
        %v2129 = vpop.permute.xlu0 %2128
        %2130 = vrot.lane.b32.xlu0 %v2127, 17
        %v2131 = vpop.permute.xlu0 %2130
        %v2132 = vsel %vm805, %v2129, %v2131
        %v2136 = vmul.f32 %v2114, %v2129
        %v2137 = vmul.f32 %v2115, %v2132
        %v2138 = vmul.f32 %v2116, %v2131
        %2142 = vrot.lane.b32.xlu0 %v2136, 111
        %v2143 = vpop.permute.xlu0 %2142
        %2144 = vrot.lane.b32.xlu0 %v2137, 111
        %v2145 = vpop.permute.xlu0 %2144
        %2146 = vrot.lane.b32.xlu0 %v2138, 111
        %v2147 = vpop.permute.xlu0 %2146
        %v2148 = vsel %vm788, %v2143, %v2145
        %v2149 = vsel %vm788, %v2145, %v2147
        %2152 = vst [vmem:[#allocation2 + $0x80] sm:$0xff] %v2148
        %2153 = vst [vmem:[#allocation2 + $0x88] sm:$0xff] %v2149
        %v2154 = vld [vmem:[%s12] sm:$0xff]
        %v2155 = vld [vmem:[%s12 + $0x8] sm:$0xff]
        %v2156 = vld [vmem:[#allocation2] sm:$0xff]
        %v2157 = vld [vmem:[#allocation2 + $0x8] sm:$0xff]
        %v2158 = vld [vmem:[#allocation2 + $0x10] sm:$0xff]
        %v2159 = vld [vmem:[#allocation2 + $0x18] sm:$0xff]
        %v2160 = vld [vmem:[#allocation2 + $0x20] sm:$0xff]
        %v2161 = vld [vmem:[#allocation2 + $0x28] sm:$0xff]
        %v2162 = vld [vmem:[#allocation2 + $0x30] sm:$0xff]
        %v2163 = vld [vmem:[#allocation2 + $0x38] sm:$0xff]
        %v2164 = vld [vmem:[#allocation2 + $0x40] sm:$0xff]
        %v2165 = vld [vmem:[#allocation2 + $0x48] sm:$0xff]
        %v2166 = vld [vmem:[#allocation2 + $0x50] sm:$0xff]
        %v2167 = vld [vmem:[#allocation2 + $0x58] sm:$0xff]
        %v2168 = vld [vmem:[#allocation2 + $0x60] sm:$0xff]
        %v2169 = vld [vmem:[#allocation2 + $0x68] sm:$0xff]
        %v2170 = vld [vmem:[#allocation2 + $0x70] sm:$0xff]
        %v2171 = vld [vmem:[#allocation2 + $0x78] sm:$0xff]
        %v2172 = vld [vmem:[#allocation2 + $0x80] sm:$0xff]
        %v2173 = vld [vmem:[#allocation2 + $0x88] sm:$0xff]
        %v2175 = vsel %vm1136, %v2154, 0
        %v2178 = vsel %vm1136, %v2155, 0
        %2180 = vmatprep.subr.mxu0 %v2157
        %2181 = vmatpush1.msra.mxu0 %v2156
        %2182 = vmatprep.subr.mxu0 %v2159
        %2183 = vmatpush1.msra.mxu0 %v2158
        %2184 = vmatprep.subr.mxu0 %v2161
        %2185 = vmatpush1.msra.mxu0 %v2160
        %2186 = vmatprep.subr.mxu0 %v2163
        %2187 = vmatpush1.msra.mxu0 %v2162
        %2188 = vmatprep.subr.mxu0 %v2165
        %2189 = vmatpush1.msra.mxu0 %v2164
        %2190 = vmatprep.subr.mxu0 %v2167
        %2191 = vmatpush1.msra.mxu0 %v2166
        %2192 = vmatprep.subr.mxu0 %v2169
        %2193 = vmatpush1.msra.mxu0 %v2168
        %2194 = vmatprep.subr.mxu0 %v2171
        %2195 = vmatpush1.msra.mxu0 %v2170
        %2196 = vmatprep.subr.mxu0 %v2173
        %2197 = vmatpush1.msra.mxu0 %v2172
        %2198 = vmatprep.subr.mxu0 0.0
        %2199 = vmatpush1.msra.mxu0 0.0
        %2200 = vmatprep.subr.mxu0 0.0
        %2201 = vmatpush1.msra.mxu0 0.0
        %2202 = vmatprep.subr.mxu0 0.0
        %2203 = vmatpush1.msra.mxu0 0.0
        %2204 = vmatprep.subr.mxu0 0.0
        %2205 = vmatpush1.msra.mxu0 0.0
        %2206 = vmatprep.subr.mxu0 0.0
        %2207 = vmatpush1.msra.mxu0 0.0
        %2208 = vmatprep.subr.mxu0 0.0
        %2209 = vmatpush1.msra.mxu0 0.0
        %2210 = vmatprep.subr.mxu0 0.0
        %2211 = vmatpush1.msra.mxu0 0.0
        %2212 = vmatprep.subr.mxu0 0.0
        %2213 = vmatpush1.msra.mxu0 0.0
        %2214 = vmatprep.subr.mxu0 0.0
        %2215 = vmatpush1.msra.mxu0 0.0
        %2216 = vmatprep.subr.mxu0 0.0
        %2217 = vmatpush1.msra.mxu0 0.0
        %2218 = vmatprep.subr.mxu0 0.0
        %2219 = vmatpush1.msra.mxu0 0.0
        %2220 = vmatprep.subr.mxu0 0.0
        %2221 = vmatpush1.msra.mxu0 0.0
        %2222 = vmatprep.subr.mxu0 0.0
        %2223 = vmatpush1.msra.mxu0 0.0
        %2224 = vmatprep.subr.mxu0 0.0
        %2225 = vmatpush1.msra.mxu0 0.0
        %2226 = vmatprep.subr.mxu0 0.0
        %2227 = vmatpush1.msra.mxu0 0.0
        %2228 = vmatprep.subr.mxu0 0.0
        %2229 = vmatpush1.msra.mxu0 0.0
        %2230 = vmatprep.subr.mxu0 0.0
        %2231 = vmatpush1.msra.mxu0 0.0
        %2232 = vmatprep.subr.mxu0 0.0
        %2233 = vmatpush1.msra.mxu0 0.0
        %2234 = vmatprep.subr.mxu0 0.0
        %2235 = vmatpush1.msra.mxu0 0.0
        %2236 = vmatprep.subr.mxu0 0.0
        %2237 = vmatpush1.msra.mxu0 0.0
        %2238 = vmatprep.subr.mxu0 0.0
        %2239 = vmatpush1.msra.mxu0 0.0
        %2240 = vmatprep.subr.mxu0 0.0
        %2241 = vmatpush1.msra.mxu0 0.0
        %2242 = vmatprep.subr.mxu0 0.0
        %2243 = vmatpush1.msra.mxu0 0.0
        %2244 = vmatprep.mubr.f32.mxu0 0.0
        %2245 = vmatmul.mubr.f32.gmra.mrb[0].mxu0 %v2175
        %v2246 = vpop.f32.mrb[0].mxu0
        %v2247 = vadd.f32 0.0, %v2246
        %v2248 = vpop.f32.mrb[0].mxu0
        %v2249 = vadd.f32 0.0, %v2248
        %2250 = vmatprep.mubr.f32.mxu0 0.0
        %2251 = vmatmul.mubr.f32.gmra.mrb[0].mxu0 %v2178
        %v2252 = vpop.f32.mrb[0].mxu0
        %v2253 = vadd.f32 0.0, %v2252
        %v2254 = vpop.f32.mrb[0].mxu0
        %v2255 = vadd.f32 0.0, %v2254
        %2256 = vdwg.mxu0
        %v2257 = vld [vmem:[%s16] sm:$0xff]
        %v2258 = vld [vmem:[%s16 + $0x8] sm:$0xff]
        %v2259 = vld [vmem:[%s16 + $0x10] sm:$0xff]
        %v2260 = vld [vmem:[%s16 + $0x18] sm:$0xff]
        %v2261 = vld [vmem:[%s16 + $0x20] sm:$0xff]
        %v2262 = vld [vmem:[%s16 + $0x28] sm:$0xff]
        %v2263 = vld [vmem:[%s16 + $0x30] sm:$0xff]
        %v2264 = vld [vmem:[%s16 + $0x38] sm:$0xff]
        %v2265 = vld [vmem:[%s16 + $0x40] sm:$0xff]
        %v2266 = vld [vmem:[%s16 + $0x48] sm:$0xff]
        %v2267 = vld [vmem:[%s16 + $0x50] sm:$0xff]
        %v2268 = vld [vmem:[%s16 + $0x58] sm:$0xff]
        %v2269 = vld [vmem:[%s16 + $0x60] sm:$0xff]
        %v2270 = vld [vmem:[%s16 + $0x68] sm:$0xff]
        %v2271 = vld [vmem:[%s16 + $0x70] sm:$0xff]
        %v2272 = vld [vmem:[%s16 + $0x78] sm:$0xff]
        %v2273 = vld [vmem:[%s16 + $0x80] sm:$0xff]
        %v2274 = vld [vmem:[%s16 + $0x88] sm:$0xff]
        %v2275 = vld [vmem:[%s16 + $0x90] sm:$0xff]
        %v2276 = vld [vmem:[%s16 + $0x98] sm:$0xff]
        %v2277 = vld [vmem:[%s16 + $0xa0] sm:$0xff]
        %v2278 = vld [vmem:[%s16 + $0xa8] sm:$0xff]
        %v2279 = vld [vmem:[%s16 + $0xb0] sm:$0xff]
        %v2280 = vld [vmem:[%s16 + $0xb8] sm:$0xff]
        %v2281 = vld [vmem:[%s16 + $0xc0] sm:$0xff]
        %v2282 = vld [vmem:[%s16 + $0xc8] sm:$0xff]
        %v2283 = vld [vmem:[%s16 + $0xd0] sm:$0xff]
        %v2284 = vld [vmem:[%s16 + $0xd8] sm:$0xff]
        %v2285 = vld [vmem:[%s16 + $0xe0] sm:$0xff]
        %v2286 = vld [vmem:[%s16 + $0xe8] sm:$0xff]
        %v2287 = vld [vmem:[%s16 + $0xf0] sm:$0xff]
        %v2288 = vld [vmem:[%s16 + $0xf8] sm:$0xff]
        %2289 = vmatprep.subr.mxu0 0.0
        %2290 = vmatpush1.msra.mxu0 %v2257
        %2291 = vmatprep.subr.mxu0 0.0
        %2292 = vmatpush1.msra.mxu0 %v2258
        %2293 = vmatprep.subr.mxu0 0.0
        %2294 = vmatpush1.msra.mxu0 %v2259
        %2295 = vmatprep.subr.mxu0 0.0
        %2296 = vmatpush1.msra.mxu0 %v2260
        %2297 = vmatprep.subr.mxu0 0.0
        %2298 = vmatpush1.msra.mxu0 %v2261
        %2299 = vmatprep.subr.mxu0 0.0
        %2300 = vmatpush1.msra.mxu0 %v2262
        %2301 = vmatprep.subr.mxu0 0.0
        %2302 = vmatpush1.msra.mxu0 %v2263
        %2303 = vmatprep.subr.mxu0 0.0
        %2304 = vmatpush1.msra.mxu0 %v2264
        %2305 = vmatprep.subr.mxu0 0.0
        %2306 = vmatpush1.msra.mxu0 %v2265
        %2307 = vmatprep.subr.mxu0 0.0
        %2308 = vmatpush1.msra.mxu0 %v2266
        %2309 = vmatprep.subr.mxu0 0.0
        %2310 = vmatpush1.msra.mxu0 %v2267
        %2311 = vmatprep.subr.mxu0 0.0
        %2312 = vmatpush1.msra.mxu0 %v2268
        %2313 = vmatprep.subr.mxu0 0.0
        %2314 = vmatpush1.msra.mxu0 %v2269
        %2315 = vmatprep.subr.mxu0 0.0
        %2316 = vmatpush1.msra.mxu0 %v2270
        %2317 = vmatprep.subr.mxu0 0.0
        %2318 = vmatpush1.msra.mxu0 %v2271
        %2319 = vmatprep.subr.mxu0 0.0
        %2320 = vmatpush1.msra.mxu0 %v2272
        %2321 = vmatprep.subr.mxu0 0.0
        %2322 = vmatpush1.msra.mxu0 %v2273
        %2323 = vmatprep.subr.mxu0 0.0
        %2324 = vmatpush1.msra.mxu0 %v2274
        %2325 = vmatprep.subr.mxu0 0.0
        %2326 = vmatpush1.msra.mxu0 %v2275
        %2327 = vmatprep.subr.mxu0 0.0
        %2328 = vmatpush1.msra.mxu0 %v2276
        %2329 = vmatprep.subr.mxu0 0.0
        %2330 = vmatpush1.msra.mxu0 %v2277
        %2331 = vmatprep.subr.mxu0 0.0
        %2332 = vmatpush1.msra.mxu0 %v2278
        %2333 = vmatprep.subr.mxu0 0.0
        %2334 = vmatpush1.msra.mxu0 %v2279
        %2335 = vmatprep.subr.mxu0 0.0
        %2336 = vmatpush1.msra.mxu0 %v2280
        %2337 = vmatprep.subr.mxu0 0.0
        %2338 = vmatpush1.msra.mxu0 %v2281
        %2339 = vmatprep.subr.mxu0 0.0
        %2340 = vmatpush1.msra.mxu0 %v2282
        %2341 = vmatprep.subr.mxu0 0.0
        %2342 = vmatpush1.msra.mxu0 %v2283
        %2343 = vmatprep.subr.mxu0 0.0
        %2344 = vmatpush1.msra.mxu0 %v2284
        %2345 = vmatprep.subr.mxu0 0.0
        %2346 = vmatpush1.msra.mxu0 %v2285
        %2347 = vmatprep.subr.mxu0 0.0
        %2348 = vmatpush1.msra.mxu0 %v2286
        %2349 = vmatprep.subr.mxu0 0.0
        %2350 = vmatpush1.msra.mxu0 %v2287
        %2351 = vmatprep.subr.mxu0 0.0
        %2352 = vmatpush1.msra.mxu0 %v2288
        %2353 = vmatprep.mubr.f32.mxu0 %v2249
        %2354 = vmatmul.mubr.f32.gmra.mrb[0].mxu0 %v2247
        %v2355 = vpop.f32.mrb[0].mxu0
        %v2356 = vadd.f32 0.0, %v2355
        %v2357 = vpop.f32.mrb[0].mxu0
        %2358 = vmatprep.mubr.f32.mxu0 %v2255
        %2359 = vmatmul.mubr.f32.gmra.mrb[0].mxu0 %v2253
        %v2360 = vpop.f32.mrb[0].mxu0
        %v2361 = vadd.f32 0.0, %v2360
        %v2362 = vpop.f32.mrb[0].mxu0
        %2363 = vdwg.mxu0
        %v2364 = vld [vmem:[%s13] sm:$0xff]
        %v2365 = vld [vmem:[%s13 + $0x8] sm:$0xff]
        %2367 = vset.pattern.permute.xlu0 0
        %2368 = vperm.xlu0 %2367, %v2364
        %v2369 = vpop.permute.xlu0 %2368
        %2372 = vset.pattern.permute.xlu0 0
        %2373 = vperm.xlu0 %2372, %v2365
        %v2374 = vpop.permute.xlu0 %2373
        %v2376 = vmul.f32 %v2356, %v2369
        %v2377 = vmul.f32 %v2361, %v2374
        %v2378 = vld [vmem:[%s14] sm:$0xff]
        %v2379 = vld [vmem:[%s14 + $0x8] sm:$0xff]
        %2381 = vset.pattern.permute.xlu0 0
        %2382 = vperm.xlu0 %2381, %v2378
        %v2383 = vpop.permute.xlu0 %2382
        %2386 = vset.pattern.permute.xlu0 0
        %2387 = vperm.xlu0 %2386, %v2379
        %v2388 = vpop.permute.xlu0 %2387
        %v2390 = vadd.f32 %v2376, %v2383
        %v2391 = vadd.f32 %v2377, %v2388
        %v2392 = vmax.f32 %v2390, 0.0
        %v2393 = vmax.f32 %v2391, 0.0
        %2394 = vst [vmem:[#allocation3] sm:$0xff] 0.0
        %2395 = vst [vmem:[#allocation3 + $0x8] sm:$0xff] 0.0
        %2396 = vst [vmem:[#allocation3 + $0x10] sm:$0xff] 0.0
        %2397 = vst [vmem:[#allocation3 + $0x18] sm:$0xff] 0.0
        %2398 = vst [vmem:[#allocation3 + $0x20] sm:$0xff] 0.0
        %2399 = vst [vmem:[#allocation3 + $0x28] sm:$0xff] 0.0
        %2400 = vst [vmem:[#allocation3 + $0x30] sm:$0xff] 0.0
        %2401 = vst [vmem:[#allocation3 + $0x38] sm:$0xff] 0.0
        %vm2402 = vcmask 523264
        %2403 = vst.msk [vmem:[#allocation3 + $0x8] sm:$0xff] %vm2402, %v2392
        %2404 = vst.msk [vmem:[#allocation3 + $0x28] sm:$0xff] %vm2402, %v2393
        %v2405 = vld [vmem:[#allocation3] sm:$0xff]
        %v2406 = vld [vmem:[#allocation3 + $0x8] sm:$0xff]
        %v2407 = vld [vmem:[#allocation3 + $0x20] sm:$0xff]
        %v2408 = vld [vmem:[#allocation3 + $0x28] sm:$0xff]
        %v2409 = vld [vmem:[%s20] sm:$0x1]
        %v2410 = vlaneseq
        %v2411 = vshrl.u32 %v2410, 7
        %v2412 = vsub.s32 0, %v2411
        %v2413 = vrot.slane %v2409, %v2412
        %2415 = vrot.lane.b32.xlu0 %v2413, 119
        %v2416 = vpop.permute.xlu0 %2415
        %v2418 = vmul.f32 %v2405, %v2416
        %v2419 = vmul.f32 %v2406, %v2416
        %v2420 = vmul.f32 %v2407, %v2416
        %v2421 = vmul.f32 %v2408, %v2416
        %2426 = vrot.lane.b32.xlu0 %v2418, 9
        %v2427 = vpop.permute.xlu0 %2426
        %2428 = vrot.lane.b32.xlu0 %v2419, 9
        %v2429 = vpop.permute.xlu0 %2428
        %2430 = vrot.lane.b32.xlu0 %v2420, 9
        %v2431 = vpop.permute.xlu0 %2430
        %2432 = vrot.lane.b32.xlu0 %v2421, 9
        %v2433 = vpop.permute.xlu0 %2432
        %vm2434 = vcmask 72704
        %v2435 = vsel %vm2434, %v2427, %v2429
        %v2436 = vsel %vm2434, %v2431, %v2433
        %2439 = vst.msk [vmem:[#allocation2] sm:$0xff] %vm2402, %v2435
        %2440 = vst.msk [vmem:[#allocation2 + $0x10] sm:$0xff] %vm2402, %v2436
        %v2441 = vld [vmem:[#allocation3] sm:$0xff]
        %v2442 = vld [vmem:[#allocation3 + $0x8] sm:$0xff]
        %v2443 = vld [vmem:[#allocation3 + $0x20] sm:$0xff]
        %v2444 = vld [vmem:[#allocation3 + $0x28] sm:$0xff]
        %v2445 = vld [vmem:[%s20 + $0x1] sm:$0x1]
        %v2446 = vlaneseq
        %v2447 = vshrl.u32 %v2446, 7
        %v2448 = vsub.s32 0, %v2447
        %v2449 = vrot.slane %v2445, %v2448
        %2451 = vrot.lane.b32.xlu0 %v2449, 120
        %v2452 = vpop.permute.xlu0 %2451
        %v2454 = vmul.f32 %v2441, %v2452
        %v2455 = vmul.f32 %v2442, %v2452
        %v2456 = vmul.f32 %v2443, %v2452
        %v2457 = vmul.f32 %v2444, %v2452
        %2462 = vrot.lane.b32.xlu0 %v2454, 8
        %v2463 = vpop.permute.xlu0 %2462
        %2464 = vrot.lane.b32.xlu0 %v2455, 8
        %v2465 = vpop.permute.xlu0 %2464
        %2466 = vrot.lane.b32.xlu0 %v2456, 8
        %v2467 = vpop.permute.xlu0 %2466
        %2468 = vrot.lane.b32.xlu0 %v2457, 8
        %v2469 = vpop.permute.xlu0 %2468
        %v2470 = vsel %vm1686, %v2463, %v2465
        %v2471 = vsel %vm1686, %v2467, %v2469
        %2474 = vst.msk [vmem:[#allocation2 + $0x20] sm:$0xff] %vm2402, %v2470
        %2475 = vst.msk [vmem:[#allocation2 + $0x30] sm:$0xff] %vm2402, %v2471
        %v2476 = vld [vmem:[#allocation3] sm:$0xff]
        %v2477 = vld [vmem:[#allocation3 + $0x8] sm:$0xff]
        %v2478 = vld [vmem:[#allocation3 + $0x20] sm:$0xff]
        %v2479 = vld [vmem:[#allocation3 + $0x28] sm:$0xff]
        %v2480 = vld [vmem:[%s20 + $0x2] sm:$0x1]
        %v2481 = vlaneseq
        %v2482 = vshrl.u32 %v2481, 7
        %v2483 = vsub.s32 0, %v2482
        %v2484 = vrot.slane %v2480, %v2483
        %2486 = vrot.lane.b32.xlu0 %v2484, 121
        %v2487 = vpop.permute.xlu0 %2486
        %v2489 = vmul.f32 %v2476, %v2487
        %v2490 = vmul.f32 %v2477, %v2487
        %v2491 = vmul.f32 %v2478, %v2487
        %v2492 = vmul.f32 %v2479, %v2487
        %2497 = vrot.lane.b32.xlu0 %v2489, 7
        %v2498 = vpop.permute.xlu0 %2497
        %2499 = vrot.lane.b32.xlu0 %v2490, 7
        %v2500 = vpop.permute.xlu0 %2499
        %2501 = vrot.lane.b32.xlu0 %v2491, 7
        %v2502 = vpop.permute.xlu0 %2501
        %2503 = vrot.lane.b32.xlu0 %v2492, 7
        %v2504 = vpop.permute.xlu0 %2503
        %vm2505 = vcmask 56320
        %v2506 = vsel %vm2505, %v2498, %v2500
        %v2507 = vsel %vm2505, %v2502, %v2504
        %2510 = vst.msk [vmem:[#allocation2 + $0x40] sm:$0xff] %vm2402, %v2506
        %2511 = vst.msk [vmem:[#allocation2 + $0x50] sm:$0xff] %vm2402, %v2507
        %v2512 = vld [vmem:[#allocation3] sm:$0xff]
        %v2513 = vld [vmem:[#allocation3 + $0x8] sm:$0xff]
        %v2514 = vld [vmem:[#allocation3 + $0x20] sm:$0xff]
        %v2515 = vld [vmem:[#allocation3 + $0x28] sm:$0xff]
        %v2516 = vld [vmem:[%s20 + $0x3] sm:$0x1]
        %v2517 = vlaneseq
        %v2518 = vshrl.u32 %v2517, 7
        %v2519 = vsub.s32 0, %v2518
        %v2520 = vrot.slane %v2516, %v2519
        %2522 = vrot.lane.b32.xlu0 %v2520, 127
        %v2523 = vpop.permute.xlu0 %2522
        %v2525 = vmul.f32 %v2512, %v2523
        %v2526 = vmul.f32 %v2513, %v2523
        %v2527 = vmul.f32 %v2514, %v2523
        %v2528 = vmul.f32 %v2515, %v2523
        %2533 = vrot.lane.b32.xlu0 %v2525, 1
        %v2534 = vpop.permute.xlu0 %2533
        %2535 = vrot.lane.b32.xlu0 %v2526, 1
        %v2536 = vpop.permute.xlu0 %2535
        %2537 = vrot.lane.b32.xlu0 %v2527, 1
        %v2538 = vpop.permute.xlu0 %2537
        %2539 = vrot.lane.b32.xlu0 %v2528, 1
        %v2540 = vpop.permute.xlu0 %2539
        %v2541 = vsel %vm931, %v2534, %v2536
        %v2542 = vsel %vm931, %v2538, %v2540
        %2545 = vst.msk [vmem:[#allocation2 + $0x60] sm:$0xff] %vm2402, %v2541
        %2546 = vst.msk [vmem:[#allocation2 + $0x70] sm:$0xff] %vm2402, %v2542
        %v2547 = vld [vmem:[#allocation3 + $0x8] sm:$0xff]
        %v2548 = vld [vmem:[#allocation3 + $0x28] sm:$0xff]
        %v2549 = vld [vmem:[%s20 + $0x4] sm:$0x1]
        %v2550 = vlaneseq
        %v2551 = vshrl.u32 %v2550, 7
        %v2552 = vsub.s32 0, %v2551
        %v2553 = vrot.slane %v2549, %v2552
        %v2554 = vmul.f32 %v2547, %v2553
        %v2555 = vmul.f32 %v2548, %v2553
        %2556 = vst.msk [vmem:[#allocation2 + $0x80] sm:$0xff] %vm2402, %v2554
        %2557 = vst.msk [vmem:[#allocation2 + $0x90] sm:$0xff] %vm2402, %v2555
        %v2558 = vld [vmem:[#allocation3 + $0x8] sm:$0xff]
        %v2559 = vld [vmem:[#allocation3 + $0x28] sm:$0xff]
        %v2560 = vld [vmem:[%s20 + $0x5] sm:$0x1]
        %v2561 = vlaneseq
        %v2562 = vshrl.u32 %v2561, 7
        %v2563 = vsub.s32 0, %v2562
        %v2564 = vrot.slane %v2560, %v2563
        %2566 = vrot.lane.b32.xlu0 %v2564, 1
        %v2567 = vpop.permute.xlu0 %2566
        %v2569 = vmul.f32 %v2558, %v2567
        %v2570 = vmul.f32 %v2559, %v2567
        %2573 = vrot.lane.b32.xlu0 %v2569, 127
        %v2574 = vpop.permute.xlu0 %2573
        %2575 = vrot.lane.b32.xlu0 %v2570, 127
        %v2576 = vpop.permute.xlu0 %2575
        %2579 = vst.msk [vmem:[#allocation2 + $0xa0] sm:$0xff] %vm2402, %v2574
        %2580 = vst.msk [vmem:[#allocation2 + $0xb0] sm:$0xff] %vm2402, %v2576
        %v2581 = vld [vmem:[#allocation3 + $0x8] sm:$0xff]
        %v2582 = vld [vmem:[#allocation3 + $0x28] sm:$0xff]
        %v2583 = vld [vmem:[%s20 + $0x6] sm:$0x1]
        %v2584 = vlaneseq
        %v2585 = vshrl.u32 %v2584, 7
        %v2586 = vsub.s32 0, %v2585
        %v2587 = vrot.slane %v2583, %v2586
        %2589 = vrot.lane.b32.xlu0 %v2587, 7
        %v2590 = vpop.permute.xlu0 %2589
        %v2592 = vmul.f32 %v2581, %v2590
        %v2593 = vmul.f32 %v2582, %v2590
        %2596 = vrot.lane.b32.xlu0 %v2592, 121
        %v2597 = vpop.permute.xlu0 %2596
        %2598 = vrot.lane.b32.xlu0 %v2593, 121
        %v2599 = vpop.permute.xlu0 %2598
        %2602 = vst.msk [vmem:[#allocation2 + $0xc0] sm:$0xff] %vm2402, %v2597
        %2603 = vst.msk [vmem:[#allocation2 + $0xd0] sm:$0xff] %vm2402, %v2599
        %v2604 = vld [vmem:[#allocation3 + $0x8] sm:$0xff]
        %v2605 = vld [vmem:[#allocation3 + $0x28] sm:$0xff]
        %v2606 = vld [vmem:[%s20 + $0x7] sm:$0x1]
        %v2607 = vlaneseq
        %v2608 = vshrl.u32 %v2607, 7
        %v2609 = vsub.s32 0, %v2608
        %v2610 = vrot.slane %v2606, %v2609
        %2612 = vrot.lane.b32.xlu0 %v2610, 8
        %v2613 = vpop.permute.xlu0 %2612
        %v2615 = vmul.f32 %v2604, %v2613
        %v2616 = vmul.f32 %v2605, %v2613
        %2619 = vrot.lane.b32.xlu0 %v2615, 120
        %v2620 = vpop.permute.xlu0 %2619
        %2621 = vrot.lane.b32.xlu0 %v2616, 120
        %v2622 = vpop.permute.xlu0 %2621
        %2625 = vst.msk [vmem:[#allocation2 + $0xe0] sm:$0xff] %vm2402, %v2620
        %2626 = vst.msk [vmem:[#allocation2 + $0xf0] sm:$0xff] %vm2402, %v2622
        %v2627 = vld [vmem:[#allocation3 + $0x8] sm:$0xff]
        %v2628 = vld [vmem:[#allocation3 + $0x28] sm:$0xff]
        %v2629 = vld [vmem:[%s20 + $0x8] sm:$0x1]
        %v2630 = vlaneseq
        %v2631 = vshrl.u32 %v2630, 7
        %v2632 = vsub.s32 0, %v2631
        %v2633 = vrot.slane %v2629, %v2632
        %2635 = vrot.lane.b32.xlu0 %v2633, 9
        %v2636 = vpop.permute.xlu0 %2635
        %v2638 = vmul.f32 %v2627, %v2636
        %v2639 = vmul.f32 %v2628, %v2636
        %2642 = vrot.lane.b32.xlu0 %v2638, 119
        %v2643 = vpop.permute.xlu0 %2642
        %2644 = vrot.lane.b32.xlu0 %v2639, 119
        %v2645 = vpop.permute.xlu0 %2644
        %2648 = vst.msk [vmem:[#allocation2 + $0x100] sm:$0xff] %vm2402, %v2643
        %2649 = vst.msk [vmem:[#allocation2 + $0x110] sm:$0xff] %vm2402, %v2645
        %v2650 = vld [vmem:[%s17] sm:$0xff]
        %v2651 = vld [vmem:[%s17 + $0x8] sm:$0xff]
        %v2652 = vld [vmem:[%s17 + $0x10] sm:$0xff]
        %v2653 = vld [vmem:[%s17 + $0x18] sm:$0xff]
        %v2654 = vld [vmem:[#allocation2] sm:$0xff]
        %v2655 = vld [vmem:[#allocation2 + $0x10] sm:$0xff]
        %v2656 = vld [vmem:[#allocation2 + $0x20] sm:$0xff]
        %v2657 = vld [vmem:[#allocation2 + $0x30] sm:$0xff]
        %v2658 = vld [vmem:[#allocation2 + $0x40] sm:$0xff]
        %v2659 = vld [vmem:[#allocation2 + $0x50] sm:$0xff]
        %v2660 = vld [vmem:[#allocation2 + $0x60] sm:$0xff]
        %v2661 = vld [vmem:[#allocation2 + $0x70] sm:$0xff]
        %v2662 = vld [vmem:[#allocation2 + $0x80] sm:$0xff]
        %v2663 = vld [vmem:[#allocation2 + $0x90] sm:$0xff]
        %v2664 = vld [vmem:[#allocation2 + $0xa0] sm:$0xff]
        %v2665 = vld [vmem:[#allocation2 + $0xb0] sm:$0xff]
        %v2666 = vld [vmem:[#allocation2 + $0xc0] sm:$0xff]
        %v2667 = vld [vmem:[#allocation2 + $0xd0] sm:$0xff]
        %v2668 = vld [vmem:[#allocation2 + $0xe0] sm:$0xff]
        %v2669 = vld [vmem:[#allocation2 + $0xf0] sm:$0xff]
        %v2670 = vld [vmem:[#allocation2 + $0x100] sm:$0xff]
        %v2671 = vld [vmem:[#allocation2 + $0x110] sm:$0xff]
        %v2673 = vsel %vm847, %v2651, 0
        %v2676 = vsel %vm847, %v2653, 0
        %2678 = vmatprep.subr.mxu0 0.0
        %2679 = vmatpush1.msra.mxu0 %v2654
        %2680 = vmatprep.subr.mxu0 0.0
        %2681 = vmatpush1.msra.mxu0 %v2655
        %2682 = vmatprep.subr.mxu0 0.0
        %2683 = vmatpush1.msra.mxu0 %v2656
        %2684 = vmatprep.subr.mxu0 0.0
        %2685 = vmatpush1.msra.mxu0 %v2657
        %2686 = vmatprep.subr.mxu0 0.0
        %2687 = vmatpush1.msra.mxu0 %v2658
        %2688 = vmatprep.subr.mxu0 0.0
        %2689 = vmatpush1.msra.mxu0 %v2659
        %2690 = vmatprep.subr.mxu0 0.0
        %2691 = vmatpush1.msra.mxu0 %v2660
        %2692 = vmatprep.subr.mxu0 0.0
        %2693 = vmatpush1.msra.mxu0 %v2661
        %2694 = vmatprep.subr.mxu0 0.0
        %2695 = vmatpush1.msra.mxu0 %v2662
        %2696 = vmatprep.subr.mxu0 0.0
        %2697 = vmatpush1.msra.mxu0 %v2663
        %2698 = vmatprep.subr.mxu0 0.0
        %2699 = vmatpush1.msra.mxu0 %v2664
        %2700 = vmatprep.subr.mxu0 0.0
        %2701 = vmatpush1.msra.mxu0 %v2665
        %2702 = vmatprep.subr.mxu0 0.0
        %2703 = vmatpush1.msra.mxu0 %v2666
        %2704 = vmatprep.subr.mxu0 0.0
        %2705 = vmatpush1.msra.mxu0 %v2667
        %2706 = vmatprep.subr.mxu0 0.0
        %2707 = vmatpush1.msra.mxu0 %v2668
        %2708 = vmatprep.subr.mxu0 0.0
        %2709 = vmatpush1.msra.mxu0 %v2669
        %2710 = vmatprep.subr.mxu0 0.0
        %2711 = vmatpush1.msra.mxu0 %v2670
        %2712 = vmatprep.subr.mxu0 0.0
        %2713 = vmatpush1.msra.mxu0 %v2671
        %2714 = vmatprep.subr.mxu0 0.0
        %2715 = vmatpush1.msra.mxu0 0.0
        %2716 = vmatprep.subr.mxu0 0.0
        %2717 = vmatpush1.msra.mxu0 0.0
        %2718 = vmatprep.subr.mxu0 0.0
        %2719 = vmatpush1.msra.mxu0 0.0
        %2720 = vmatprep.subr.mxu0 0.0
        %2721 = vmatpush1.msra.mxu0 0.0
        %2722 = vmatprep.subr.mxu0 0.0
        %2723 = vmatpush1.msra.mxu0 0.0
        %2724 = vmatprep.subr.mxu0 0.0
        %2725 = vmatpush1.msra.mxu0 0.0
        %2726 = vmatprep.subr.mxu0 0.0
        %2727 = vmatpush1.msra.mxu0 0.0
        %2728 = vmatprep.subr.mxu0 0.0
        %2729 = vmatpush1.msra.mxu0 0.0
        %2730 = vmatprep.subr.mxu0 0.0
        %2731 = vmatpush1.msra.mxu0 0.0
        %2732 = vmatprep.subr.mxu0 0.0
        %2733 = vmatpush1.msra.mxu0 0.0
        %2734 = vmatprep.subr.mxu0 0.0
        %2735 = vmatpush1.msra.mxu0 0.0
        %2736 = vmatprep.subr.mxu0 0.0
        %2737 = vmatpush1.msra.mxu0 0.0
        %2738 = vmatprep.subr.mxu0 0.0
        %2739 = vmatpush1.msra.mxu0 0.0
        %2740 = vmatprep.subr.mxu0 0.0
        %2741 = vmatpush1.msra.mxu0 0.0
        %2742 = vmatprep.mubr.f32.mxu0 %v2673
        %2743 = vmatmul.mubr.f32.gmra.mrb[0].mxu0 %v2650
        %v2744 = vpop.f32.mrb[0].mxu0
        %v2745 = vadd.f32 0.0, %v2744
        %v2746 = vpop.f32.mrb[0].mxu0
        %2747 = vmatprep.mubr.f32.mxu0 %v2676
        %2748 = vmatmul.mubr.f32.gmra.mrb[0].mxu0 %v2652
        %v2749 = vpop.f32.mrb[0].mxu0
        %v2750 = vadd.f32 0.0, %v2749
        %v2751 = vpop.f32.mrb[0].mxu0
        %2752 = vdwg.mxu0
        %v2753 = vld [vmem:[%s18] sm:$0xff]
        %v2754 = vld [vmem:[%s18 + $0x8] sm:$0xff]
        %2756 = vset.pattern.permute.xlu0 0
        %2757 = vperm.xlu0 %2756, %v2753
        %v2758 = vpop.permute.xlu0 %2757
        %2761 = vset.pattern.permute.xlu0 0
        %2762 = vperm.xlu0 %2761, %v2754
        %v2763 = vpop.permute.xlu0 %2762
        %v2765 = vmul.f32 %v2745, %v2758
        %v2766 = vmul.f32 %v2750, %v2763
        %v2767 = vld [vmem:[%s19] sm:$0xff]
        %v2768 = vld [vmem:[%s19 + $0x8] sm:$0xff]
        %2770 = vset.pattern.permute.xlu0 0
        %2771 = vperm.xlu0 %2770, %v2767
        %v2772 = vpop.permute.xlu0 %2771
        %2775 = vset.pattern.permute.xlu0 0
        %2776 = vperm.xlu0 %2775, %v2768
        %v2777 = vpop.permute.xlu0 %2776
        %v2779 = vadd.f32 %v2765, %v2772
        %v2780 = vadd.f32 %v2766, %v2777
        %v2781 = vmax.f32 %v2779, 0.0
        %v2782 = vmax.f32 %v2780, 0.0
        %v2783 = vld [vmem:[%s21] sm:$0xff]
        %v2784 = vld [vmem:[%s21 + $0x8] sm:$0xff]
        %v2785 = vld [vmem:[%s21 + $0x10] sm:$0xff]
        %v2786 = vld [vmem:[%s21 + $0x18] sm:$0xff]
        %v2787 = vld [vmem:[%s21 + $0x20] sm:$0xff]
        %v2788 = vld [vmem:[%s21 + $0x28] sm:$0xff]
        %v2789 = vld [vmem:[%s21 + $0x30] sm:$0xff]
        %v2790 = vld [vmem:[%s21 + $0x38] sm:$0xff]
        %v2792 = vsel %vm847, %v2783, 0
        %v2795 = vsel %vm847, %v2784, 0
        %v2798 = vsel %vm847, %v2785, 0
        %v2801 = vsel %vm847, %v2786, 0
        %v2804 = vsel %vm847, %v2787, 0
        %v2807 = vsel %vm847, %v2788, 0
        %v2810 = vsel %vm847, %v2789, 0
        %v2813 = vsel %vm847, %v2790, 0
        %2815 = vmatprep.subr.mxu0 0.0
        %2816 = vmatpush1.msra.mxu0 %v2781
        %2817 = vmatprep.subr.mxu0 0.0
        %2818 = vmatpush1.msra.mxu0 %v2782
        %2819 = vmatprep.subr.mxu0 0.0
        %2820 = vmatpush1.msra.mxu0 0.0
        %2821 = vmatprep.subr.mxu0 0.0
        %2822 = vmatpush1.msra.mxu0 0.0
        %2823 = vmatprep.subr.mxu0 0.0
        %2824 = vmatpush1.msra.mxu0 0.0
        %2825 = vmatprep.subr.mxu0 0.0
        %2826 = vmatpush1.msra.mxu0 0.0
        %2827 = vmatprep.subr.mxu0 0.0
        %2828 = vmatpush1.msra.mxu0 0.0
        %2829 = vmatprep.subr.mxu0 0.0
        %2830 = vmatpush1.msra.mxu0 0.0
        %2831 = vmatprep.subr.mxu0 0.0
        %2832 = vmatpush1.msra.mxu0 0.0
        %2833 = vmatprep.subr.mxu0 0.0
        %2834 = vmatpush1.msra.mxu0 0.0
        %2835 = vmatprep.subr.mxu0 0.0
        %2836 = vmatpush1.msra.mxu0 0.0
        %2837 = vmatprep.subr.mxu0 0.0
        %2838 = vmatpush1.msra.mxu0 0.0
        %2839 = vmatprep.subr.mxu0 0.0
        %2840 = vmatpush1.msra.mxu0 0.0
        %2841 = vmatprep.subr.mxu0 0.0
        %2842 = vmatpush1.msra.mxu0 0.0
        %2843 = vmatprep.subr.mxu0 0.0
        %2844 = vmatpush1.msra.mxu0 0.0
        %2845 = vmatprep.subr.mxu0 0.0
        %2846 = vmatpush1.msra.mxu0 0.0
        %2847 = vmatprep.subr.mxu0 0.0
        %2848 = vmatpush1.msra.mxu0 0.0
        %2849 = vmatprep.subr.mxu0 0.0
        %2850 = vmatpush1.msra.mxu0 0.0
        %2851 = vmatprep.subr.mxu0 0.0
        %2852 = vmatpush1.msra.mxu0 0.0
        %2853 = vmatprep.subr.mxu0 0.0
        %2854 = vmatpush1.msra.mxu0 0.0
        %2855 = vmatprep.subr.mxu0 0.0
        %2856 = vmatpush1.msra.mxu0 0.0
        %2857 = vmatprep.subr.mxu0 0.0
        %2858 = vmatpush1.msra.mxu0 0.0
        %2859 = vmatprep.subr.mxu0 0.0
        %2860 = vmatpush1.msra.mxu0 0.0
        %2861 = vmatprep.subr.mxu0 0.0
        %2862 = vmatpush1.msra.mxu0 0.0
        %2863 = vmatprep.subr.mxu0 0.0
        %2864 = vmatpush1.msra.mxu0 0.0
        %2865 = vmatprep.subr.mxu0 0.0
        %2866 = vmatpush1.msra.mxu0 0.0
        %2867 = vmatprep.subr.mxu0 0.0
        %2868 = vmatpush1.msra.mxu0 0.0
        %2869 = vmatprep.subr.mxu0 0.0
        %2870 = vmatpush1.msra.mxu0 0.0
        %2871 = vmatprep.subr.mxu0 0.0
        %2872 = vmatpush1.msra.mxu0 0.0
        %2873 = vmatprep.subr.mxu0 0.0
        %2874 = vmatpush1.msra.mxu0 0.0
        %2875 = vmatprep.subr.mxu0 0.0
        %2876 = vmatpush1.msra.mxu0 0.0
        %2877 = vmatprep.subr.mxu0 0.0
        %2878 = vmatpush1.msra.mxu0 0.0
        %2879 = vmatprep.mubr.f32.mxu0 0.0
        %2880 = vmatmul.mubr.f32.gmra.mrb[0].mxu0 %v2792
        %v2881 = vpop.f32.mrb[0].mxu0
        %v2882 = vadd.f32 0.0, %v2881
        %v2883 = vpop.f32.mrb[0].mxu0
        %2884 = vmatprep.mubr.f32.mxu0 0.0
        %2885 = vmatmul.mubr.f32.gmra.mrb[0].mxu0 %v2795
        %v2886 = vpop.f32.mrb[0].mxu0
        %v2887 = vadd.f32 0.0, %v2886
        %v2888 = vpop.f32.mrb[0].mxu0
        %2889 = vmatprep.mubr.f32.mxu0 0.0
        %2890 = vmatmul.mubr.f32.gmra.mrb[0].mxu0 %v2798
        %v2891 = vpop.f32.mrb[0].mxu0
        %v2892 = vadd.f32 0.0, %v2891
        %v2893 = vpop.f32.mrb[0].mxu0
        %2894 = vmatprep.mubr.f32.mxu0 0.0
        %2895 = vmatmul.mubr.f32.gmra.mrb[0].mxu0 %v2801
        %v2896 = vpop.f32.mrb[0].mxu0
        %v2897 = vadd.f32 0.0, %v2896
        %v2898 = vpop.f32.mrb[0].mxu0
        %2899 = vmatprep.mubr.f32.mxu0 0.0
        %2900 = vmatmul.mubr.f32.gmra.mrb[0].mxu0 %v2804
        %v2901 = vpop.f32.mrb[0].mxu0
        %v2902 = vadd.f32 0.0, %v2901
        %v2903 = vpop.f32.mrb[0].mxu0
        %2904 = vmatprep.mubr.f32.mxu0 0.0
        %2905 = vmatmul.mubr.f32.gmra.mrb[0].mxu0 %v2807
        %v2906 = vpop.f32.mrb[0].mxu0
        %v2907 = vadd.f32 0.0, %v2906
        %v2908 = vpop.f32.mrb[0].mxu0
        %2909 = vmatprep.mubr.f32.mxu0 0.0
        %2910 = vmatmul.mubr.f32.gmra.mrb[0].mxu0 %v2810
        %v2911 = vpop.f32.mrb[0].mxu0
        %v2912 = vadd.f32 0.0, %v2911
        %v2913 = vpop.f32.mrb[0].mxu0
        %2914 = vmatprep.mubr.f32.mxu0 0.0
        %2915 = vmatmul.mubr.f32.gmra.mrb[0].mxu0 %v2813
        %v2916 = vpop.f32.mrb[0].mxu0
        %v2917 = vadd.f32 0.0, %v2916
        %v2918 = vpop.f32.mrb[0].mxu0
        %2919 = vdwg.mxu0
        %v2920 = vld [vmem:[%s24] sm:$0xff]
        %v2921 = vld [vmem:[%s24 + $0x8] sm:$0xff]
        %v2922 = vld [vmem:[%s24 + $0x10] sm:$0xff]
        %v2923 = vld [vmem:[%s24 + $0x18] sm:$0xff]
        %v2924 = vld [vmem:[%s24 + $0x20] sm:$0xff]
        %v2925 = vld [vmem:[%s24 + $0x28] sm:$0xff]
        %v2926 = vld [vmem:[%s24 + $0x30] sm:$0xff]
        %v2927 = vld [vmem:[%s24 + $0x38] sm:$0xff]
        %v2928 = vld [vmem:[%s24 + $0x40] sm:$0xff]
        %v2929 = vld [vmem:[%s24 + $0x48] sm:$0xff]
        %v2930 = vld [vmem:[%s24 + $0x50] sm:$0xff]
        %v2931 = vld [vmem:[%s24 + $0x58] sm:$0xff]
        %v2932 = vld [vmem:[%s24 + $0x60] sm:$0xff]
        %v2933 = vld [vmem:[%s24 + $0x68] sm:$0xff]
        %v2934 = vld [vmem:[%s24 + $0x70] sm:$0xff]
        %v2935 = vld [vmem:[%s24 + $0x78] sm:$0xff]
        %s2936 = scalar_lea.vmem %s24, 128
        %v2937 = vld [vmem:[%s2936] sm:$0xff]
        %v2938 = vld [vmem:[%s2936 + $0x8] sm:$0xff]
        %v2939 = vld [vmem:[%s2936 + $0x10] sm:$0xff]
        %v2940 = vld [vmem:[%s2936 + $0x18] sm:$0xff]
        %v2941 = vld [vmem:[%s2936 + $0x20] sm:$0xff]
        %v2942 = vld [vmem:[%s2936 + $0x28] sm:$0xff]
        %v2943 = vld [vmem:[%s2936 + $0x30] sm:$0xff]
        %v2944 = vld [vmem:[%s2936 + $0x38] sm:$0xff]
        %v2945 = vld [vmem:[%s2936 + $0x40] sm:$0xff]
        %v2946 = vld [vmem:[%s2936 + $0x48] sm:$0xff]
        %v2947 = vld [vmem:[%s2936 + $0x50] sm:$0xff]
        %v2948 = vld [vmem:[%s2936 + $0x58] sm:$0xff]
        %v2949 = vld [vmem:[%s2936 + $0x60] sm:$0xff]
        %v2950 = vld [vmem:[%s2936 + $0x68] sm:$0xff]
        %v2951 = vld [vmem:[%s2936 + $0x70] sm:$0xff]
        %v2952 = vld [vmem:[%s2936 + $0x78] sm:$0xff]
        %v2954 = vsel %vm2402, %v2892, 0
        %v2957 = vsel %vm2402, %v2897, 0
        %2959 = vmatprep.subr.mxu0 %v2938
        %2960 = vmatpush1.msra.mxu0 %v2937
        %2961 = vmatprep.subr.mxu0 %v2940
        %2962 = vmatpush1.msra.mxu0 %v2939
        %2963 = vmatprep.subr.mxu0 %v2942
        %2964 = vmatpush1.msra.mxu0 %v2941
        %2965 = vmatprep.subr.mxu0 %v2944
        %2966 = vmatpush1.msra.mxu0 %v2943
        %2967 = vmatprep.subr.mxu0 %v2946
        %2968 = vmatpush1.msra.mxu0 %v2945
        %2969 = vmatprep.subr.mxu0 %v2948
        %2970 = vmatpush1.msra.mxu0 %v2947
        %2971 = vmatprep.subr.mxu0 %v2950
        %2972 = vmatpush1.msra.mxu0 %v2949
        %2973 = vmatprep.subr.mxu0 %v2952
        %2974 = vmatpush1.msra.mxu0 %v2951
        %2975 = vmatprep.subr.mxu0 0.0
        %2976 = vmatpush1.msra.mxu0 0.0
        %2977 = vmatprep.subr.mxu0 0.0
        %2978 = vmatpush1.msra.mxu0 0.0
        %2979 = vmatprep.subr.mxu0 0.0
        %2980 = vmatpush1.msra.mxu0 0.0
        %2981 = vmatprep.subr.mxu0 0.0
        %2982 = vmatpush1.msra.mxu0 0.0
        %2983 = vmatprep.subr.mxu0 0.0
        %2984 = vmatpush1.msra.mxu0 0.0
        %2985 = vmatprep.subr.mxu0 0.0
        %2986 = vmatpush1.msra.mxu0 0.0
        %2987 = vmatprep.subr.mxu0 0.0
        %2988 = vmatpush1.msra.mxu0 0.0
        %2989 = vmatprep.subr.mxu0 0.0
        %2990 = vmatpush1.msra.mxu0 0.0
        %2991 = vmatprep.subr.mxu0 0.0
        %2992 = vmatpush1.msra.mxu0 0.0
        %2993 = vmatprep.subr.mxu0 0.0
        %2994 = vmatpush1.msra.mxu0 0.0
        %2995 = vmatprep.subr.mxu0 0.0
        %2996 = vmatpush1.msra.mxu0 0.0
        %2997 = vmatprep.subr.mxu0 0.0
        %2998 = vmatpush1.msra.mxu0 0.0
        %2999 = vmatprep.subr.mxu0 0.0
        %3000 = vmatpush1.msra.mxu0 0.0
        %3001 = vmatprep.subr.mxu0 0.0
        %3002 = vmatpush1.msra.mxu0 0.0
        %3003 = vmatprep.subr.mxu0 0.0
        %3004 = vmatpush1.msra.mxu0 0.0
        %3005 = vmatprep.subr.mxu0 0.0
        %3006 = vmatpush1.msra.mxu0 0.0
        %3007 = vmatprep.subr.mxu0 0.0
        %3008 = vmatpush1.msra.mxu0 0.0
        %3009 = vmatprep.subr.mxu0 0.0
        %3010 = vmatpush1.msra.mxu0 0.0
        %3011 = vmatprep.subr.mxu0 0.0
        %3012 = vmatpush1.msra.mxu0 0.0
        %3013 = vmatprep.subr.mxu0 0.0
        %3014 = vmatpush1.msra.mxu0 0.0
        %3015 = vmatprep.subr.mxu0 0.0
        %3016 = vmatpush1.msra.mxu0 0.0
        %3017 = vmatprep.subr.mxu0 0.0
        %3018 = vmatpush1.msra.mxu0 0.0
        %3019 = vmatprep.subr.mxu0 0.0
        %3020 = vmatpush1.msra.mxu0 0.0
        %3021 = vmatprep.subr.mxu0 0.0
        %3022 = vmatpush1.msra.mxu0 0.0
        %3023 = vmatprep.mubr.f32.mxu0 0.0
        %3024 = vmatmul.mubr.f32.gmra.mrb[0].mxu0 %v2954
        %v3025 = vpop.f32.mrb[0].mxu0
        %v3026 = vadd.f32 0.0, %v3025
        %v3027 = vpop.f32.mrb[0].mxu0
        %v3028 = vadd.f32 0.0, %v3027
        %3029 = vmatprep.mubr.f32.mxu0 0.0
        %3030 = vmatmul.mubr.f32.gmra.mrb[0].mxu0 %v2957
        %v3031 = vpop.f32.mrb[0].mxu0
        %v3032 = vadd.f32 0.0, %v3031
        %v3033 = vpop.f32.mrb[0].mxu0
        %v3034 = vadd.f32 0.0, %v3033
        %3035 = vdwg.mxu0
        %v3037 = vsel %vm2402, %v2882, 0
        %v3040 = vsel %vm2402, %v2887, 0
        %3042 = vmatprep.subr.mxu0 %v2921
        %3043 = vmatpush1.msra.mxu0 %v2920
        %3044 = vmatprep.subr.mxu0 %v2923
        %3045 = vmatpush1.msra.mxu0 %v2922
        %3046 = vmatprep.subr.mxu0 %v2925
        %3047 = vmatpush1.msra.mxu0 %v2924
        %3048 = vmatprep.subr.mxu0 %v2927
        %3049 = vmatpush1.msra.mxu0 %v2926
        %3050 = vmatprep.subr.mxu0 %v2929
        %3051 = vmatpush1.msra.mxu0 %v2928
        %3052 = vmatprep.subr.mxu0 %v2931
        %3053 = vmatpush1.msra.mxu0 %v2930
        %3054 = vmatprep.subr.mxu0 %v2933
        %3055 = vmatpush1.msra.mxu0 %v2932
        %3056 = vmatprep.subr.mxu0 %v2935
        %3057 = vmatpush1.msra.mxu0 %v2934
        %3058 = vmatprep.subr.mxu0 0.0
        %3059 = vmatpush1.msra.mxu0 0.0
        %3060 = vmatprep.subr.mxu0 0.0
        %3061 = vmatpush1.msra.mxu0 0.0
        %3062 = vmatprep.subr.mxu0 0.0
        %3063 = vmatpush1.msra.mxu0 0.0
        %3064 = vmatprep.subr.mxu0 0.0
        %3065 = vmatpush1.msra.mxu0 0.0
        %3066 = vmatprep.subr.mxu0 0.0
        %3067 = vmatpush1.msra.mxu0 0.0
        %3068 = vmatprep.subr.mxu0 0.0
        %3069 = vmatpush1.msra.mxu0 0.0
        %3070 = vmatprep.subr.mxu0 0.0
        %3071 = vmatpush1.msra.mxu0 0.0
        %3072 = vmatprep.subr.mxu0 0.0
        %3073 = vmatpush1.msra.mxu0 0.0
        %3074 = vmatprep.subr.mxu0 0.0
        %3075 = vmatpush1.msra.mxu0 0.0
        %3076 = vmatprep.subr.mxu0 0.0
        %3077 = vmatpush1.msra.mxu0 0.0
        %3078 = vmatprep.subr.mxu0 0.0
        %3079 = vmatpush1.msra.mxu0 0.0
        %3080 = vmatprep.subr.mxu0 0.0
        %3081 = vmatpush1.msra.mxu0 0.0
        %3082 = vmatprep.subr.mxu0 0.0
        %3083 = vmatpush1.msra.mxu0 0.0
        %3084 = vmatprep.subr.mxu0 0.0
        %3085 = vmatpush1.msra.mxu0 0.0
        %3086 = vmatprep.subr.mxu0 0.0
        %3087 = vmatpush1.msra.mxu0 0.0
        %3088 = vmatprep.subr.mxu0 0.0
        %3089 = vmatpush1.msra.mxu0 0.0
        %3090 = vmatprep.subr.mxu0 0.0
        %3091 = vmatpush1.msra.mxu0 0.0
        %3092 = vmatprep.subr.mxu0 0.0
        %3093 = vmatpush1.msra.mxu0 0.0
        %3094 = vmatprep.subr.mxu0 0.0
        %3095 = vmatpush1.msra.mxu0 0.0
        %3096 = vmatprep.subr.mxu0 0.0
        %3097 = vmatpush1.msra.mxu0 0.0
        %3098 = vmatprep.subr.mxu0 0.0
        %3099 = vmatpush1.msra.mxu0 0.0
        %3100 = vmatprep.subr.mxu0 0.0
        %3101 = vmatpush1.msra.mxu0 0.0
        %3102 = vmatprep.subr.mxu0 0.0
        %3103 = vmatpush1.msra.mxu0 0.0
        %3104 = vmatprep.subr.mxu0 0.0
        %3105 = vmatpush1.msra.mxu0 0.0
        %3106 = vmatprep.mubr.f32.mxu0 0.0
        %3107 = vmatmul.mubr.f32.gmra.mrb[0].mxu0 %v3037
        %v3108 = vpop.f32.mrb[0].mxu0
        %v3109 = vadd.f32 %v3026, %v3108
        %v3110 = vpop.f32.mrb[0].mxu0
        %v3111 = vadd.f32 %v3028, %v3110
        %3112 = vmatprep.mubr.f32.mxu0 0.0
        %3113 = vmatmul.mubr.f32.gmra.mrb[0].mxu0 %v3040
        %v3114 = vpop.f32.mrb[0].mxu0
        %v3115 = vadd.f32 %v3032, %v3114
        %v3116 = vpop.f32.mrb[0].mxu0
        %v3117 = vadd.f32 %v3034, %v3116
        %3118 = vdwg.mxu0
        %s3119 = scalar_lea.vmem %s24, 256
        %v3120 = vld [vmem:[%s3119] sm:$0xff]
        %v3121 = vld [vmem:[%s3119 + $0x8] sm:$0xff]
        %v3122 = vld [vmem:[%s3119 + $0x10] sm:$0xff]
        %v3123 = vld [vmem:[%s3119 + $0x18] sm:$0xff]
        %v3124 = vld [vmem:[%s3119 + $0x20] sm:$0xff]
        %v3125 = vld [vmem:[%s3119 + $0x28] sm:$0xff]
        %v3126 = vld [vmem:[%s3119 + $0x30] sm:$0xff]
        %v3127 = vld [vmem:[%s3119 + $0x38] sm:$0xff]
        %v3128 = vld [vmem:[%s3119 + $0x40] sm:$0xff]
        %v3129 = vld [vmem:[%s3119 + $0x48] sm:$0xff]
        %v3130 = vld [vmem:[%s3119 + $0x50] sm:$0xff]
        %v3131 = vld [vmem:[%s3119 + $0x58] sm:$0xff]
        %v3132 = vld [vmem:[%s3119 + $0x60] sm:$0xff]
        %v3133 = vld [vmem:[%s3119 + $0x68] sm:$0xff]
        %v3134 = vld [vmem:[%s3119 + $0x70] sm:$0xff]
        %v3135 = vld [vmem:[%s3119 + $0x78] sm:$0xff]
        %v3137 = vsel %vm2402, %v2902, 0
        %v3140 = vsel %vm2402, %v2907, 0
        %3142 = vmatprep.subr.mxu0 %v3121
        %3143 = vmatpush1.msra.mxu0 %v3120
        %3144 = vmatprep.subr.mxu0 %v3123
        %3145 = vmatpush1.msra.mxu0 %v3122
        %3146 = vmatprep.subr.mxu0 %v3125
        %3147 = vmatpush1.msra.mxu0 %v3124
        %3148 = vmatprep.subr.mxu0 %v3127
        %3149 = vmatpush1.msra.mxu0 %v3126
        %3150 = vmatprep.subr.mxu0 %v3129
        %3151 = vmatpush1.msra.mxu0 %v3128
        %3152 = vmatprep.subr.mxu0 %v3131
        %3153 = vmatpush1.msra.mxu0 %v3130
        %3154 = vmatprep.subr.mxu0 %v3133
        %3155 = vmatpush1.msra.mxu0 %v3132
        %3156 = vmatprep.subr.mxu0 %v3135
        %3157 = vmatpush1.msra.mxu0 %v3134
        %3158 = vmatprep.subr.mxu0 0.0
        %3159 = vmatpush1.msra.mxu0 0.0
        %3160 = vmatprep.subr.mxu0 0.0
        %3161 = vmatpush1.msra.mxu0 0.0
        %3162 = vmatprep.subr.mxu0 0.0
        %3163 = vmatpush1.msra.mxu0 0.0
        %3164 = vmatprep.subr.mxu0 0.0
        %3165 = vmatpush1.msra.mxu0 0.0
        %3166 = vmatprep.subr.mxu0 0.0
        %3167 = vmatpush1.msra.mxu0 0.0
        %3168 = vmatprep.subr.mxu0 0.0
        %3169 = vmatpush1.msra.mxu0 0.0
        %3170 = vmatprep.subr.mxu0 0.0
        %3171 = vmatpush1.msra.mxu0 0.0
        %3172 = vmatprep.subr.mxu0 0.0
        %3173 = vmatpush1.msra.mxu0 0.0
        %3174 = vmatprep.subr.mxu0 0.0
        %3175 = vmatpush1.msra.mxu0 0.0
        %3176 = vmatprep.subr.mxu0 0.0
        %3177 = vmatpush1.msra.mxu0 0.0
        %3178 = vmatprep.subr.mxu0 0.0
        %3179 = vmatpush1.msra.mxu0 0.0
        %3180 = vmatprep.subr.mxu0 0.0
        %3181 = vmatpush1.msra.mxu0 0.0
        %3182 = vmatprep.subr.mxu0 0.0
        %3183 = vmatpush1.msra.mxu0 0.0
        %3184 = vmatprep.subr.mxu0 0.0
        %3185 = vmatpush1.msra.mxu0 0.0
        %3186 = vmatprep.subr.mxu0 0.0
        %3187 = vmatpush1.msra.mxu0 0.0
        %3188 = vmatprep.subr.mxu0 0.0
        %3189 = vmatpush1.msra.mxu0 0.0
        %3190 = vmatprep.subr.mxu0 0.0
        %3191 = vmatpush1.msra.mxu0 0.0
        %3192 = vmatprep.subr.mxu0 0.0
        %3193 = vmatpush1.msra.mxu0 0.0
        %3194 = vmatprep.subr.mxu0 0.0
        %3195 = vmatpush1.msra.mxu0 0.0
        %3196 = vmatprep.subr.mxu0 0.0
        %3197 = vmatpush1.msra.mxu0 0.0
        %3198 = vmatprep.subr.mxu0 0.0
        %3199 = vmatpush1.msra.mxu0 0.0
        %3200 = vmatprep.subr.mxu0 0.0
        %3201 = vmatpush1.msra.mxu0 0.0
        %3202 = vmatprep.subr.mxu0 0.0
        %3203 = vmatpush1.msra.mxu0 0.0
        %3204 = vmatprep.subr.mxu0 0.0
        %3205 = vmatpush1.msra.mxu0 0.0
        %3206 = vmatprep.mubr.f32.mxu0 0.0
        %3207 = vmatmul.mubr.f32.gmra.mrb[0].mxu0 %v3137
        %v3208 = vpop.f32.mrb[0].mxu0
        %v3209 = vadd.f32 0.0, %v3208
        %v3210 = vpop.f32.mrb[0].mxu0
        %v3211 = vadd.f32 0.0, %v3210
        %3212 = vmatprep.mubr.f32.mxu0 0.0
        %3213 = vmatmul.mubr.f32.gmra.mrb[0].mxu0 %v3140
        %v3214 = vpop.f32.mrb[0].mxu0
        %v3215 = vadd.f32 0.0, %v3214
        %v3216 = vpop.f32.mrb[0].mxu0
        %v3217 = vadd.f32 0.0, %v3216
        %3218 = vdwg.mxu0
        %v3219 = vadd.f32 %v3109, %v3209
        %v3220 = vadd.f32 %v3111, %v3211
        %v3221 = vadd.f32 %v3115, %v3215
        %v3222 = vadd.f32 %v3117, %v3217
        %s3223 = scalar_lea.vmem %s24, 384
        %v3224 = vld [vmem:[%s3223] sm:$0xff]
        %v3225 = vld [vmem:[%s3223 + $0x8] sm:$0xff]
        %v3226 = vld [vmem:[%s3223 + $0x10] sm:$0xff]
        %v3227 = vld [vmem:[%s3223 + $0x18] sm:$0xff]
        %v3228 = vld [vmem:[%s3223 + $0x20] sm:$0xff]
        %v3229 = vld [vmem:[%s3223 + $0x28] sm:$0xff]
        %v3230 = vld [vmem:[%s3223 + $0x30] sm:$0xff]
        %v3231 = vld [vmem:[%s3223 + $0x38] sm:$0xff]
        %v3232 = vld [vmem:[%s3223 + $0x40] sm:$0xff]
        %v3233 = vld [vmem:[%s3223 + $0x48] sm:$0xff]
        %v3234 = vld [vmem:[%s3223 + $0x50] sm:$0xff]
        %v3235 = vld [vmem:[%s3223 + $0x58] sm:$0xff]
        %v3236 = vld [vmem:[%s3223 + $0x60] sm:$0xff]
        %v3237 = vld [vmem:[%s3223 + $0x68] sm:$0xff]
        %v3238 = vld [vmem:[%s3223 + $0x70] sm:$0xff]
        %v3239 = vld [vmem:[%s3223 + $0x78] sm:$0xff]
        %v3241 = vsel %vm2402, %v2912, 0
        %v3244 = vsel %vm2402, %v2917, 0
        %3246 = vmatprep.subr.mxu0 %v3225
        %3247 = vmatpush1.msra.mxu0 %v3224
        %3248 = vmatprep.subr.mxu0 %v3227
        %3249 = vmatpush1.msra.mxu0 %v3226
        %3250 = vmatprep.subr.mxu0 %v3229
        %3251 = vmatpush1.msra.mxu0 %v3228
        %3252 = vmatprep.subr.mxu0 %v3231
        %3253 = vmatpush1.msra.mxu0 %v3230
        %3254 = vmatprep.subr.mxu0 %v3233
        %3255 = vmatpush1.msra.mxu0 %v3232
        %3256 = vmatprep.subr.mxu0 %v3235
        %3257 = vmatpush1.msra.mxu0 %v3234
        %3258 = vmatprep.subr.mxu0 %v3237
        %3259 = vmatpush1.msra.mxu0 %v3236
        %3260 = vmatprep.subr.mxu0 %v3239
        %3261 = vmatpush1.msra.mxu0 %v3238
        %3262 = vmatprep.subr.mxu0 0.0
        %3263 = vmatpush1.msra.mxu0 0.0
        %3264 = vmatprep.subr.mxu0 0.0
        %3265 = vmatpush1.msra.mxu0 0.0
        %3266 = vmatprep.subr.mxu0 0.0
        %3267 = vmatpush1.msra.mxu0 0.0
        %3268 = vmatprep.subr.mxu0 0.0
        %3269 = vmatpush1.msra.mxu0 0.0
        %3270 = vmatprep.subr.mxu0 0.0
        %3271 = vmatpush1.msra.mxu0 0.0
        %3272 = vmatprep.subr.mxu0 0.0
        %3273 = vmatpush1.msra.mxu0 0.0
        %3274 = vmatprep.subr.mxu0 0.0
        %3275 = vmatpush1.msra.mxu0 0.0
        %3276 = vmatprep.subr.mxu0 0.0
        %3277 = vmatpush1.msra.mxu0 0.0
        %3278 = vmatprep.subr.mxu0 0.0
        %3279 = vmatpush1.msra.mxu0 0.0
        %3280 = vmatprep.subr.mxu0 0.0
        %3281 = vmatpush1.msra.mxu0 0.0
        %3282 = vmatprep.subr.mxu0 0.0
        %3283 = vmatpush1.msra.mxu0 0.0
        %3284 = vmatprep.subr.mxu0 0.0
        %3285 = vmatpush1.msra.mxu0 0.0
        %3286 = vmatprep.subr.mxu0 0.0
        %3287 = vmatpush1.msra.mxu0 0.0
        %3288 = vmatprep.subr.mxu0 0.0
        %3289 = vmatpush1.msra.mxu0 0.0
        %3290 = vmatprep.subr.mxu0 0.0
        %3291 = vmatpush1.msra.mxu0 0.0
        %3292 = vmatprep.subr.mxu0 0.0
        %3293 = vmatpush1.msra.mxu0 0.0
        %3294 = vmatprep.subr.mxu0 0.0
        %3295 = vmatpush1.msra.mxu0 0.0
        %3296 = vmatprep.subr.mxu0 0.0
        %3297 = vmatpush1.msra.mxu0 0.0
        %3298 = vmatprep.subr.mxu0 0.0
        %3299 = vmatpush1.msra.mxu0 0.0
        %3300 = vmatprep.subr.mxu0 0.0
        %3301 = vmatpush1.msra.mxu0 0.0
        %3302 = vmatprep.subr.mxu0 0.0
        %3303 = vmatpush1.msra.mxu0 0.0
        %3304 = vmatprep.subr.mxu0 0.0
        %3305 = vmatpush1.msra.mxu0 0.0
        %3306 = vmatprep.subr.mxu0 0.0
        %3307 = vmatpush1.msra.mxu0 0.0
        %3308 = vmatprep.subr.mxu0 0.0
        %3309 = vmatpush1.msra.mxu0 0.0
        %3310 = vmatprep.mubr.f32.mxu0 0.0
        %3311 = vmatmul.mubr.f32.gmra.mrb[0].mxu0 %v3241
        %v3312 = vpop.f32.mrb[0].mxu0
        %v3313 = vadd.f32 0.0, %v3312
        %v3314 = vpop.f32.mrb[0].mxu0
        %v3315 = vadd.f32 0.0, %v3314
        %3316 = vmatprep.mubr.f32.mxu0 0.0
        %3317 = vmatmul.mubr.f32.gmra.mrb[0].mxu0 %v3244
        %v3318 = vpop.f32.mrb[0].mxu0
        %v3319 = vadd.f32 0.0, %v3318
        %v3320 = vpop.f32.mrb[0].mxu0
        %v3321 = vadd.f32 0.0, %v3320
        %3322 = vdwg.mxu0
        %v3323 = vadd.f32 %v3219, %v3313
        %v3324 = vadd.f32 %v3220, %v3315
        %v3325 = vadd.f32 %v3221, %v3319
        %v3326 = vadd.f32 %v3222, %v3321
        %v3327 = vld [vmem:[%s22] sm:$0xff]
        %v3328 = vld [vmem:[%s22 + $0x8] sm:$0xff]
        %3330 = vset.pattern.permute.xlu0 0
        %3331 = vperm.xlu0 %3330, %v3327
        %v3332 = vpop.permute.xlu0 %3331
        %3335 = vset.pattern.permute.xlu0 0
        %3336 = vperm.xlu0 %3335, %v3328
        %v3337 = vpop.permute.xlu0 %3336
        %v3339 = vmul.f32 %v3323, %v3332
        %v3340 = vmul.f32 %v3324, %v3332
        %v3341 = vmul.f32 %v3325, %v3337
        %v3342 = vmul.f32 %v3326, %v3337
        %v3343 = vld [vmem:[%s23] sm:$0xff]
        %v3344 = vld [vmem:[%s23 + $0x8] sm:$0xff]
        %3346 = vset.pattern.permute.xlu0 0
        %3347 = vperm.xlu0 %3346, %v3343
        %v3348 = vpop.permute.xlu0 %3347
        %3351 = vset.pattern.permute.xlu0 0
        %3352 = vperm.xlu0 %3351, %v3344
        %v3353 = vpop.permute.xlu0 %3352
        %v3355 = vadd.f32 %v3339, %v3348
        %v3356 = vadd.f32 %v3340, %v3348
        %v3357 = vadd.f32 %v3341, %v3353
        %v3358 = vadd.f32 %v3342, %v3353
        %v3359 = vmax.f32 %v3355, 0.0
        %v3360 = vmax.f32 %v3356, 0.0
        %v3361 = vmax.f32 %v3357, 0.0
        %v3362 = vmax.f32 %v3358, 0.0
        %3363 = vst [vmem:[%s757 + $0x20] sm:$0xff] %v3359
        %3364 = vst [vmem:[%s757 + $0x28] sm:$0xff] %v3360
        %3365 = vst [vmem:[%s757 + $0x30] sm:$0xff] %v3361
        %3366 = vst [vmem:[%s757 + $0x38] sm:$0xff] %v3362
        %s3367 = sand.u32 %s577, 1
        %s3368 = scalar_lea.sflag [#allocation5], %s3367
        %s3369 = sand.u32 %s577, 1
        %s3370 = smul.addr %s3369, 64
        %s3371 = scalar_lea.vmem [#allocation4], %s3370
        // Predicated region
        $region121: #{tpu_custom_call.1} parent=119 // pred_check
          %p3372 = pneg %p587
        $region122: #{tpu_custom_call.1} parent=119 // pred_check_branch
          %3374 = sbr.rel (%p3372) target = $region124
        $region123: #{tpu_custom_call.1} parent=119 // pred_region
          %s3376 = ssub.s32 1024, 1024
          %3377 = vsyncadd %s3368, %s3376
          %s3378 = smul.addr %s39, 8
          %s3379 = smul.addr %s3378, 128
          %s3380 = scalar_lea.hbm %s25, %s3379
          %s3381 = sshll.u32 %s3371, 4
          %s3382 = int_to_ptr.vmem [resolvable:$true] %s3381
          %3387 = dma.vmem_to_hbm [thread:$0]  %s3382, 1024, %s3380, %s3368, 256, 256, 16
        $region124: #{tpu_custom_call.1} parent=119 // pred_fallthru
          _
      $region120: #{tpu_custom_call.1} parent=5 // pred_fallthru
        _
      %p3388 = scmp.le.s32.totalorder 2, %s34
      // Predicated region
      $region125: #{tpu_custom_call.1} parent=5 // pred_check
        %p3389 = pneg %p3388
      $region126: #{tpu_custom_call.1} parent=5 // pred_check_branch
        %3391 = sbr.rel (%p3389) target = $region128
      $region127: #{tpu_custom_call.1} parent=5 // pred_region
        %s3392 = ssub.s32 %s34, 2
        // Predicated region
        $region129: #{tpu_custom_call.1} parent=127 // pred_check
          %p3393 = pneg %p593
        $region130: #{tpu_custom_call.1} parent=127 // pred_check_branch
          %3395 = sbr.rel (%p3393) target = $region132
        $region131: #{tpu_custom_call.1} parent=127 // pred_region
          %s3396 = sand.u32 %s578, 1
          %s3397 = scalar_lea.sflag [#allocation5], %s3396
          %s3398 = sand.u32 %s578, 1
          %s3399 = smul.addr %s3398, 64
          %s3400 = scalar_lea.vmem [#allocation4], %s3399
          %3401 = dma.done %s3397, 1024
        $region132: #{tpu_custom_call.1} parent=127 // pred_fallthru
          _
      $region128: #{tpu_custom_call.1} parent=5 // pred_fallthru
        _
    $region6: #{tpu_custom_call.1} parent=1 // loop_footer
      %s38 = sadd.s32 1, %s34
    $region7: #{tpu_custom_call.1} parent=1 // loop_footer_branch
      %33 = sbr.rel target = $region3
    $region8: #{tpu_custom_call.1} parent=1 // loop_exit
      _
    %3402 = vsyncpa [#allocation5], 1
    %s3403 = scalar_lea.sflag [#allocation5], 1
    %3404 = vsyncpa %s3403, 1

</llo_original>
